<compile_context>
chip_gen: v7x
topology: tpu7x:2x2x1
jax: 0.10.0
libtpu: 0.0.40
codegen_flags: <defaults>
</compile_context>

<pallas_src>
import functools

import jax
import jax.numpy as jnp
import numpy as np
from jax.experimental import pallas as pl
from jax.experimental.pallas import tpu as pltpu

N_WIRES = 3606            # fixed in the PyTorch module
ENCODED_DIM = 8
HIDDEN = 2 * ENCODED_DIM


def _round_up(x, m):
    return (x + m - 1) // m * m


def _default_tm():
    """1024 on v7x (per perf review), 512 on v5e/v6e/others."""
    try:
        kind = jax.devices()[0].device_kind.lower()
    except Exception:
        return 512
    return 1024 if ("v7" in kind or "7x" in kind) else 512


def vae_kernel(x_ref, eps_ref,
               w1_ref, b1_ref, wmulv_ref, bmulv_ref,
               dw1_ref, db1_ref, dw2_ref, db2_ref,
               y_ref, mulv_ref):
    # NOTE: on a partial last grid block, rows beyond M contain garbage VMEM
    # and flow through exp/tanh (possible transient inf/NaN); their writes are
    # masked so outputs are correct.  Do NOT add a cross-row reduction here.
    E = eps_ref.shape[-1]

    # ---- Encoder ----  (bf16 x / w1 on the MXU, f32 accumulation)
    h = jnp.tanh(
        jnp.dot(x_ref[...], w1_ref[...], preferred_element_type=jnp.float32)
        + b1_ref[...])                                          # (TM, H) f32

    # fused mu|logvar projection: one (H, 2E) matmul instead of two
    mulv = (jnp.dot(h, wmulv_ref[...], preferred_element_type=jnp.float32)
            + bmulv_ref[...])                                   # (TM, 2E) f32
    mulv_ref[...] = mulv                                        # stays f32 (KL path)
    mu = mulv[:, :E]
    logvar = mulv[:, E:]

    # ---- Reparameterization + tanh ----
    z = jnp.tanh(mu + eps_ref[...] * jnp.exp(0.5 * logvar))     # (TM, E) f32

    # ---- Decoder ----
    d = jnp.maximum(
        jnp.dot(z, dw1_ref[...], preferred_element_type=jnp.float32)
        + db1_ref[...], 0.0)                                    # (TM, H) f32
    y = (jnp.dot(d.astype(dw2_ref.dtype), dw2_ref[...],
                 preferred_element_type=jnp.float32)
         + db2_ref[...])                                        # (TM, n_wires) f32
    y_ref[...] = y.astype(y_ref.dtype)                          # bf16 store (halves y HBM traffic)


def init_params(key, encoded_dim=ENCODED_DIM):
    """Canonical f32 parameters (PyTorch nn.Linear-style init), [in, out] layout."""
    hidden = 2 * encoded_dim
    ks = jax.random.split(key, 5)

    def lin(k, fan_in, fan_out):
        bound = 1.0 / np.sqrt(fan_in)
        kw, kb = jax.random.split(k)
        w = jax.random.uniform(kw, (fan_in, fan_out), jnp.float32, -bound, bound)
        b = jax.random.uniform(kb, (1, fan_out), jnp.float32, -bound, bound)
        return w, b

    w1, b1 = lin(ks[0], N_WIRES, hidden)            # enc.lin1
    wmu, bmu = lin(ks[1], hidden, encoded_dim)      # enc.lin_mu
    wlv, blv = lin(ks[2], hidden, encoded_dim)      # enc.lin_logvar
    dw1, db1 = lin(ks[3], encoded_dim, hidden)      # dec.lin1
    dw2, db2 = lin(ks[4], hidden, N_WIRES)          # dec.lin2
    return dict(w1=w1, b1=b1, wmu=wmu, bmu=bmu, wlv=wlv, blv=blv,
                dw1=dw1, db1=db1, dw2=dw2, db2=db2)


def prepare_params(p):
    """Pack params into kernel layout: bf16 big weights (no padding), fused mu|logvar."""
    w1 = p["w1"].astype(jnp.bfloat16)                            # (3606, H) bf16
    wmulv = jnp.concatenate([p["wmu"], p["wlv"]], axis=1)        # (H, 2E) f32
    bmulv = jnp.concatenate([p["bmu"], p["blv"]], axis=1)        # (1, 2E) f32
    dw2 = p["dw2"].astype(jnp.bfloat16)                          # (H, 3606) bf16
    return (w1, p["b1"], wmulv, bmulv, p["dw1"], p["db1"], dw2, p["db2"])


def vae_forward_rows(x_rows, eps, kparams, tm=None):
    """Transpose-free fast path.

    x_rows: (M, n_wires), ideally bf16 (passed to the kernel as-is, no extra
    pad/cast HBM pass); eps: (M, encoded_dim) f32.
    Returns y_rows (M, n_wires) bf16 and mulv = mu|logvar (M, 2*encoded_dim) f32.
    """
    M, nw = x_rows.shape
    assert nw == N_WIRES
    E = eps.shape[-1]
    H = 2 * E
    if tm is None:
        tm = _default_tm()
    # multiple of 16 for bf16 sublane packing; don't over-tile tiny inputs
    tm = min(tm, _round_up(max(M, 16), 16))
    grid = (pl.cdiv(M, tm),)

    eps = eps.astype(jnp.float32)
    (w1, b1, wmulv, bmulv, dw1, db1, dw2, db2) = kparams

    def resident(shape):
        # constant index_map -> weight stays resident in VMEM across the grid
        return pl.BlockSpec(shape, lambda i: (0, 0))

    y_rows, mulv = pl.pallas_call(
        vae_kernel,
        grid=grid,
        in_specs=[
            pl.BlockSpec((tm, N_WIRES), lambda i: (i, 0)),       # x rows (natural width)
            pl.BlockSpec((tm, E), lambda i: (i, 0)),             # eps
            resident((N_WIRES, H)),                              # enc.w1 (bf16)
            resident((1, H)),                                    # enc.b1
            resident((H, 2 * E)),                                # wmu|wlv
            resident((1, 2 * E)),                                # bmu|blv
            resident((E, H)),                                    # dec.w1
            resident((1, H)),                                    # dec.b1
            resident((H, N_WIRES)),                              # dec.w2 (bf16)
            resident((1, N_WIRES)),                              # dec.b2
        ],
        out_specs=(
            pl.BlockSpec((tm, N_WIRES), lambda i: (i, 0)),       # y rows (bf16)
            pl.BlockSpec((tm, 2 * E), lambda i: (i, 0)),         # mu|logvar (f32)
        ),
        out_shape=(
            jax.ShapeDtypeStruct((M, N_WIRES), jnp.bfloat16),
            jax.ShapeDtypeStruct((M, 2 * E), jnp.float32),
        ),
        compiler_params=pltpu.CompilerParams(
            dimension_semantics=("parallel",),
            vmem_limit_bytes=40 * 1024 * 1024,
        ),
    )(x_rows, eps, w1, b1, wmulv, bmulv, dw1, db1, dw2, db2)
    return y_rows, mulv


@functools.partial(jax.jit, static_argnames=("tm",))
def vae_forward(x, eps, kparams, tm=None):
    """PyTorch-layout interface: x (B, n_wires, S) -> y (B, n_wires, S) bf16.

    Also returns kl_loss with the module's exact reduction for 3D input:
      mean_B( -0.5 * sum_S( 1 + logvar - mu^2 - exp(logvar) ) )  -> shape (E,)
    """
    B, nw, S = x.shape
    E = eps.shape[-1]
    # bf16 cast BEFORE the permute so the transpose moves half the bytes
    # (convert + transpose + reshape fuse in XLA).
    x_rows = jnp.transpose(x.astype(jnp.bfloat16), (0, 2, 1)).reshape(B * S, nw)
    y_rows, mulv = vae_forward_rows(x_rows, eps.reshape(B * S, E), kparams, tm=tm)
    y = jnp.transpose(y_rows.reshape(B, S, nw), (0, 2, 1))       # bf16 -> cheap permute

    mu = mulv[:, :E].reshape(B, S, E)
    logvar = mulv[:, E:].reshape(B, S, E)
    kl = jnp.mean(-0.5 * jnp.sum(1.0 + logvar - mu * mu - jnp.exp(logvar), axis=1),
                  axis=0)
    return y, kl


def ref_forward(x, eps, p):
    """Pure-JAX f32 reference mirroring the PyTorch module."""
    xt = jnp.transpose(x, (0, 2, 1))                      # (B, S, n_wires)
    h = jnp.tanh(xt @ p["w1"] + p["b1"])
    mu = h @ p["wmu"] + p["bmu"]
    logvar = h @ p["wlv"] + p["blv"]
    z = jnp.tanh(mu + eps * jnp.exp(0.5 * logvar))
    d = jnp.maximum(z @ p["dw1"] + p["db1"], 0.0)
    y = jnp.transpose(d @ p["dw2"] + p["db2"], (0, 2, 1))
    kl = jnp.mean(-0.5 * jnp.sum(1.0 + logvar - mu * mu - jnp.exp(logvar), axis=1),
                  axis=0)
    return y, kl


if __name__ == "__main__":
    B, S = 2, 8                          # small demo shapes
    key = jax.random.PRNGKey(0)
    k_x, k_eps, k_p = jax.random.split(key, 3)

    x = jax.random.normal(k_x, (B, N_WIRES, S), jnp.float32)
    # eps ~ N(0,1) (torch.randn_like) drawn outside the kernel -> deterministic fwd
    eps = jax.random.normal(k_eps, (B, S, ENCODED_DIM), jnp.float32)
    params = init_params(k_p, ENCODED_DIM)
    kparams = prepare_params(params)

    y, kl = vae_forward(x, eps, kparams)
    jax.block_until_ready((y, kl))

    y_ref, kl_ref = ref_forward(x, eps, params)
    assert y.shape == (B, N_WIRES, S) and y.dtype == jnp.bfloat16
    assert kl.shape == (ENCODED_DIM,)
    y_f32 = y.astype(jnp.float32)
    # tolerance covers bf16 inputs/weights + bf16 output store (<=0.4% rel each)
    assert jnp.allclose(y_f32, y_ref, atol=3e-2, rtol=3e-2), float(
        jnp.max(jnp.abs(y_f32 - y_ref)))
    assert jnp.allclose(kl, kl_ref, atol=2e-2, rtol=2e-2)

    print("KERNEL_OK")
</pallas_src>

<mosaic_0001>
module attributes {stable_mosaic.version = 11 : i64} {
  func.func @vae_kernel(%arg0: i32, %arg1: memref<16x3606xbf16, #tpu.memory_space<vmem>>, %arg2: memref<16x8xf32, #tpu.memory_space<vmem>>, %arg3: memref<3606x16xbf16, #tpu.memory_space<vmem>>, %arg4: memref<1x16xf32, #tpu.memory_space<vmem>>, %arg5: memref<16x16xf32, #tpu.memory_space<vmem>>, %arg6: memref<1x16xf32, #tpu.memory_space<vmem>>, %arg7: memref<8x16xf32, #tpu.memory_space<vmem>>, %arg8: memref<1x16xf32, #tpu.memory_space<vmem>>, %arg9: memref<16x3606xbf16, #tpu.memory_space<vmem>>, %arg10: memref<1x3606xf32, #tpu.memory_space<vmem>>, %arg11: memref<16x3606xbf16, #tpu.memory_space<vmem>>, %arg12: memref<16x16xf32, #tpu.memory_space<vmem>>) attributes {dimension_semantics = [#tpu.dimension_semantics<parallel>], iteration_bounds = array<i64: 1>, scalar_prefetch = 0 : i64, scratch_operands = 0 : i64, tpu.core_type = #tpu.core_type<tc>, window_params = [{transform_indices = @transform_0, window_bounds = array<i64: 16, 3606>}, {transform_indices = @transform_1, window_bounds = array<i64: 16, 8>}, {pipeline_mode = #tpu.pipeline_mode<synchronous>, transform_indices = @transform_2, window_bounds = array<i64: 3606, 16>}, {pipeline_mode = #tpu.pipeline_mode<synchronous>, transform_indices = @transform_3, window_bounds = array<i64: 1, 16>}, {pipeline_mode = #tpu.pipeline_mode<synchronous>, transform_indices = @transform_4, window_bounds = array<i64: 16, 16>}, {pipeline_mode = #tpu.pipeline_mode<synchronous>, transform_indices = @transform_5, window_bounds = array<i64: 1, 16>}, {pipeline_mode = #tpu.pipeline_mode<synchronous>, transform_indices = @transform_6, window_bounds = array<i64: 8, 16>}, {pipeline_mode = #tpu.pipeline_mode<synchronous>, transform_indices = @transform_7, window_bounds = array<i64: 1, 16>}, {pipeline_mode = #tpu.pipeline_mode<synchronous>, transform_indices = @transform_8, window_bounds = array<i64: 16, 3606>}, {pipeline_mode = #tpu.pipeline_mode<synchronous>, transform_indices = @transform_9, window_bounds = array<i64: 1, 3606>}, {transform_indices = @transform_10, window_bounds = array<i64: 16, 3606>}, {transform_indices = @transform_11, window_bounds = array<i64: 16, 16>}]} {
    %c0 = arith.constant 0 : index
    %c0_0 = arith.constant 0 : index
    %0 = vector.load %arg1[%c0, %c0_0] : memref<16x3606xbf16, #tpu.memory_space<vmem>>, vector<16x3606xbf16>
    %c0_1 = arith.constant 0 : index
    %c0_2 = arith.constant 0 : index
    %1 = vector.load %arg3[%c0_1, %c0_2] : memref<3606x16xbf16, #tpu.memory_space<vmem>>, vector<3606x16xbf16>
    %cst = arith.constant dense<0.000000e+00> : vector<16x16xf32>
    %2 = tpu.matmul %0, %1, %cst {dimension_numbers = #tpu.dot_dimension_numbers<[1], [0], [0], [1], [0, 0, 1, 1], [], []>} : vector<16x3606xbf16>, vector<3606x16xbf16>, vector<16x16xf32> -> vector<16x16xf32>
    %c0_3 = arith.constant 0 : index
    %c0_4 = arith.constant 0 : index
    %3 = vector.load %arg4[%c0_3, %c0_4] : memref<1x16xf32, #tpu.memory_space<vmem>>, vector<1x16xf32>
    %4 = vector.broadcast %3 : vector<1x16xf32> to vector<16x16xf32>
    %5 = arith.addf %2, %4 : vector<16x16xf32>
    %6 = math.tanh %5 : vector<16x16xf32>
    %c0_5 = arith.constant 0 : index
    %c0_6 = arith.constant 0 : index
    %7 = vector.load %arg5[%c0_5, %c0_6] : memref<16x16xf32, #tpu.memory_space<vmem>>, vector<16x16xf32>
    %cst_7 = arith.constant dense<0.000000e+00> : vector<16x16xf32>
    %8 = tpu.matmul %6, %7, %cst_7 {dimension_numbers = #tpu.dot_dimension_numbers<[1], [0], [0], [1], [0, 0, 1, 1], [], []>} : vector<16x16xf32>, vector<16x16xf32>, vector<16x16xf32> -> vector<16x16xf32>
    %c0_8 = arith.constant 0 : index
    %c0_9 = arith.constant 0 : index
    %9 = vector.load %arg6[%c0_8, %c0_9] : memref<1x16xf32, #tpu.memory_space<vmem>>, vector<1x16xf32>
    %10 = vector.broadcast %9 : vector<1x16xf32> to vector<16x16xf32>
    %11 = arith.addf %8, %10 : vector<16x16xf32>
    %c0_10 = arith.constant 0 : index
    %c0_11 = arith.constant 0 : index
    %12 = vector.load %arg12[%c0_10, %c0_11] : memref<16x16xf32, #tpu.memory_space<vmem>>, vector<16x16xf32>
    tpu.vector_store %arg12[%c0_10, %c0_11], %11 {strides = array<i32>} : memref<16x16xf32, #tpu.memory_space<vmem>>, vector<16x16xf32>,
    %13 = vector.extract_strided_slice %11 {offsets = [0, 0], sizes = [16, 8], strides = [1, 1]} : vector<16x16xf32> to vector<16x8xf32>
    %14 = vector.extract_strided_slice %11 {offsets = [0, 8], sizes = [16, 8], strides = [1, 1]} : vector<16x16xf32> to vector<16x8xf32>
    %c0_12 = arith.constant 0 : index
    %c0_13 = arith.constant 0 : index
    %15 = vector.load %arg2[%c0_12, %c0_13] : memref<16x8xf32, #tpu.memory_space<vmem>>, vector<16x8xf32>
    %cst_14 = arith.constant 5.000000e-01 : f32
    %16 = vector.broadcast %cst_14 : f32 to vector<16x8xf32>
    %17 = arith.mulf %16, %14 : vector<16x8xf32>
    %18 = math.exp %17 : vector<16x8xf32>
    %19 = arith.mulf %15, %18 : vector<16x8xf32>
    %20 = arith.addf %13, %19 : vector<16x8xf32>
    %21 = math.tanh %20 : vector<16x8xf32>
    %c0_15 = arith.constant 0 : index
    %c0_16 = arith.constant 0 : index
    %22 = vector.load %arg7[%c0_15, %c0_16] : memref<8x16xf32, #tpu.memory_space<vmem>>, vector<8x16xf32>
    %cst_17 = arith.constant dense<0.000000e+00> : vector<16x16xf32>
    %23 = tpu.matmul %21, %22, %cst_17 {dimension_numbers = #tpu.dot_dimension_numbers<[1], [0], [0], [1], [0, 0, 1, 1], [], []>} : vector<16x8xf32>, vector<8x16xf32>, vector<16x16xf32> -> vector<16x16xf32>
    %c0_18 = arith.constant 0 : index
    %c0_19 = arith.constant 0 : index
    %24 = vector.load %arg8[%c0_18, %c0_19] : memref<1x16xf32, #tpu.memory_space<vmem>>, vector<1x16xf32>
    %25 = vector.broadcast %24 : vector<1x16xf32> to vector<16x16xf32>
    %26 = arith.addf %23, %25 : vector<16x16xf32>
    %cst_20 = arith.constant 0.000000e+00 : f32
    %27 = vector.broadcast %cst_20 : f32 to vector<16x16xf32>
    %28 = arith.maximumf %26, %27 : vector<16x16xf32>
    %29 = arith.truncf %28 : vector<16x16xf32> to vector<16x16xbf16>
    %c0_21 = arith.constant 0 : index
    %c0_22 = arith.constant 0 : index
    %30 = vector.load %arg9[%c0_21, %c0_22] : memref<16x3606xbf16, #tpu.memory_space<vmem>>, vector<16x3606xbf16>
    %cst_23 = arith.constant dense<0.000000e+00> : vector<16x3606xf32>
    %31 = tpu.matmul %29, %30, %cst_23 {dimension_numbers = #tpu.dot_dimension_numbers<[1], [0], [0], [1], [0, 0, 1, 1], [], []>} : vector<16x16xbf16>, vector<16x3606xbf16>, vector<16x3606xf32> -> vector<16x3606xf32>
    %c0_24 = arith.constant 0 : index
    %c0_25 = arith.constant 0 : index
    %32 = vector.load %arg10[%c0_24, %c0_25] : memref<1x3606xf32, #tpu.memory_space<vmem>>, vector<1x3606xf32>
    %33 = vector.broadcast %32 : vector<1x3606xf32> to vector<16x3606xf32>
    %34 = arith.addf %31, %33 : vector<16x3606xf32>
    %35 = arith.truncf %34 : vector<16x3606xf32> to vector<16x3606xbf16>
    %c0_26 = arith.constant 0 : index
    %c0_27 = arith.constant 0 : index
    %36 = vector.load %arg11[%c0_26, %c0_27] : memref<16x3606xbf16, #tpu.memory_space<vmem>>, vector<16x3606xbf16>
    tpu.vector_store %arg11[%c0_26, %c0_27], %35 {strides = array<i32>} : memref<16x3606xbf16, #tpu.memory_space<vmem>>, vector<16x3606xbf16>,
    return
  }
  func.func @transform_0(%arg0: i32) -> (i32, i32) {
    %c0_i32 = arith.constant 0 : i32
    %c0_i32_0 = arith.constant 0 : i32
    return %arg0, %c0_i32 : i32, i32
  }
  func.func @transform_1(%arg0: i32) -> (i32, i32) {
    %c0_i32 = arith.constant 0 : i32
    %c0_i32_0 = arith.constant 0 : i32
    return %arg0, %c0_i32 : i32, i32
  }
  func.func @transform_2(%arg0: i32) -> (i32, i32) {
    %c0_i32 = arith.constant 0 : i32
    %c0_i32_0 = arith.constant 0 : i32
    %c0_i32_1 = arith.constant 0 : i32
    return %c0_i32, %c0_i32_0 : i32, i32
  }
  func.func @transform_3(%arg0: i32) -> (i32, i32) {
    %c0_i32 = arith.constant 0 : i32
    %c0_i32_0 = arith.constant 0 : i32
    %c0_i32_1 = arith.constant 0 : i32
    return %c0_i32, %c0_i32_0 : i32, i32
  }
  func.func @transform_4(%arg0: i32) -> (i32, i32) {
    %c0_i32 = arith.constant 0 : i32
    %c0_i32_0 = arith.constant 0 : i32
    %c0_i32_1 = arith.constant 0 : i32
    return %c0_i32, %c0_i32_0 : i32, i32
  }
  func.func @transform_5(%arg0: i32) -> (i32, i32) {
    %c0_i32 = arith.constant 0 : i32
    %c0_i32_0 = arith.constant 0 : i32
    %c0_i32_1 = arith.constant 0 : i32
    return %c0_i32, %c0_i32_0 : i32, i32
  }
  func.func @transform_6(%arg0: i32) -> (i32, i32) {
    %c0_i32 = arith.constant 0 : i32
    %c0_i32_0 = arith.constant 0 : i32
    %c0_i32_1 = arith.constant 0 : i32
    return %c0_i32, %c0_i32_0 : i32, i32
  }
  func.func @transform_7(%arg0: i32) -> (i32, i32) {
    %c0_i32 = arith.constant 0 : i32
    %c0_i32_0 = arith.constant 0 : i32
    %c0_i32_1 = arith.constant 0 : i32
    return %c0_i32, %c0_i32_0 : i32, i32
  }
  func.func @transform_8(%arg0: i32) -> (i32, i32) {
    %c0_i32 = arith.constant 0 : i32
    %c0_i32_0 = arith.constant 0 : i32
    %c0_i32_1 = arith.constant 0 : i32
    return %c0_i32, %c0_i32_0 : i32, i32
  }
  func.func @transform_9(%arg0: i32) -> (i32, i32) {
    %c0_i32 = arith.constant 0 : i32
    %c0_i32_0 = arith.constant 0 : i32
    %c0_i32_1 = arith.constant 0 : i32
    return %c0_i32, %c0_i32_0 : i32, i32
  }
  func.func @transform_10(%arg0: i32) -> (i32, i32) {
    %c0_i32 = arith.constant 0 : i32
    %c0_i32_0 = arith.constant 0 : i32
    return %arg0, %c0_i32 : i32, i32
  }
  func.func @transform_11(%arg0: i32) -> (i32, i32) {
    %c0_i32 = arith.constant 0 : i32
    %c0_i32_0 = arith.constant 0 : i32
    return %arg0, %c0_i32 : i32, i32
  }
}

</mosaic_0001>

<llo_original>
// kernel: vae_forward.1
$region0: #{vae_forward.1}
  #allocation0 [shape = 'u32[]', space=smem, size = 0x4, offset = 0x4, fixed_abs, tag = 'smem constant byte address 0x4 - core index']
  #allocation1 [shape = 'u32[144,128]{1,0:T(1,128)}', space=vmem, size = 0x12000, scoped, tag = 'internal scratch']
  %s0 = inlined_call_operand.vmem [shape: bf16[16,3606], index: 0, kind: input, shape index: {}]
  %s1 = inlined_call_operand.vmem [shape: f32[16,8], index: 1, kind: input, shape index: {}]
  %s2 = inlined_call_operand.vmem [shape: bf16[3606,16], index: 2, kind: input, shape index: {}]
  %s3 = inlined_call_operand.vmem [shape: f32[1,16], index: 3, kind: input, shape index: {}]
  %s4 = inlined_call_operand.vmem [shape: f32[16,16], index: 4, kind: input, shape index: {}]
  %s5 = inlined_call_operand.vmem [shape: f32[1,16], index: 5, kind: input, shape index: {}]
  %s6 = inlined_call_operand.vmem [shape: f32[8,16], index: 6, kind: input, shape index: {}]
  %s7 = inlined_call_operand.vmem [shape: f32[1,16], index: 7, kind: input, shape index: {}]
  %s8 = inlined_call_operand.vmem [shape: bf16[16,3606], index: 8, kind: input, shape index: {}]
  %s9 = inlined_call_operand.vmem [shape: f32[1,3606], index: 9, kind: input, shape index: {}]
  %s10 = inlined_call_operand.hbm [shape: bf16[16,3606], index: 10, kind: output, shape index: {0}]
  %s11 = inlined_call_operand.vmem [shape: f32[16,16], index: 11, kind: output, shape index: {1}]
  %12 = xla_tuple %s10, %s11
  %s13 = sld [smem:[#allocation0]]
  $region58: #{vae_forward.1} parent=0
    _
  %s15 = ssub.s32 1, %s13
  %s16 = scalar_select 0, %s15, %s13
  $region1: #{vae_forward.1} parent=0
    #allocation2 [shape = 'u8[118784]{0}', space=vmem, size = 0x1d000, scoped, tag = 'output window, operand 0, single buffered']
    #allocation3 [shape = 's32[1]{0}', space=sflag, size = 0x4, scoped, tag = 'scoped memory for vae_forward.1']
    %17 = vsyncpa [#allocation3], 0
    // Predicated region
    $region2: #{vae_forward.1} parent=1 // pred_check
      _
    $region3: #{vae_forward.1} parent=1 // pred_check_branch
      %19 = sbr.rel (0) target = $region5
    $region4: #{vae_forward.1} parent=1 // pred_region
      _
    $region5: #{vae_forward.1} parent=1 // pred_fallthru
      _
    // Predicated region
    $region6: #{vae_forward.1} parent=1 // pred_check
      _
    $region7: #{vae_forward.1} parent=1 // pred_check_branch
      %21 = sbr.rel (0) target = $region9
    $region8: #{vae_forward.1} parent=1 // pred_region
      _
    $region9: #{vae_forward.1} parent=1 // pred_fallthru
      _
    // Predicated region
    $region10: #{vae_forward.1} parent=1 // pred_check
      _
    $region11: #{vae_forward.1} parent=1 // pred_check_branch
      %23 = sbr.rel (0) target = $region13
    $region12: #{vae_forward.1} parent=1 // pred_region
      _
    $region13: #{vae_forward.1} parent=1 // pred_fallthru
      _
    // Predicated region
    $region14: #{vae_forward.1} parent=1 // pred_check
      _
    $region15: #{vae_forward.1} parent=1 // pred_check_branch
      %25 = sbr.rel (0) target = $region17
    $region16: #{vae_forward.1} parent=1 // pred_region
      _
    $region17: #{vae_forward.1} parent=1 // pred_fallthru
      _
    // Predicated region
    $region18: #{vae_forward.1} parent=1 // pred_check
      _
    $region19: #{vae_forward.1} parent=1 // pred_check_branch
      %27 = sbr.rel (0) target = $region21
    $region20: #{vae_forward.1} parent=1 // pred_region
      _
    $region21: #{vae_forward.1} parent=1 // pred_fallthru
      _
    // Predicated region
    $region22: #{vae_forward.1} parent=1 // pred_check
      _
    $region23: #{vae_forward.1} parent=1 // pred_check_branch
      %29 = sbr.rel (0) target = $region25
    $region24: #{vae_forward.1} parent=1 // pred_region
      _
    $region25: #{vae_forward.1} parent=1 // pred_fallthru
      _
    // Predicated region
    $region26: #{vae_forward.1} parent=1 // pred_check
      _
    $region27: #{vae_forward.1} parent=1 // pred_check_branch
      %31 = sbr.rel (0) target = $region29
    $region28: #{vae_forward.1} parent=1 // pred_region
      _
    $region29: #{vae_forward.1} parent=1 // pred_fallthru
      _
    // Predicated region
    $region30: #{vae_forward.1} parent=1 // pred_check
      _
    $region31: #{vae_forward.1} parent=1 // pred_check_branch
      %33 = sbr.rel (0) target = $region33
    $region32: #{vae_forward.1} parent=1 // pred_region
      _
    $region33: #{vae_forward.1} parent=1 // pred_fallthru
      _
    // Predicated region
    $region34: #{vae_forward.1} parent=1 // pred_check
      _
    $region35: #{vae_forward.1} parent=1 // pred_check_branch
      %35 = sbr.rel (0) target = $region37
    $region36: #{vae_forward.1} parent=1 // pred_region
      _
    $region37: #{vae_forward.1} parent=1 // pred_fallthru
      _
    // Predicated region
    $region38: #{vae_forward.1} parent=1 // pred_check
      _
    $region39: #{vae_forward.1} parent=1 // pred_check_branch
      %37 = sbr.rel (0) target = $region41
    $region40: #{vae_forward.1} parent=1 // pred_region
      _
    $region41: #{vae_forward.1} parent=1 // pred_fallthru
      _
    %v39 = vld [vmem:[%s0] sm:$0xff]
    %v40 = vld [vmem:[%s0 + $0x8] sm:$0xff]
    %v41 = vld [vmem:[%s0 + $0x10] sm:$0xff]
    %v42 = vld [vmem:[%s0 + $0x18] sm:$0xff]
    %v43 = vld [vmem:[%s0 + $0x20] sm:$0xff]
    %v44 = vld [vmem:[%s0 + $0x28] sm:$0xff]
    %v45 = vld [vmem:[%s0 + $0x30] sm:$0xff]
    %v46 = vld [vmem:[%s0 + $0x38] sm:$0xff]
    %v47 = vld [vmem:[%s0 + $0x40] sm:$0xff]
    %v48 = vld [vmem:[%s0 + $0x48] sm:$0xff]
    %v49 = vld [vmem:[%s0 + $0x50] sm:$0xff]
    %v50 = vld [vmem:[%s0 + $0x58] sm:$0xff]
    %v51 = vld [vmem:[%s0 + $0x60] sm:$0xff]
    %v52 = vld [vmem:[%s0 + $0x68] sm:$0xff]
    %v53 = vld [vmem:[%s0 + $0x70] sm:$0xf]
    %v54 = vld [vmem:[%s0 + $0x74] sm:$0xff]
    %v55 = vld [vmem:[%s0 + $0x7c] sm:$0xff]
    %v56 = vld [vmem:[%s0 + $0x84] sm:$0xff]
    %v57 = vld [vmem:[%s0 + $0x8c] sm:$0xff]
    %v58 = vld [vmem:[%s0 + $0x94] sm:$0xff]
    %v59 = vld [vmem:[%s0 + $0x9c] sm:$0xff]
    %v60 = vld [vmem:[%s0 + $0xa4] sm:$0xff]
    %v61 = vld [vmem:[%s0 + $0xac] sm:$0xff]
    %v62 = vld [vmem:[%s0 + $0xb4] sm:$0xff]
    %v63 = vld [vmem:[%s0 + $0xbc] sm:$0xff]
    %v64 = vld [vmem:[%s0 + $0xc4] sm:$0xff]
    %v65 = vld [vmem:[%s0 + $0xcc] sm:$0xff]
    %v66 = vld [vmem:[%s0 + $0xd4] sm:$0xff]
    %v67 = vld [vmem:[%s0 + $0xdc] sm:$0xff]
    %v68 = vld [vmem:[%s0 + $0xe4] sm:$0xf]
    %v69 = vld [vmem:[%s2] sm:$0xf]
    %v70 = vld [vmem:[%s2 + $0x4] sm:$0xf]
    %v71 = vld [vmem:[%s2 + $0x8] sm:$0xf]
    %v72 = vld [vmem:[%s2 + $0xc] sm:$0xf]
    %v73 = vld [vmem:[%s2 + $0x10] sm:$0xf]
    %v74 = vld [vmem:[%s2 + $0x14] sm:$0xf]
    %v75 = vld [vmem:[%s2 + $0x18] sm:$0xf]
    %v76 = vld [vmem:[%s2 + $0x1c] sm:$0xf]
    %v77 = vld [vmem:[%s2 + $0x20] sm:$0xf]
    %v78 = vld [vmem:[%s2 + $0x24] sm:$0xf]
    %v79 = vld [vmem:[%s2 + $0x28] sm:$0xf]
    %v80 = vld [vmem:[%s2 + $0x2c] sm:$0xf]
    %v81 = vld [vmem:[%s2 + $0x30] sm:$0xf]
    %v82 = vld [vmem:[%s2 + $0x34] sm:$0xf]
    %v83 = vld [vmem:[%s2 + $0x38] sm:$0xf]
    %v84 = vld [vmem:[%s2 + $0x3c] sm:$0xf]
    %v85 = vld [vmem:[%s2 + $0x40] sm:$0xf]
    %v86 = vld [vmem:[%s2 + $0x44] sm:$0xf]
    %v87 = vld [vmem:[%s2 + $0x48] sm:$0xf]
    %v88 = vld [vmem:[%s2 + $0x4c] sm:$0xf]
    %v89 = vld [vmem:[%s2 + $0x50] sm:$0xf]
    %v90 = vld [vmem:[%s2 + $0x54] sm:$0xf]
    %v91 = vld [vmem:[%s2 + $0x58] sm:$0xf]
    %v92 = vld [vmem:[%s2 + $0x5c] sm:$0xf]
    %v93 = vld [vmem:[%s2 + $0x60] sm:$0xf]
    %v94 = vld [vmem:[%s2 + $0x64] sm:$0xf]
    %v95 = vld [vmem:[%s2 + $0x68] sm:$0xf]
    %v96 = vld [vmem:[%s2 + $0x6c] sm:$0xf]
    %v97 = vld [vmem:[%s2 + $0x70] sm:$0xf]
    %v98 = vld [vmem:[%s2 + $0x74] sm:$0xf]
    %v99 = vld [vmem:[%s2 + $0x78] sm:$0xf]
    %v100 = vld [vmem:[%s2 + $0x7c] sm:$0xf]
    %v101 = vld [vmem:[%s2 + $0x80] sm:$0xf]
    %v102 = vld [vmem:[%s2 + $0x84] sm:$0xf]
    %v103 = vld [vmem:[%s2 + $0x88] sm:$0xf]
    %v104 = vld [vmem:[%s2 + $0x8c] sm:$0xf]
    %v105 = vld [vmem:[%s2 + $0x90] sm:$0xf]
    %v106 = vld [vmem:[%s2 + $0x94] sm:$0xf]
    %v107 = vld [vmem:[%s2 + $0x98] sm:$0xf]
    %v108 = vld [vmem:[%s2 + $0x9c] sm:$0xf]
    %v109 = vld [vmem:[%s2 + $0xa0] sm:$0xf]
    %v110 = vld [vmem:[%s2 + $0xa4] sm:$0xf]
    %v111 = vld [vmem:[%s2 + $0xa8] sm:$0xf]
    %v112 = vld [vmem:[%s2 + $0xac] sm:$0xf]
    %v113 = vld [vmem:[%s2 + $0xb0] sm:$0xf]
    %v114 = vld [vmem:[%s2 + $0xb4] sm:$0xf]
    %v115 = vld [vmem:[%s2 + $0xb8] sm:$0xf]
    %v116 = vld [vmem:[%s2 + $0xbc] sm:$0xf]
    %v117 = vld [vmem:[%s2 + $0xc0] sm:$0xf]
    %v118 = vld [vmem:[%s2 + $0xc4] sm:$0xf]
    %v119 = vld [vmem:[%s2 + $0xc8] sm:$0xf]
    %v120 = vld [vmem:[%s2 + $0xcc] sm:$0xf]
    %v121 = vld [vmem:[%s2 + $0xd0] sm:$0xf]
    %v122 = vld [vmem:[%s2 + $0xd4] sm:$0xf]
    %v123 = vld [vmem:[%s2 + $0xd8] sm:$0xf]
    %v124 = vld [vmem:[%s2 + $0xdc] sm:$0xf]
    %v125 = vld [vmem:[%s2 + $0xe0] sm:$0xf]
    %v126 = vld [vmem:[%s2 + $0xe4] sm:$0xf]
    %v127 = vld [vmem:[%s2 + $0xe8] sm:$0xf]
    %v128 = vld [vmem:[%s2 + $0xec] sm:$0xf]
    %v129 = vld [vmem:[%s2 + $0xf0] sm:$0xf]
    %v130 = vld [vmem:[%s2 + $0xf4] sm:$0xf]
    %v131 = vld [vmem:[%s2 + $0xf8] sm:$0xf]
    %v132 = vld [vmem:[%s2 + $0xfc] sm:$0xf]
    %v133 = vld [vmem:[%s2 + $0x100] sm:$0xf]
    %v134 = vld [vmem:[%s2 + $0x104] sm:$0xf]
    %v135 = vld [vmem:[%s2 + $0x108] sm:$0xf]
    %v136 = vld [vmem:[%s2 + $0x10c] sm:$0xf]
    %v137 = vld [vmem:[%s2 + $0x110] sm:$0xf]
    %v138 = vld [vmem:[%s2 + $0x114] sm:$0xf]
    %v139 = vld [vmem:[%s2 + $0x118] sm:$0xf]
    %v140 = vld [vmem:[%s2 + $0x11c] sm:$0xf]
    %v141 = vld [vmem:[%s2 + $0x120] sm:$0xf]
    %v142 = vld [vmem:[%s2 + $0x124] sm:$0xf]
    %v143 = vld [vmem:[%s2 + $0x128] sm:$0xf]
    %v144 = vld [vmem:[%s2 + $0x12c] sm:$0xf]
    %v145 = vld [vmem:[%s2 + $0x130] sm:$0xf]
    %v146 = vld [vmem:[%s2 + $0x134] sm:$0xf]
    %v147 = vld [vmem:[%s2 + $0x138] sm:$0xf]
    %v148 = vld [vmem:[%s2 + $0x13c] sm:$0xf]
    %v149 = vld [vmem:[%s2 + $0x140] sm:$0xf]
    %v150 = vld [vmem:[%s2 + $0x144] sm:$0xf]
    %v151 = vld [vmem:[%s2 + $0x148] sm:$0xf]
    %v152 = vld [vmem:[%s2 + $0x14c] sm:$0xf]
    %v153 = vld [vmem:[%s2 + $0x150] sm:$0xf]
    %v154 = vld [vmem:[%s2 + $0x154] sm:$0xf]
    %v155 = vld [vmem:[%s2 + $0x158] sm:$0xf]
    %v156 = vld [vmem:[%s2 + $0x15c] sm:$0xf]
    %v157 = vld [vmem:[%s2 + $0x160] sm:$0xf]
    %v158 = vld [vmem:[%s2 + $0x164] sm:$0xf]
    %v159 = vld [vmem:[%s2 + $0x168] sm:$0xf]
    %v160 = vld [vmem:[%s2 + $0x16c] sm:$0xf]
    %v161 = vld [vmem:[%s2 + $0x170] sm:$0xf]
    %v162 = vld [vmem:[%s2 + $0x174] sm:$0xf]
    %v163 = vld [vmem:[%s2 + $0x178] sm:$0xf]
    %v164 = vld [vmem:[%s2 + $0x17c] sm:$0xf]
    %v165 = vld [vmem:[%s2 + $0x180] sm:$0xf]
    %v166 = vld [vmem:[%s2 + $0x184] sm:$0xf]
    %v167 = vld [vmem:[%s2 + $0x188] sm:$0xf]
    %v168 = vld [vmem:[%s2 + $0x18c] sm:$0xf]
    %v169 = vld [vmem:[%s2 + $0x190] sm:$0xf]
    %v170 = vld [vmem:[%s2 + $0x194] sm:$0xf]
    %v171 = vld [vmem:[%s2 + $0x198] sm:$0xf]
    %v172 = vld [vmem:[%s2 + $0x19c] sm:$0xf]
    %v173 = vld [vmem:[%s2 + $0x1a0] sm:$0xf]
    %v174 = vld [vmem:[%s2 + $0x1a4] sm:$0xf]
    %v175 = vld [vmem:[%s2 + $0x1a8] sm:$0xf]
    %v176 = vld [vmem:[%s2 + $0x1ac] sm:$0xf]
    %v177 = vld [vmem:[%s2 + $0x1b0] sm:$0xf]
    %v178 = vld [vmem:[%s2 + $0x1b4] sm:$0xf]
    %v179 = vld [vmem:[%s2 + $0x1b8] sm:$0xf]
    %v180 = vld [vmem:[%s2 + $0x1bc] sm:$0xf]
    %v181 = vld [vmem:[%s2 + $0x1c0] sm:$0xf]
    %v182 = vld [vmem:[%s2 + $0x1c4] sm:$0xf]
    %v183 = vld [vmem:[%s2 + $0x1c8] sm:$0xf]
    %v184 = vld [vmem:[%s2 + $0x1cc] sm:$0xf]
    %v185 = vld [vmem:[%s2 + $0x1d0] sm:$0xf]
    %v186 = vld [vmem:[%s2 + $0x1d4] sm:$0xf]
    %v187 = vld [vmem:[%s2 + $0x1d8] sm:$0xf]
    %v188 = vld [vmem:[%s2 + $0x1dc] sm:$0xf]
    %v189 = vld [vmem:[%s2 + $0x1e0] sm:$0xf]
    %v190 = vld [vmem:[%s2 + $0x1e4] sm:$0xf]
    %v191 = vld [vmem:[%s2 + $0x1e8] sm:$0xf]
    %v192 = vld [vmem:[%s2 + $0x1ec] sm:$0xf]
    %v193 = vld [vmem:[%s2 + $0x1f0] sm:$0xf]
    %v194 = vld [vmem:[%s2 + $0x1f4] sm:$0xf]
    %v195 = vld [vmem:[%s2 + $0x1f8] sm:$0xf]
    %v196 = vld [vmem:[%s2 + $0x1fc] sm:$0xf]
    %v197 = vld [vmem:[%s2 + $0x200] sm:$0xf]
    %v198 = vld [vmem:[%s2 + $0x204] sm:$0xf]
    %v199 = vld [vmem:[%s2 + $0x208] sm:$0xf]
    %v200 = vld [vmem:[%s2 + $0x20c] sm:$0xf]
    %v201 = vld [vmem:[%s2 + $0x210] sm:$0xf]
    %v202 = vld [vmem:[%s2 + $0x214] sm:$0xf]
    %v203 = vld [vmem:[%s2 + $0x218] sm:$0xf]
    %v204 = vld [vmem:[%s2 + $0x21c] sm:$0xf]
    %v205 = vld [vmem:[%s2 + $0x220] sm:$0xf]
    %v206 = vld [vmem:[%s2 + $0x224] sm:$0xf]
    %v207 = vld [vmem:[%s2 + $0x228] sm:$0xf]
    %v208 = vld [vmem:[%s2 + $0x22c] sm:$0xf]
    %v209 = vld [vmem:[%s2 + $0x230] sm:$0xf]
    %v210 = vld [vmem:[%s2 + $0x234] sm:$0xf]
    %v211 = vld [vmem:[%s2 + $0x238] sm:$0xf]
    %v212 = vld [vmem:[%s2 + $0x23c] sm:$0xf]
    %v213 = vld [vmem:[%s2 + $0x240] sm:$0xf]
    %v214 = vld [vmem:[%s2 + $0x244] sm:$0xf]
    %v215 = vld [vmem:[%s2 + $0x248] sm:$0xf]
    %v216 = vld [vmem:[%s2 + $0x24c] sm:$0xf]
    %v217 = vld [vmem:[%s2 + $0x250] sm:$0xf]
    %v218 = vld [vmem:[%s2 + $0x254] sm:$0xf]
    %v219 = vld [vmem:[%s2 + $0x258] sm:$0xf]
    %v220 = vld [vmem:[%s2 + $0x25c] sm:$0xf]
    %v221 = vld [vmem:[%s2 + $0x260] sm:$0xf]
    %v222 = vld [vmem:[%s2 + $0x264] sm:$0xf]
    %v223 = vld [vmem:[%s2 + $0x268] sm:$0xf]
    %v224 = vld [vmem:[%s2 + $0x26c] sm:$0xf]
    %v225 = vld [vmem:[%s2 + $0x270] sm:$0xf]
    %v226 = vld [vmem:[%s2 + $0x274] sm:$0xf]
    %v227 = vld [vmem:[%s2 + $0x278] sm:$0xf]
    %v228 = vld [vmem:[%s2 + $0x27c] sm:$0xf]
    %v229 = vld [vmem:[%s2 + $0x280] sm:$0xf]
    %v230 = vld [vmem:[%s2 + $0x284] sm:$0xf]
    %v231 = vld [vmem:[%s2 + $0x288] sm:$0xf]
    %v232 = vld [vmem:[%s2 + $0x28c] sm:$0xf]
    %v233 = vld [vmem:[%s2 + $0x290] sm:$0xf]
    %v234 = vld [vmem:[%s2 + $0x294] sm:$0xf]
    %v235 = vld [vmem:[%s2 + $0x298] sm:$0xf]
    %v236 = vld [vmem:[%s2 + $0x29c] sm:$0xf]
    %v237 = vld [vmem:[%s2 + $0x2a0] sm:$0xf]
    %v238 = vld [vmem:[%s2 + $0x2a4] sm:$0xf]
    %v239 = vld [vmem:[%s2 + $0x2a8] sm:$0xf]
    %v240 = vld [vmem:[%s2 + $0x2ac] sm:$0xf]
    %v241 = vld [vmem:[%s2 + $0x2b0] sm:$0xf]
    %v242 = vld [vmem:[%s2 + $0x2b4] sm:$0xf]
    %v243 = vld [vmem:[%s2 + $0x2b8] sm:$0xf]
    %v244 = vld [vmem:[%s2 + $0x2bc] sm:$0xf]
    %v245 = vld [vmem:[%s2 + $0x2c0] sm:$0xf]
    %v246 = vld [vmem:[%s2 + $0x2c4] sm:$0xf]
    %v247 = vld [vmem:[%s2 + $0x2c8] sm:$0xf]
    %v248 = vld [vmem:[%s2 + $0x2cc] sm:$0xf]
    %v249 = vld [vmem:[%s2 + $0x2d0] sm:$0xf]
    %v250 = vld [vmem:[%s2 + $0x2d4] sm:$0xf]
    %v251 = vld [vmem:[%s2 + $0x2d8] sm:$0xf]
    %v252 = vld [vmem:[%s2 + $0x2dc] sm:$0xf]
    %v253 = vld [vmem:[%s2 + $0x2e0] sm:$0xf]
    %v254 = vld [vmem:[%s2 + $0x2e4] sm:$0xf]
    %v255 = vld [vmem:[%s2 + $0x2e8] sm:$0xf]
    %v256 = vld [vmem:[%s2 + $0x2ec] sm:$0xf]
    %v257 = vld [vmem:[%s2 + $0x2f0] sm:$0xf]
    %v258 = vld [vmem:[%s2 + $0x2f4] sm:$0xf]
    %v259 = vld [vmem:[%s2 + $0x2f8] sm:$0xf]
    %v260 = vld [vmem:[%s2 + $0x2fc] sm:$0xf]
    %v261 = vld [vmem:[%s2 + $0x300] sm:$0xf]
    %v262 = vld [vmem:[%s2 + $0x304] sm:$0xf]
    %v263 = vld [vmem:[%s2 + $0x308] sm:$0xf]
    %v264 = vld [vmem:[%s2 + $0x30c] sm:$0xf]
    %v265 = vld [vmem:[%s2 + $0x310] sm:$0xf]
    %v266 = vld [vmem:[%s2 + $0x314] sm:$0xf]
    %v267 = vld [vmem:[%s2 + $0x318] sm:$0xf]
    %v268 = vld [vmem:[%s2 + $0x31c] sm:$0xf]
    %v269 = vld [vmem:[%s2 + $0x320] sm:$0xf]
    %v270 = vld [vmem:[%s2 + $0x324] sm:$0xf]
    %v271 = vld [vmem:[%s2 + $0x328] sm:$0xf]
    %v272 = vld [vmem:[%s2 + $0x32c] sm:$0xf]
    %v273 = vld [vmem:[%s2 + $0x330] sm:$0xf]
    %v274 = vld [vmem:[%s2 + $0x334] sm:$0xf]
    %v275 = vld [vmem:[%s2 + $0x338] sm:$0xf]
    %v276 = vld [vmem:[%s2 + $0x33c] sm:$0xf]
    %v277 = vld [vmem:[%s2 + $0x340] sm:$0xf]
    %v278 = vld [vmem:[%s2 + $0x344] sm:$0xf]
    %v279 = vld [vmem:[%s2 + $0x348] sm:$0xf]
    %v280 = vld [vmem:[%s2 + $0x34c] sm:$0xf]
    %v281 = vld [vmem:[%s2 + $0x350] sm:$0xf]
    %v282 = vld [vmem:[%s2 + $0x354] sm:$0xf]
    %v283 = vld [vmem:[%s2 + $0x358] sm:$0xf]
    %v284 = vld [vmem:[%s2 + $0x35c] sm:$0xf]
    %v285 = vld [vmem:[%s2 + $0x360] sm:$0xf]
    %v286 = vld [vmem:[%s2 + $0x364] sm:$0xf]
    %v287 = vld [vmem:[%s2 + $0x368] sm:$0xf]
    %v288 = vld [vmem:[%s2 + $0x36c] sm:$0xf]
    %v289 = vld [vmem:[%s2 + $0x370] sm:$0xf]
    %v290 = vld [vmem:[%s2 + $0x374] sm:$0xf]
    %v291 = vld [vmem:[%s2 + $0x378] sm:$0xf]
    %v292 = vld [vmem:[%s2 + $0x37c] sm:$0xf]
    %v293 = vld [vmem:[%s2 + $0x380] sm:$0xf]
    %v294 = vld [vmem:[%s2 + $0x384] sm:$0xf]
    %v295 = vld [vmem:[%s2 + $0x388] sm:$0xf]
    %v296 = vld [vmem:[%s2 + $0x38c] sm:$0xf]
    %v297 = vld [vmem:[%s2 + $0x390] sm:$0xf]
    %v298 = vld [vmem:[%s2 + $0x394] sm:$0xf]
    %v299 = vld [vmem:[%s2 + $0x398] sm:$0xf]
    %v300 = vld [vmem:[%s2 + $0x39c] sm:$0xf]
    %v301 = vld [vmem:[%s2 + $0x3a0] sm:$0xf]
    %v302 = vld [vmem:[%s2 + $0x3a4] sm:$0xf]
    %v303 = vld [vmem:[%s2 + $0x3a8] sm:$0xf]
    %v304 = vld [vmem:[%s2 + $0x3ac] sm:$0xf]
    %v305 = vld [vmem:[%s2 + $0x3b0] sm:$0xf]
    %v306 = vld [vmem:[%s2 + $0x3b4] sm:$0xf]
    %v307 = vld [vmem:[%s2 + $0x3b8] sm:$0xf]
    %v308 = vld [vmem:[%s2 + $0x3bc] sm:$0xf]
    %v309 = vld [vmem:[%s2 + $0x3c0] sm:$0xf]
    %v310 = vld [vmem:[%s2 + $0x3c4] sm:$0xf]
    %v311 = vld [vmem:[%s2 + $0x3c8] sm:$0xf]
    %v312 = vld [vmem:[%s2 + $0x3cc] sm:$0xf]
    %v313 = vld [vmem:[%s2 + $0x3d0] sm:$0xf]
    %v314 = vld [vmem:[%s2 + $0x3d4] sm:$0xf]
    %v315 = vld [vmem:[%s2 + $0x3d8] sm:$0xf]
    %v316 = vld [vmem:[%s2 + $0x3dc] sm:$0xf]
    %v317 = vld [vmem:[%s2 + $0x3e0] sm:$0xf]
    %v318 = vld [vmem:[%s2 + $0x3e4] sm:$0xf]
    %v319 = vld [vmem:[%s2 + $0x3e8] sm:$0xf]
    %v320 = vld [vmem:[%s2 + $0x3ec] sm:$0xf]
    %v321 = vld [vmem:[%s2 + $0x3f0] sm:$0xf]
    %v322 = vld [vmem:[%s2 + $0x3f4] sm:$0xf]
    %v323 = vld [vmem:[%s2 + $0x3f8] sm:$0xf]
    %v324 = vld [vmem:[%s2 + $0x3fc] sm:$0xf]
    %v325 = vld [vmem:[%s2 + $0x400] sm:$0xf]
    %v326 = vld [vmem:[%s2 + $0x404] sm:$0xf]
    %v327 = vld [vmem:[%s2 + $0x408] sm:$0xf]
    %v328 = vld [vmem:[%s2 + $0x40c] sm:$0xf]
    %v329 = vld [vmem:[%s2 + $0x410] sm:$0xf]
    %v330 = vld [vmem:[%s2 + $0x414] sm:$0xf]
    %v331 = vld [vmem:[%s2 + $0x418] sm:$0xf]
    %v332 = vld [vmem:[%s2 + $0x41c] sm:$0xf]
    %v333 = vld [vmem:[%s2 + $0x420] sm:$0xf]
    %v334 = vld [vmem:[%s2 + $0x424] sm:$0xf]
    %v335 = vld [vmem:[%s2 + $0x428] sm:$0xf]
    %v336 = vld [vmem:[%s2 + $0x42c] sm:$0xf]
    %v337 = vld [vmem:[%s2 + $0x430] sm:$0xf]
    %v338 = vld [vmem:[%s2 + $0x434] sm:$0xf]
    %v339 = vld [vmem:[%s2 + $0x438] sm:$0xf]
    %v340 = vld [vmem:[%s2 + $0x43c] sm:$0xf]
    %v341 = vld [vmem:[%s2 + $0x440] sm:$0xf]
    %v342 = vld [vmem:[%s2 + $0x444] sm:$0xf]
    %v343 = vld [vmem:[%s2 + $0x448] sm:$0xf]
    %v344 = vld [vmem:[%s2 + $0x44c] sm:$0xf]
    %v345 = vld [vmem:[%s2 + $0x450] sm:$0xf]
    %v346 = vld [vmem:[%s2 + $0x454] sm:$0xf]
    %v347 = vld [vmem:[%s2 + $0x458] sm:$0xf]
    %v348 = vld [vmem:[%s2 + $0x45c] sm:$0xf]
    %v349 = vld [vmem:[%s2 + $0x460] sm:$0xf]
    %v350 = vld [vmem:[%s2 + $0x464] sm:$0xf]
    %v351 = vld [vmem:[%s2 + $0x468] sm:$0xf]
    %v352 = vld [vmem:[%s2 + $0x46c] sm:$0xf]
    %v353 = vld [vmem:[%s2 + $0x470] sm:$0xf]
    %v354 = vld [vmem:[%s2 + $0x474] sm:$0xf]
    %v355 = vld [vmem:[%s2 + $0x478] sm:$0xf]
    %v356 = vld [vmem:[%s2 + $0x47c] sm:$0xf]
    %v357 = vld [vmem:[%s2 + $0x480] sm:$0xf]
    %v358 = vld [vmem:[%s2 + $0x484] sm:$0xf]
    %v359 = vld [vmem:[%s2 + $0x488] sm:$0xf]
    %v360 = vld [vmem:[%s2 + $0x48c] sm:$0xf]
    %v361 = vld [vmem:[%s2 + $0x490] sm:$0xf]
    %v362 = vld [vmem:[%s2 + $0x494] sm:$0xf]
    %v363 = vld [vmem:[%s2 + $0x498] sm:$0xf]
    %v364 = vld [vmem:[%s2 + $0x49c] sm:$0xf]
    %v365 = vld [vmem:[%s2 + $0x4a0] sm:$0xf]
    %v366 = vld [vmem:[%s2 + $0x4a4] sm:$0xf]
    %v367 = vld [vmem:[%s2 + $0x4a8] sm:$0xf]
    %v368 = vld [vmem:[%s2 + $0x4ac] sm:$0xf]
    %v369 = vld [vmem:[%s2 + $0x4b0] sm:$0xf]
    %v370 = vld [vmem:[%s2 + $0x4b4] sm:$0xf]
    %v371 = vld [vmem:[%s2 + $0x4b8] sm:$0xf]
    %v372 = vld [vmem:[%s2 + $0x4bc] sm:$0xf]
    %v373 = vld [vmem:[%s2 + $0x4c0] sm:$0xf]
    %v374 = vld [vmem:[%s2 + $0x4c4] sm:$0xf]
    %v375 = vld [vmem:[%s2 + $0x4c8] sm:$0xf]
    %v376 = vld [vmem:[%s2 + $0x4cc] sm:$0xf]
    %v377 = vld [vmem:[%s2 + $0x4d0] sm:$0xf]
    %v378 = vld [vmem:[%s2 + $0x4d4] sm:$0xf]
    %v379 = vld [vmem:[%s2 + $0x4d8] sm:$0xf]
    %v380 = vld [vmem:[%s2 + $0x4dc] sm:$0xf]
    %v381 = vld [vmem:[%s2 + $0x4e0] sm:$0xf]
    %v382 = vld [vmem:[%s2 + $0x4e4] sm:$0xf]
    %v383 = vld [vmem:[%s2 + $0x4e8] sm:$0xf]
    %v384 = vld [vmem:[%s2 + $0x4ec] sm:$0xf]
    %v385 = vld [vmem:[%s2 + $0x4f0] sm:$0xf]
    %v386 = vld [vmem:[%s2 + $0x4f4] sm:$0xf]
    %v387 = vld [vmem:[%s2 + $0x4f8] sm:$0xf]
    %v388 = vld [vmem:[%s2 + $0x4fc] sm:$0xf]
    %v389 = vld [vmem:[%s2 + $0x500] sm:$0xf]
    %v390 = vld [vmem:[%s2 + $0x504] sm:$0xf]
    %v391 = vld [vmem:[%s2 + $0x508] sm:$0xf]
    %v392 = vld [vmem:[%s2 + $0x50c] sm:$0xf]
    %v393 = vld [vmem:[%s2 + $0x510] sm:$0xf]
    %v394 = vld [vmem:[%s2 + $0x514] sm:$0xf]
    %v395 = vld [vmem:[%s2 + $0x518] sm:$0xf]
    %v396 = vld [vmem:[%s2 + $0x51c] sm:$0xf]
    %v397 = vld [vmem:[%s2 + $0x520] sm:$0xf]
    %v398 = vld [vmem:[%s2 + $0x524] sm:$0xf]
    %v399 = vld [vmem:[%s2 + $0x528] sm:$0xf]
    %v400 = vld [vmem:[%s2 + $0x52c] sm:$0xf]
    %v401 = vld [vmem:[%s2 + $0x530] sm:$0xf]
    %v402 = vld [vmem:[%s2 + $0x534] sm:$0xf]
    %v403 = vld [vmem:[%s2 + $0x538] sm:$0xf]
    %v404 = vld [vmem:[%s2 + $0x53c] sm:$0xf]
    %v405 = vld [vmem:[%s2 + $0x540] sm:$0xf]
    %v406 = vld [vmem:[%s2 + $0x544] sm:$0xf]
    %v407 = vld [vmem:[%s2 + $0x548] sm:$0xf]
    %v408 = vld [vmem:[%s2 + $0x54c] sm:$0xf]
    %v409 = vld [vmem:[%s2 + $0x550] sm:$0xf]
    %v410 = vld [vmem:[%s2 + $0x554] sm:$0xf]
    %v411 = vld [vmem:[%s2 + $0x558] sm:$0xf]
    %v412 = vld [vmem:[%s2 + $0x55c] sm:$0xf]
    %v413 = vld [vmem:[%s2 + $0x560] sm:$0xf]
    %v414 = vld [vmem:[%s2 + $0x564] sm:$0xf]
    %v415 = vld [vmem:[%s2 + $0x568] sm:$0xf]
    %v416 = vld [vmem:[%s2 + $0x56c] sm:$0xf]
    %v417 = vld [vmem:[%s2 + $0x570] sm:$0xf]
    %v418 = vld [vmem:[%s2 + $0x574] sm:$0xf]
    %v419 = vld [vmem:[%s2 + $0x578] sm:$0xf]
    %v420 = vld [vmem:[%s2 + $0x57c] sm:$0xf]
    %v421 = vld [vmem:[%s2 + $0x580] sm:$0xf]
    %v422 = vld [vmem:[%s2 + $0x584] sm:$0xf]
    %v423 = vld [vmem:[%s2 + $0x588] sm:$0xf]
    %v424 = vld [vmem:[%s2 + $0x58c] sm:$0xf]
    %v425 = vld [vmem:[%s2 + $0x590] sm:$0xf]
    %v426 = vld [vmem:[%s2 + $0x594] sm:$0xf]
    %v427 = vld [vmem:[%s2 + $0x598] sm:$0xf]
    %v428 = vld [vmem:[%s2 + $0x59c] sm:$0xf]
    %v429 = vld [vmem:[%s2 + $0x5a0] sm:$0xf]
    %v430 = vld [vmem:[%s2 + $0x5a4] sm:$0xf]
    %v431 = vld [vmem:[%s2 + $0x5a8] sm:$0xf]
    %v432 = vld [vmem:[%s2 + $0x5ac] sm:$0xf]
    %v433 = vld [vmem:[%s2 + $0x5b0] sm:$0xf]
    %v434 = vld [vmem:[%s2 + $0x5b4] sm:$0xf]
    %v435 = vld [vmem:[%s2 + $0x5b8] sm:$0xf]
    %v436 = vld [vmem:[%s2 + $0x5bc] sm:$0xf]
    %v437 = vld [vmem:[%s2 + $0x5c0] sm:$0xf]
    %v438 = vld [vmem:[%s2 + $0x5c4] sm:$0xf]
    %v439 = vld [vmem:[%s2 + $0x5c8] sm:$0xf]
    %v440 = vld [vmem:[%s2 + $0x5cc] sm:$0xf]
    %v441 = vld [vmem:[%s2 + $0x5d0] sm:$0xf]
    %v442 = vld [vmem:[%s2 + $0x5d4] sm:$0xf]
    %v443 = vld [vmem:[%s2 + $0x5d8] sm:$0xf]
    %v444 = vld [vmem:[%s2 + $0x5dc] sm:$0xf]
    %v445 = vld [vmem:[%s2 + $0x5e0] sm:$0xf]
    %v446 = vld [vmem:[%s2 + $0x5e4] sm:$0xf]
    %v447 = vld [vmem:[%s2 + $0x5e8] sm:$0xf]
    %v448 = vld [vmem:[%s2 + $0x5ec] sm:$0xf]
    %v449 = vld [vmem:[%s2 + $0x5f0] sm:$0xf]
    %v450 = vld [vmem:[%s2 + $0x5f4] sm:$0xf]
    %v451 = vld [vmem:[%s2 + $0x5f8] sm:$0xf]
    %v452 = vld [vmem:[%s2 + $0x5fc] sm:$0xf]
    %v453 = vld [vmem:[%s2 + $0x600] sm:$0xf]
    %v454 = vld [vmem:[%s2 + $0x604] sm:$0xf]
    %v455 = vld [vmem:[%s2 + $0x608] sm:$0xf]
    %v456 = vld [vmem:[%s2 + $0x60c] sm:$0xf]
    %v457 = vld [vmem:[%s2 + $0x610] sm:$0xf]
    %v458 = vld [vmem:[%s2 + $0x614] sm:$0xf]
    %v459 = vld [vmem:[%s2 + $0x618] sm:$0xf]
    %v460 = vld [vmem:[%s2 + $0x61c] sm:$0xf]
    %v461 = vld [vmem:[%s2 + $0x620] sm:$0xf]
    %v462 = vld [vmem:[%s2 + $0x624] sm:$0xf]
    %v463 = vld [vmem:[%s2 + $0x628] sm:$0xf]
    %v464 = vld [vmem:[%s2 + $0x62c] sm:$0xf]
    %v465 = vld [vmem:[%s2 + $0x630] sm:$0xf]
    %v466 = vld [vmem:[%s2 + $0x634] sm:$0xf]
    %v467 = vld [vmem:[%s2 + $0x638] sm:$0xf]
    %v468 = vld [vmem:[%s2 + $0x63c] sm:$0xf]
    %v469 = vld [vmem:[%s2 + $0x640] sm:$0xf]
    %v470 = vld [vmem:[%s2 + $0x644] sm:$0xf]
    %v471 = vld [vmem:[%s2 + $0x648] sm:$0xf]
    %v472 = vld [vmem:[%s2 + $0x64c] sm:$0xf]
    %v473 = vld [vmem:[%s2 + $0x650] sm:$0xf]
    %v474 = vld [vmem:[%s2 + $0x654] sm:$0xf]
    %v475 = vld [vmem:[%s2 + $0x658] sm:$0xf]
    %v476 = vld [vmem:[%s2 + $0x65c] sm:$0xf]
    %v477 = vld [vmem:[%s2 + $0x660] sm:$0xf]
    %v478 = vld [vmem:[%s2 + $0x664] sm:$0xf]
    %v479 = vld [vmem:[%s2 + $0x668] sm:$0xf]
    %v480 = vld [vmem:[%s2 + $0x66c] sm:$0xf]
    %v481 = vld [vmem:[%s2 + $0x670] sm:$0xf]
    %v482 = vld [vmem:[%s2 + $0x674] sm:$0xf]
    %v483 = vld [vmem:[%s2 + $0x678] sm:$0xf]
    %v484 = vld [vmem:[%s2 + $0x67c] sm:$0xf]
    %v485 = vld [vmem:[%s2 + $0x680] sm:$0xf]
    %v486 = vld [vmem:[%s2 + $0x684] sm:$0xf]
    %v487 = vld [vmem:[%s2 + $0x688] sm:$0xf]
    %v488 = vld [vmem:[%s2 + $0x68c] sm:$0xf]
    %v489 = vld [vmem:[%s2 + $0x690] sm:$0xf]
    %v490 = vld [vmem:[%s2 + $0x694] sm:$0xf]
    %v491 = vld [vmem:[%s2 + $0x698] sm:$0xf]
    %v492 = vld [vmem:[%s2 + $0x69c] sm:$0xf]
    %v493 = vld [vmem:[%s2 + $0x6a0] sm:$0xf]
    %v494 = vld [vmem:[%s2 + $0x6a4] sm:$0xf]
    %v495 = vld [vmem:[%s2 + $0x6a8] sm:$0xf]
    %v496 = vld [vmem:[%s2 + $0x6ac] sm:$0xf]
    %v497 = vld [vmem:[%s2 + $0x6b0] sm:$0xf]
    %v498 = vld [vmem:[%s2 + $0x6b4] sm:$0xf]
    %v499 = vld [vmem:[%s2 + $0x6b8] sm:$0xf]
    %v500 = vld [vmem:[%s2 + $0x6bc] sm:$0xf]
    %v501 = vld [vmem:[%s2 + $0x6c0] sm:$0xf]
    %v502 = vld [vmem:[%s2 + $0x6c4] sm:$0xf]
    %v503 = vld [vmem:[%s2 + $0x6c8] sm:$0xf]
    %v504 = vld [vmem:[%s2 + $0x6cc] sm:$0xf]
    %v505 = vld [vmem:[%s2 + $0x6d0] sm:$0xf]
    %v506 = vld [vmem:[%s2 + $0x6d4] sm:$0xf]
    %v507 = vld [vmem:[%s2 + $0x6d8] sm:$0xf]
    %v508 = vld [vmem:[%s2 + $0x6dc] sm:$0xf]
    %v509 = vld [vmem:[%s2 + $0x6e0] sm:$0xf]
    %v510 = vld [vmem:[%s2 + $0x6e4] sm:$0xf]
    %v511 = vld [vmem:[%s2 + $0x6e8] sm:$0xf]
    %v512 = vld [vmem:[%s2 + $0x6ec] sm:$0xf]
    %v513 = vld [vmem:[%s2 + $0x6f0] sm:$0xf]
    %v514 = vld [vmem:[%s2 + $0x6f4] sm:$0xf]
    %v515 = vld [vmem:[%s2 + $0x6f8] sm:$0xf]
    %v516 = vld [vmem:[%s2 + $0x6fc] sm:$0xf]
    %v517 = vld [vmem:[%s2 + $0x700] sm:$0xf]
    %v518 = vld [vmem:[%s2 + $0x704] sm:$0xf]
    %v519 = vld [vmem:[%s2 + $0x708] sm:$0x7]
    %v520 = vld [vmem:[%s3] sm:$0x1]
    %v522 = vlaneseq
    %v523 = vshrl.u32 %v522, 7
    %v524 = vsub.s32 0, %v523
    %v525 = vrot.slane %v520, %v524
    %v557 = vunpack.c.l.b16 %v39
    %v558 = vunpack.c.h.b16 %v39
    %v559 = vunpack.c.l.b16 %v40
    %v560 = vunpack.c.h.b16 %v40
    %v561 = vunpack.c.l.b16 %v41
    %v562 = vunpack.c.h.b16 %v41
    %v563 = vunpack.c.l.b16 %v42
    %v564 = vunpack.c.h.b16 %v42
    %v565 = vunpack.c.l.b16 %v43
    %v566 = vunpack.c.h.b16 %v43
    %v567 = vunpack.c.l.b16 %v44
    %v568 = vunpack.c.h.b16 %v44
    %v569 = vunpack.c.l.b16 %v45
    %v570 = vunpack.c.h.b16 %v45
    %v571 = vunpack.c.l.b16 %v46
    %v572 = vunpack.c.h.b16 %v46
    %v573 = vunpack.c.l.b16 %v47
    %v574 = vunpack.c.h.b16 %v47
    %v575 = vunpack.c.l.b16 %v48
    %v576 = vunpack.c.h.b16 %v48
    %v577 = vunpack.c.l.b16 %v49
    %v578 = vunpack.c.h.b16 %v49
    %v579 = vunpack.c.l.b16 %v50
    %v580 = vunpack.c.h.b16 %v50
    %v581 = vunpack.c.l.b16 %v51
    %v582 = vunpack.c.h.b16 %v51
    %v583 = vunpack.c.l.b16 %v52
    %v584 = vunpack.c.h.b16 %v52
    %v585 = vunpack.c.l.b16 %v53
    %v586 = vunpack.c.l.b16 %v54
    %v587 = vunpack.c.h.b16 %v54
    %v588 = vunpack.c.l.b16 %v55
    %v589 = vunpack.c.h.b16 %v55
    %v590 = vunpack.c.l.b16 %v56
    %v591 = vunpack.c.h.b16 %v56
    %v592 = vunpack.c.l.b16 %v57
    %v593 = vunpack.c.h.b16 %v57
    %v594 = vunpack.c.l.b16 %v58
    %v595 = vunpack.c.h.b16 %v58
    %v596 = vunpack.c.l.b16 %v59
    %v597 = vunpack.c.h.b16 %v59
    %v598 = vunpack.c.l.b16 %v60
    %v599 = vunpack.c.h.b16 %v60
    %v600 = vunpack.c.l.b16 %v61
    %v601 = vunpack.c.h.b16 %v61
    %v602 = vunpack.c.l.b16 %v62
    %v603 = vunpack.c.h.b16 %v62
    %v604 = vunpack.c.l.b16 %v63
    %v605 = vunpack.c.h.b16 %v63
    %v606 = vunpack.c.l.b16 %v64
    %v607 = vunpack.c.h.b16 %v64
    %v608 = vunpack.c.l.b16 %v65
    %v609 = vunpack.c.h.b16 %v65
    %v610 = vunpack.c.l.b16 %v66
    %v611 = vunpack.c.h.b16 %v66
    %v612 = vunpack.c.l.b16 %v67
    %v613 = vunpack.c.h.b16 %v67
    %v614 = vunpack.c.l.b16 %v68
    %v615 = vpack.c.b16 %v586, %v557
    %v616 = vpack.c.b16 %v587, %v558
    %v617 = vpack.c.b16 %v588, %v559
    %v618 = vpack.c.b16 %v589, %v560
    %v619 = vpack.c.b16 %v590, %v561
    %v620 = vpack.c.b16 %v591, %v562
    %v621 = vpack.c.b16 %v592, %v563
    %v622 = vpack.c.b16 %v593, %v564
    %v623 = vpack.c.b16 %v594, %v565
    %v624 = vpack.c.b16 %v595, %v566
    %v625 = vpack.c.b16 %v596, %v567
    %v626 = vpack.c.b16 %v597, %v568
    %v627 = vpack.c.b16 %v598, %v569
    %v628 = vpack.c.b16 %v599, %v570
    %v629 = vpack.c.b16 %v600, %v571
    %v630 = vpack.c.b16 %v601, %v572
    %v631 = vpack.c.b16 %v602, %v573
    %v632 = vpack.c.b16 %v603, %v574
    %v633 = vpack.c.b16 %v604, %v575
    %v634 = vpack.c.b16 %v605, %v576
    %v635 = vpack.c.b16 %v606, %v577
    %v636 = vpack.c.b16 %v607, %v578
    %v637 = vpack.c.b16 %v608, %v579
    %v638 = vpack.c.b16 %v609, %v580
    %v639 = vpack.c.b16 %v610, %v581
    %v640 = vpack.c.b16 %v611, %v582
    %v641 = vpack.c.b16 %v612, %v583
    %v642 = vpack.c.b16 %v613, %v584
    %v643 = vpack.c.b16 %v614, %v585
    %v1123 = vunpack.c.l.b16 %v69
    %v1124 = vunpack.c.l.b16 %v70
    %v1125 = vunpack.c.l.b16 %v71
    %v1126 = vunpack.c.l.b16 %v72
    %v1127 = vunpack.c.l.b16 %v73
    %v1128 = vunpack.c.l.b16 %v74
    %v1129 = vunpack.c.l.b16 %v75
    %v1130 = vunpack.c.l.b16 %v76
    %v1131 = vunpack.c.l.b16 %v77
    %v1132 = vunpack.c.l.b16 %v78
    %v1133 = vunpack.c.l.b16 %v79
    %v1134 = vunpack.c.l.b16 %v80
    %v1135 = vunpack.c.l.b16 %v81
    %v1136 = vunpack.c.l.b16 %v82
    %v1137 = vunpack.c.l.b16 %v83
    %v1138 = vunpack.c.l.b16 %v84
    %v1139 = vunpack.c.l.b16 %v85
    %v1140 = vunpack.c.l.b16 %v86
    %v1141 = vunpack.c.l.b16 %v87
    %v1142 = vunpack.c.l.b16 %v88
    %v1143 = vunpack.c.l.b16 %v89
    %v1144 = vunpack.c.l.b16 %v90
    %v1145 = vunpack.c.l.b16 %v91
    %v1146 = vunpack.c.l.b16 %v92
    %v1147 = vunpack.c.l.b16 %v93
    %v1148 = vunpack.c.l.b16 %v94
    %v1149 = vunpack.c.l.b16 %v95
    %v1150 = vunpack.c.l.b16 %v96
    %v1151 = vunpack.c.l.b16 %v97
    %v1152 = vunpack.c.l.b16 %v98
    %v1153 = vunpack.c.l.b16 %v99
    %v1154 = vunpack.c.l.b16 %v100
    %v1155 = vunpack.c.l.b16 %v101
    %v1156 = vunpack.c.l.b16 %v102
    %v1157 = vunpack.c.l.b16 %v103
    %v1158 = vunpack.c.l.b16 %v104
    %v1159 = vunpack.c.l.b16 %v105
    %v1160 = vunpack.c.l.b16 %v106
    %v1161 = vunpack.c.l.b16 %v107
    %v1162 = vunpack.c.l.b16 %v108
    %v1163 = vunpack.c.l.b16 %v109
    %v1164 = vunpack.c.l.b16 %v110
    %v1165 = vunpack.c.l.b16 %v111
    %v1166 = vunpack.c.l.b16 %v112
    %v1167 = vunpack.c.l.b16 %v113
    %v1168 = vunpack.c.l.b16 %v114
    %v1169 = vunpack.c.l.b16 %v115
    %v1170 = vunpack.c.l.b16 %v116
    %v1171 = vunpack.c.l.b16 %v117
    %v1172 = vunpack.c.l.b16 %v118
    %v1173 = vunpack.c.l.b16 %v119
    %v1174 = vunpack.c.l.b16 %v120
    %v1175 = vunpack.c.l.b16 %v121
    %v1176 = vunpack.c.l.b16 %v122
    %v1177 = vunpack.c.l.b16 %v123
    %v1178 = vunpack.c.l.b16 %v124
    %v1179 = vunpack.c.l.b16 %v125
    %v1180 = vunpack.c.l.b16 %v126
    %v1181 = vunpack.c.l.b16 %v127
    %v1182 = vunpack.c.l.b16 %v128
    %v1183 = vunpack.c.l.b16 %v129
    %v1184 = vunpack.c.l.b16 %v130
    %v1185 = vunpack.c.l.b16 %v131
    %v1186 = vunpack.c.l.b16 %v132
    %v1187 = vunpack.c.l.b16 %v133
    %v1188 = vunpack.c.l.b16 %v134
    %v1189 = vunpack.c.l.b16 %v135
    %v1190 = vunpack.c.l.b16 %v136
    %v1191 = vunpack.c.l.b16 %v137
    %v1192 = vunpack.c.l.b16 %v138
    %v1193 = vunpack.c.l.b16 %v139
    %v1194 = vunpack.c.l.b16 %v140
    %v1195 = vunpack.c.l.b16 %v141
    %v1196 = vunpack.c.l.b16 %v142
    %v1197 = vunpack.c.l.b16 %v143
    %v1198 = vunpack.c.l.b16 %v144
    %v1199 = vunpack.c.l.b16 %v145
    %v1200 = vunpack.c.l.b16 %v146
    %v1201 = vunpack.c.l.b16 %v147
    %v1202 = vunpack.c.l.b16 %v148
    %v1203 = vunpack.c.l.b16 %v149
    %v1204 = vunpack.c.l.b16 %v150
    %v1205 = vunpack.c.l.b16 %v151
    %v1206 = vunpack.c.l.b16 %v152
    %v1207 = vunpack.c.l.b16 %v153
    %v1208 = vunpack.c.l.b16 %v154
    %v1209 = vunpack.c.l.b16 %v155
    %v1210 = vunpack.c.l.b16 %v156
    %v1211 = vunpack.c.l.b16 %v157
    %v1212 = vunpack.c.l.b16 %v158
    %v1213 = vunpack.c.l.b16 %v159
    %v1214 = vunpack.c.l.b16 %v160
    %v1215 = vunpack.c.l.b16 %v161
    %v1216 = vunpack.c.l.b16 %v162
    %v1217 = vunpack.c.l.b16 %v163
    %v1218 = vunpack.c.l.b16 %v164
    %v1219 = vunpack.c.l.b16 %v165
    %v1220 = vunpack.c.l.b16 %v166
    %v1221 = vunpack.c.l.b16 %v167
    %v1222 = vunpack.c.l.b16 %v168
    %v1223 = vunpack.c.l.b16 %v169
    %v1224 = vunpack.c.l.b16 %v170
    %v1225 = vunpack.c.l.b16 %v171
    %v1226 = vunpack.c.l.b16 %v172
    %v1227 = vunpack.c.l.b16 %v173
    %v1228 = vunpack.c.l.b16 %v174
    %v1229 = vunpack.c.l.b16 %v175
    %v1230 = vunpack.c.l.b16 %v176
    %v1231 = vunpack.c.l.b16 %v177
    %v1232 = vunpack.c.l.b16 %v178
    %v1233 = vunpack.c.l.b16 %v179
    %v1234 = vunpack.c.l.b16 %v180
    %v1235 = vunpack.c.l.b16 %v181
    %v1236 = vunpack.c.l.b16 %v182
    %v1237 = vunpack.c.l.b16 %v183
    %v1238 = vunpack.c.l.b16 %v184
    %v1239 = vunpack.c.l.b16 %v185
    %v1240 = vunpack.c.l.b16 %v186
    %v1241 = vunpack.c.l.b16 %v187
    %v1242 = vunpack.c.l.b16 %v188
    %v1243 = vunpack.c.l.b16 %v189
    %v1244 = vunpack.c.l.b16 %v190
    %v1245 = vunpack.c.l.b16 %v191
    %v1246 = vunpack.c.l.b16 %v192
    %v1247 = vunpack.c.l.b16 %v193
    %v1248 = vunpack.c.l.b16 %v194
    %v1249 = vunpack.c.l.b16 %v195
    %v1250 = vunpack.c.l.b16 %v196
    %v1251 = vunpack.c.l.b16 %v197
    %v1252 = vunpack.c.l.b16 %v198
    %v1253 = vunpack.c.l.b16 %v199
    %v1254 = vunpack.c.l.b16 %v200
    %v1255 = vunpack.c.l.b16 %v201
    %v1256 = vunpack.c.l.b16 %v202
    %v1257 = vunpack.c.l.b16 %v203
    %v1258 = vunpack.c.l.b16 %v204
    %v1259 = vunpack.c.l.b16 %v205
    %v1260 = vunpack.c.l.b16 %v206
    %v1261 = vunpack.c.l.b16 %v207
    %v1262 = vunpack.c.l.b16 %v208
    %v1263 = vunpack.c.l.b16 %v209
    %v1264 = vunpack.c.l.b16 %v210
    %v1265 = vunpack.c.l.b16 %v211
    %v1266 = vunpack.c.l.b16 %v212
    %v1267 = vunpack.c.l.b16 %v213
    %v1268 = vunpack.c.l.b16 %v214
    %v1269 = vunpack.c.l.b16 %v215
    %v1270 = vunpack.c.l.b16 %v216
    %v1271 = vunpack.c.l.b16 %v217
    %v1272 = vunpack.c.l.b16 %v218
    %v1273 = vunpack.c.l.b16 %v219
    %v1274 = vunpack.c.l.b16 %v220
    %v1275 = vunpack.c.l.b16 %v221
    %v1276 = vunpack.c.l.b16 %v222
    %v1277 = vunpack.c.l.b16 %v223
    %v1278 = vunpack.c.l.b16 %v224
    %v1279 = vunpack.c.l.b16 %v225
    %v1280 = vunpack.c.l.b16 %v226
    %v1281 = vunpack.c.l.b16 %v227
    %v1282 = vunpack.c.l.b16 %v228
    %v1283 = vunpack.c.l.b16 %v229
    %v1284 = vunpack.c.l.b16 %v230
    %v1285 = vunpack.c.l.b16 %v231
    %v1286 = vunpack.c.l.b16 %v232
    %v1287 = vunpack.c.l.b16 %v233
    %v1288 = vunpack.c.l.b16 %v234
    %v1289 = vunpack.c.l.b16 %v235
    %v1290 = vunpack.c.l.b16 %v236
    %v1291 = vunpack.c.l.b16 %v237
    %v1292 = vunpack.c.l.b16 %v238
    %v1293 = vunpack.c.l.b16 %v239
    %v1294 = vunpack.c.l.b16 %v240
    %v1295 = vunpack.c.l.b16 %v241
    %v1296 = vunpack.c.l.b16 %v242
    %v1297 = vunpack.c.l.b16 %v243
    %v1298 = vunpack.c.l.b16 %v244
    %v1299 = vunpack.c.l.b16 %v245
    %v1300 = vunpack.c.l.b16 %v246
    %v1301 = vunpack.c.l.b16 %v247
    %v1302 = vunpack.c.l.b16 %v248
    %v1303 = vunpack.c.l.b16 %v249
    %v1304 = vunpack.c.l.b16 %v250
    %v1305 = vunpack.c.l.b16 %v251
    %v1306 = vunpack.c.l.b16 %v252
    %v1307 = vunpack.c.l.b16 %v253
    %v1308 = vunpack.c.l.b16 %v254
    %v1309 = vunpack.c.l.b16 %v255
    %v1310 = vunpack.c.l.b16 %v256
    %v1311 = vunpack.c.l.b16 %v257
    %v1312 = vunpack.c.l.b16 %v258
    %v1313 = vunpack.c.l.b16 %v259
    %v1314 = vunpack.c.l.b16 %v260
    %v1315 = vunpack.c.l.b16 %v261
    %v1316 = vunpack.c.l.b16 %v262
    %v1317 = vunpack.c.l.b16 %v263
    %v1318 = vunpack.c.l.b16 %v264
    %v1319 = vunpack.c.l.b16 %v265
    %v1320 = vunpack.c.l.b16 %v266
    %v1321 = vunpack.c.l.b16 %v267
    %v1322 = vunpack.c.l.b16 %v268
    %v1323 = vunpack.c.l.b16 %v269
    %v1324 = vunpack.c.l.b16 %v270
    %v1325 = vunpack.c.l.b16 %v271
    %v1326 = vunpack.c.l.b16 %v272
    %v1327 = vunpack.c.l.b16 %v273
    %v1328 = vunpack.c.l.b16 %v274
    %v1329 = vunpack.c.l.b16 %v275
    %v1330 = vunpack.c.l.b16 %v276
    %v1331 = vunpack.c.l.b16 %v277
    %v1332 = vunpack.c.l.b16 %v278
    %v1333 = vunpack.c.l.b16 %v279
    %v1334 = vunpack.c.l.b16 %v280
    %v1335 = vunpack.c.l.b16 %v281
    %v1336 = vunpack.c.l.b16 %v282
    %v1337 = vunpack.c.l.b16 %v283
    %v1338 = vunpack.c.l.b16 %v284
    %v1339 = vunpack.c.l.b16 %v285
    %v1340 = vunpack.c.l.b16 %v286
    %v1341 = vunpack.c.l.b16 %v287
    %v1342 = vunpack.c.l.b16 %v288
    %v1343 = vunpack.c.l.b16 %v289
    %v1344 = vunpack.c.l.b16 %v290
    %v1345 = vunpack.c.l.b16 %v291
    %v1346 = vunpack.c.l.b16 %v292
    %v1347 = vunpack.c.l.b16 %v293
    %v1348 = vunpack.c.l.b16 %v294
    %v1349 = vunpack.c.l.b16 %v295
    %v1350 = vunpack.c.l.b16 %v296
    %v1351 = vunpack.c.l.b16 %v297
    %v1352 = vunpack.c.l.b16 %v298
    %v1353 = vunpack.c.l.b16 %v299
    %v1354 = vunpack.c.l.b16 %v300
    %v1355 = vunpack.c.l.b16 %v301
    %v1356 = vunpack.c.l.b16 %v302
    %v1357 = vunpack.c.l.b16 %v303
    %v1358 = vunpack.c.l.b16 %v304
    %v1359 = vunpack.c.l.b16 %v305
    %v1360 = vunpack.c.l.b16 %v306
    %v1361 = vunpack.c.l.b16 %v307
    %v1362 = vunpack.c.l.b16 %v308
    %v1363 = vunpack.c.l.b16 %v309
    %v1364 = vunpack.c.l.b16 %v310
    %v1365 = vunpack.c.l.b16 %v311
    %v1366 = vunpack.c.l.b16 %v312
    %v1367 = vunpack.c.l.b16 %v313
    %v1368 = vunpack.c.l.b16 %v314
    %v1369 = vunpack.c.l.b16 %v315
    %v1370 = vunpack.c.l.b16 %v316
    %v1371 = vunpack.c.l.b16 %v317
    %v1372 = vunpack.c.l.b16 %v318
    %v1373 = vunpack.c.l.b16 %v319
    %v1374 = vunpack.c.l.b16 %v320
    %v1375 = vunpack.c.l.b16 %v321
    %v1376 = vunpack.c.l.b16 %v322
    %v1377 = vunpack.c.l.b16 %v323
    %v1378 = vunpack.c.l.b16 %v324
    %v1379 = vunpack.c.l.b16 %v325
    %v1380 = vunpack.c.l.b16 %v326
    %v1381 = vunpack.c.l.b16 %v327
    %v1382 = vunpack.c.l.b16 %v328
    %v1383 = vunpack.c.l.b16 %v329
    %v1384 = vunpack.c.l.b16 %v330
    %v1385 = vunpack.c.l.b16 %v331
    %v1386 = vunpack.c.l.b16 %v332
    %v1387 = vunpack.c.l.b16 %v333
    %v1388 = vunpack.c.l.b16 %v334
    %v1389 = vunpack.c.l.b16 %v335
    %v1390 = vunpack.c.l.b16 %v336
    %v1391 = vunpack.c.l.b16 %v337
    %v1392 = vunpack.c.l.b16 %v338
    %v1393 = vunpack.c.l.b16 %v339
    %v1394 = vunpack.c.l.b16 %v340
    %v1395 = vunpack.c.l.b16 %v341
    %v1396 = vunpack.c.l.b16 %v342
    %v1397 = vunpack.c.l.b16 %v343
    %v1398 = vunpack.c.l.b16 %v344
    %v1399 = vunpack.c.l.b16 %v345
    %v1400 = vunpack.c.l.b16 %v346
    %v1401 = vunpack.c.l.b16 %v347
    %v1402 = vunpack.c.l.b16 %v348
    %v1403 = vunpack.c.l.b16 %v349
    %v1404 = vunpack.c.l.b16 %v350
    %v1405 = vunpack.c.l.b16 %v351
    %v1406 = vunpack.c.l.b16 %v352
    %v1407 = vunpack.c.l.b16 %v353
    %v1408 = vunpack.c.l.b16 %v354
    %v1409 = vunpack.c.l.b16 %v355
    %v1410 = vunpack.c.l.b16 %v356
    %v1411 = vunpack.c.l.b16 %v357
    %v1412 = vunpack.c.l.b16 %v358
    %v1413 = vunpack.c.l.b16 %v359
    %v1414 = vunpack.c.l.b16 %v360
    %v1415 = vunpack.c.l.b16 %v361
    %v1416 = vunpack.c.l.b16 %v362
    %v1417 = vunpack.c.l.b16 %v363
    %v1418 = vunpack.c.l.b16 %v364
    %v1419 = vunpack.c.l.b16 %v365
    %v1420 = vunpack.c.l.b16 %v366
    %v1421 = vunpack.c.l.b16 %v367
    %v1422 = vunpack.c.l.b16 %v368
    %v1423 = vunpack.c.l.b16 %v369
    %v1424 = vunpack.c.l.b16 %v370
    %v1425 = vunpack.c.l.b16 %v371
    %v1426 = vunpack.c.l.b16 %v372
    %v1427 = vunpack.c.l.b16 %v373
    %v1428 = vunpack.c.l.b16 %v374
    %v1429 = vunpack.c.l.b16 %v375
    %v1430 = vunpack.c.l.b16 %v376
    %v1431 = vunpack.c.l.b16 %v377
    %v1432 = vunpack.c.l.b16 %v378
    %v1433 = vunpack.c.l.b16 %v379
    %v1434 = vunpack.c.l.b16 %v380
    %v1435 = vunpack.c.l.b16 %v381
    %v1436 = vunpack.c.l.b16 %v382
    %v1437 = vunpack.c.l.b16 %v383
    %v1438 = vunpack.c.l.b16 %v384
    %v1439 = vunpack.c.l.b16 %v385
    %v1440 = vunpack.c.l.b16 %v386
    %v1441 = vunpack.c.l.b16 %v387
    %v1442 = vunpack.c.l.b16 %v388
    %v1443 = vunpack.c.l.b16 %v389
    %v1444 = vunpack.c.l.b16 %v390
    %v1445 = vunpack.c.l.b16 %v391
    %v1446 = vunpack.c.l.b16 %v392
    %v1447 = vunpack.c.l.b16 %v393
    %v1448 = vunpack.c.l.b16 %v394
    %v1449 = vunpack.c.l.b16 %v395
    %v1450 = vunpack.c.l.b16 %v396
    %v1451 = vunpack.c.l.b16 %v397
    %v1452 = vunpack.c.l.b16 %v398
    %v1453 = vunpack.c.l.b16 %v399
    %v1454 = vunpack.c.l.b16 %v400
    %v1455 = vunpack.c.l.b16 %v401
    %v1456 = vunpack.c.l.b16 %v402
    %v1457 = vunpack.c.l.b16 %v403
    %v1458 = vunpack.c.l.b16 %v404
    %v1459 = vunpack.c.l.b16 %v405
    %v1460 = vunpack.c.l.b16 %v406
    %v1461 = vunpack.c.l.b16 %v407
    %v1462 = vunpack.c.l.b16 %v408
    %v1463 = vunpack.c.l.b16 %v409
    %v1464 = vunpack.c.l.b16 %v410
    %v1465 = vunpack.c.l.b16 %v411
    %v1466 = vunpack.c.l.b16 %v412
    %v1467 = vunpack.c.l.b16 %v413
    %v1468 = vunpack.c.l.b16 %v414
    %v1469 = vunpack.c.l.b16 %v415
    %v1470 = vunpack.c.l.b16 %v416
    %v1471 = vunpack.c.l.b16 %v417
    %v1472 = vunpack.c.l.b16 %v418
    %v1473 = vunpack.c.l.b16 %v419
    %v1474 = vunpack.c.l.b16 %v420
    %v1475 = vunpack.c.l.b16 %v421
    %v1476 = vunpack.c.l.b16 %v422
    %v1477 = vunpack.c.l.b16 %v423
    %v1478 = vunpack.c.l.b16 %v424
    %v1479 = vunpack.c.l.b16 %v425
    %v1480 = vunpack.c.l.b16 %v426
    %v1481 = vunpack.c.l.b16 %v427
    %v1482 = vunpack.c.l.b16 %v428
    %v1483 = vunpack.c.l.b16 %v429
    %v1484 = vunpack.c.l.b16 %v430
    %v1485 = vunpack.c.l.b16 %v431
    %v1486 = vunpack.c.l.b16 %v432
    %v1487 = vunpack.c.l.b16 %v433
    %v1488 = vunpack.c.l.b16 %v434
    %v1489 = vunpack.c.l.b16 %v435
    %v1490 = vunpack.c.l.b16 %v436
    %v1491 = vunpack.c.l.b16 %v437
    %v1492 = vunpack.c.l.b16 %v438
    %v1493 = vunpack.c.l.b16 %v439
    %v1494 = vunpack.c.l.b16 %v440
    %v1495 = vunpack.c.l.b16 %v441
    %v1496 = vunpack.c.l.b16 %v442
    %v1497 = vunpack.c.l.b16 %v443
    %v1498 = vunpack.c.l.b16 %v444
    %v1499 = vunpack.c.l.b16 %v445
    %v1500 = vunpack.c.l.b16 %v446
    %v1501 = vunpack.c.l.b16 %v447
    %v1502 = vunpack.c.l.b16 %v448
    %v1503 = vunpack.c.l.b16 %v449
    %v1504 = vunpack.c.l.b16 %v450
    %v1505 = vunpack.c.l.b16 %v451
    %v1506 = vunpack.c.l.b16 %v452
    %v1507 = vunpack.c.l.b16 %v453
    %v1508 = vunpack.c.l.b16 %v454
    %v1509 = vunpack.c.l.b16 %v455
    %v1510 = vunpack.c.l.b16 %v456
    %v1511 = vunpack.c.l.b16 %v457
    %v1512 = vunpack.c.l.b16 %v458
    %v1513 = vunpack.c.l.b16 %v459
    %v1514 = vunpack.c.l.b16 %v460
    %v1515 = vunpack.c.l.b16 %v461
    %v1516 = vunpack.c.l.b16 %v462
    %v1517 = vunpack.c.l.b16 %v463
    %v1518 = vunpack.c.l.b16 %v464
    %v1519 = vunpack.c.l.b16 %v465
    %v1520 = vunpack.c.l.b16 %v466
    %v1521 = vunpack.c.l.b16 %v467
    %v1522 = vunpack.c.l.b16 %v468
    %v1523 = vunpack.c.l.b16 %v469
    %v1524 = vunpack.c.l.b16 %v470
    %v1525 = vunpack.c.l.b16 %v471
    %v1526 = vunpack.c.l.b16 %v472
    %v1527 = vunpack.c.l.b16 %v473
    %v1528 = vunpack.c.l.b16 %v474
    %v1529 = vunpack.c.l.b16 %v475
    %v1530 = vunpack.c.l.b16 %v476
    %v1531 = vunpack.c.l.b16 %v477
    %v1532 = vunpack.c.l.b16 %v478
    %v1533 = vunpack.c.l.b16 %v479
    %v1534 = vunpack.c.l.b16 %v480
    %v1535 = vunpack.c.l.b16 %v481
    %v1536 = vunpack.c.l.b16 %v482
    %v1537 = vunpack.c.l.b16 %v483
    %v1538 = vunpack.c.l.b16 %v484
    %v1539 = vunpack.c.l.b16 %v485
    %v1540 = vunpack.c.l.b16 %v486
    %v1541 = vunpack.c.l.b16 %v487
    %v1542 = vunpack.c.l.b16 %v488
    %v1543 = vunpack.c.l.b16 %v489
    %v1544 = vunpack.c.l.b16 %v490
    %v1545 = vunpack.c.l.b16 %v491
    %v1546 = vunpack.c.l.b16 %v492
    %v1547 = vunpack.c.l.b16 %v493
    %v1548 = vunpack.c.l.b16 %v494
    %v1549 = vunpack.c.l.b16 %v495
    %v1550 = vunpack.c.l.b16 %v496
    %v1551 = vunpack.c.l.b16 %v497
    %v1552 = vunpack.c.l.b16 %v498
    %v1553 = vunpack.c.l.b16 %v499
    %v1554 = vunpack.c.l.b16 %v500
    %v1555 = vunpack.c.l.b16 %v501
    %v1556 = vunpack.c.l.b16 %v502
    %v1557 = vunpack.c.l.b16 %v503
    %v1558 = vunpack.c.l.b16 %v504
    %v1559 = vunpack.c.l.b16 %v505
    %v1560 = vunpack.c.l.b16 %v506
    %v1561 = vunpack.c.l.b16 %v507
    %v1562 = vunpack.c.l.b16 %v508
    %v1563 = vunpack.c.l.b16 %v509
    %v1564 = vunpack.c.l.b16 %v510
    %v1565 = vunpack.c.l.b16 %v511
    %v1566 = vunpack.c.l.b16 %v512
    %v1567 = vunpack.c.l.b16 %v513
    %v1568 = vunpack.c.l.b16 %v514
    %v1569 = vunpack.c.l.b16 %v515
    %v1570 = vunpack.c.l.b16 %v516
    %v1571 = vunpack.c.l.b16 %v517
    %v1572 = vunpack.c.l.b16 %v518
    %v1573 = vunpack.c.l.b16 %v519
    %v1574 = vpack.c.b16 %v1124, %v1123
    %v1575 = vpack.c.b16 %v1126, %v1125
    %v1576 = vpack.c.b16 %v1128, %v1127
    %v1577 = vpack.c.b16 %v1130, %v1129
    %v1578 = vpack.c.b16 %v1132, %v1131
    %v1579 = vpack.c.b16 %v1134, %v1133
    %v1580 = vpack.c.b16 %v1136, %v1135
    %v1581 = vpack.c.b16 %v1138, %v1137
    %v1582 = vpack.c.b16 %v1140, %v1139
    %v1583 = vpack.c.b16 %v1142, %v1141
    %v1584 = vpack.c.b16 %v1144, %v1143
    %v1585 = vpack.c.b16 %v1146, %v1145
    %v1586 = vpack.c.b16 %v1148, %v1147
    %v1587 = vpack.c.b16 %v1150, %v1149
    %v1588 = vpack.c.b16 %v1152, %v1151
    %v1589 = vpack.c.b16 %v1154, %v1153
    %v1590 = vpack.c.b16 %v1156, %v1155
    %v1591 = vpack.c.b16 %v1158, %v1157
    %v1592 = vpack.c.b16 %v1160, %v1159
    %v1593 = vpack.c.b16 %v1162, %v1161
    %v1594 = vpack.c.b16 %v1164, %v1163
    %v1595 = vpack.c.b16 %v1166, %v1165
    %v1596 = vpack.c.b16 %v1168, %v1167
    %v1597 = vpack.c.b16 %v1170, %v1169
    %v1598 = vpack.c.b16 %v1172, %v1171
    %v1599 = vpack.c.b16 %v1174, %v1173
    %v1600 = vpack.c.b16 %v1176, %v1175
    %v1601 = vpack.c.b16 %v1178, %v1177
    %v1602 = vpack.c.b16 %v1180, %v1179
    %v1603 = vpack.c.b16 %v1182, %v1181
    %v1604 = vpack.c.b16 %v1184, %v1183
    %v1605 = vpack.c.b16 %v1186, %v1185
    %v1606 = vpack.c.b16 %v1188, %v1187
    %v1607 = vpack.c.b16 %v1190, %v1189
    %v1608 = vpack.c.b16 %v1192, %v1191
    %v1609 = vpack.c.b16 %v1194, %v1193
    %v1610 = vpack.c.b16 %v1196, %v1195
    %v1611 = vpack.c.b16 %v1198, %v1197
    %v1612 = vpack.c.b16 %v1200, %v1199
    %v1613 = vpack.c.b16 %v1202, %v1201
    %v1614 = vpack.c.b16 %v1204, %v1203
    %v1615 = vpack.c.b16 %v1206, %v1205
    %v1616 = vpack.c.b16 %v1208, %v1207
    %v1617 = vpack.c.b16 %v1210, %v1209
    %v1618 = vpack.c.b16 %v1212, %v1211
    %v1619 = vpack.c.b16 %v1214, %v1213
    %v1620 = vpack.c.b16 %v1216, %v1215
    %v1621 = vpack.c.b16 %v1218, %v1217
    %v1622 = vpack.c.b16 %v1220, %v1219
    %v1623 = vpack.c.b16 %v1222, %v1221
    %v1624 = vpack.c.b16 %v1224, %v1223
    %v1625 = vpack.c.b16 %v1226, %v1225
    %v1626 = vpack.c.b16 %v1228, %v1227
    %v1627 = vpack.c.b16 %v1230, %v1229
    %v1628 = vpack.c.b16 %v1232, %v1231
    %v1629 = vpack.c.b16 %v1234, %v1233
    %v1630 = vpack.c.b16 %v1236, %v1235
    %v1631 = vpack.c.b16 %v1238, %v1237
    %v1632 = vpack.c.b16 %v1240, %v1239
    %v1633 = vpack.c.b16 %v1242, %v1241
    %v1634 = vpack.c.b16 %v1244, %v1243
    %v1635 = vpack.c.b16 %v1246, %v1245
    %v1636 = vpack.c.b16 %v1248, %v1247
    %v1637 = vpack.c.b16 %v1250, %v1249
    %v1638 = vpack.c.b16 %v1252, %v1251
    %v1639 = vpack.c.b16 %v1254, %v1253
    %v1640 = vpack.c.b16 %v1256, %v1255
    %v1641 = vpack.c.b16 %v1258, %v1257
    %v1642 = vpack.c.b16 %v1260, %v1259
    %v1643 = vpack.c.b16 %v1262, %v1261
    %v1644 = vpack.c.b16 %v1264, %v1263
    %v1645 = vpack.c.b16 %v1266, %v1265
    %v1646 = vpack.c.b16 %v1268, %v1267
    %v1647 = vpack.c.b16 %v1270, %v1269
    %v1648 = vpack.c.b16 %v1272, %v1271
    %v1649 = vpack.c.b16 %v1274, %v1273
    %v1650 = vpack.c.b16 %v1276, %v1275
    %v1651 = vpack.c.b16 %v1278, %v1277
    %v1652 = vpack.c.b16 %v1280, %v1279
    %v1653 = vpack.c.b16 %v1282, %v1281
    %v1654 = vpack.c.b16 %v1284, %v1283
    %v1655 = vpack.c.b16 %v1286, %v1285
    %v1656 = vpack.c.b16 %v1288, %v1287
    %v1657 = vpack.c.b16 %v1290, %v1289
    %v1658 = vpack.c.b16 %v1292, %v1291
    %v1659 = vpack.c.b16 %v1294, %v1293
    %v1660 = vpack.c.b16 %v1296, %v1295
    %v1661 = vpack.c.b16 %v1298, %v1297
    %v1662 = vpack.c.b16 %v1300, %v1299
    %v1663 = vpack.c.b16 %v1302, %v1301
    %v1664 = vpack.c.b16 %v1304, %v1303
    %v1665 = vpack.c.b16 %v1306, %v1305
    %v1666 = vpack.c.b16 %v1308, %v1307
    %v1667 = vpack.c.b16 %v1310, %v1309
    %v1668 = vpack.c.b16 %v1312, %v1311
    %v1669 = vpack.c.b16 %v1314, %v1313
    %v1670 = vpack.c.b16 %v1316, %v1315
    %v1671 = vpack.c.b16 %v1318, %v1317
    %v1672 = vpack.c.b16 %v1320, %v1319
    %v1673 = vpack.c.b16 %v1322, %v1321
    %v1674 = vpack.c.b16 %v1324, %v1323
    %v1675 = vpack.c.b16 %v1326, %v1325
    %v1676 = vpack.c.b16 %v1328, %v1327
    %v1677 = vpack.c.b16 %v1330, %v1329
    %v1678 = vpack.c.b16 %v1332, %v1331
    %v1679 = vpack.c.b16 %v1334, %v1333
    %v1680 = vpack.c.b16 %v1336, %v1335
    %v1681 = vpack.c.b16 %v1338, %v1337
    %v1682 = vpack.c.b16 %v1340, %v1339
    %v1683 = vpack.c.b16 %v1342, %v1341
    %v1684 = vpack.c.b16 %v1344, %v1343
    %v1685 = vpack.c.b16 %v1346, %v1345
    %v1686 = vpack.c.b16 %v1348, %v1347
    %v1687 = vpack.c.b16 %v1350, %v1349
    %v1688 = vpack.c.b16 %v1352, %v1351
    %v1689 = vpack.c.b16 %v1354, %v1353
    %v1690 = vpack.c.b16 %v1356, %v1355
    %v1691 = vpack.c.b16 %v1358, %v1357
    %v1692 = vpack.c.b16 %v1360, %v1359
    %v1693 = vpack.c.b16 %v1362, %v1361
    %v1694 = vpack.c.b16 %v1364, %v1363
    %v1695 = vpack.c.b16 %v1366, %v1365
    %v1696 = vpack.c.b16 %v1368, %v1367
    %v1697 = vpack.c.b16 %v1370, %v1369
    %v1698 = vpack.c.b16 %v1372, %v1371
    %v1699 = vpack.c.b16 %v1374, %v1373
    %v1700 = vpack.c.b16 %v1376, %v1375
    %v1701 = vpack.c.b16 %v1378, %v1377
    %v1702 = vpack.c.b16 %v1380, %v1379
    %v1703 = vpack.c.b16 %v1382, %v1381
    %v1704 = vpack.c.b16 %v1384, %v1383
    %v1705 = vpack.c.b16 %v1386, %v1385
    %v1706 = vpack.c.b16 %v1388, %v1387
    %v1707 = vpack.c.b16 %v1390, %v1389
    %v1708 = vpack.c.b16 %v1392, %v1391
    %v1709 = vpack.c.b16 %v1394, %v1393
    %v1710 = vpack.c.b16 %v1396, %v1395
    %v1711 = vpack.c.b16 %v1398, %v1397
    %v1712 = vpack.c.b16 %v1400, %v1399
    %v1713 = vpack.c.b16 %v1402, %v1401
    %v1714 = vpack.c.b16 %v1404, %v1403
    %v1715 = vpack.c.b16 %v1406, %v1405
    %v1716 = vpack.c.b16 %v1408, %v1407
    %v1717 = vpack.c.b16 %v1410, %v1409
    %v1718 = vpack.c.b16 %v1412, %v1411
    %v1719 = vpack.c.b16 %v1414, %v1413
    %v1720 = vpack.c.b16 %v1416, %v1415
    %v1721 = vpack.c.b16 %v1418, %v1417
    %v1722 = vpack.c.b16 %v1420, %v1419
    %v1723 = vpack.c.b16 %v1422, %v1421
    %v1724 = vpack.c.b16 %v1424, %v1423
    %v1725 = vpack.c.b16 %v1426, %v1425
    %v1726 = vpack.c.b16 %v1428, %v1427
    %v1727 = vpack.c.b16 %v1430, %v1429
    %v1728 = vpack.c.b16 %v1432, %v1431
    %v1729 = vpack.c.b16 %v1434, %v1433
    %v1730 = vpack.c.b16 %v1436, %v1435
    %v1731 = vpack.c.b16 %v1438, %v1437
    %v1732 = vpack.c.b16 %v1440, %v1439
    %v1733 = vpack.c.b16 %v1442, %v1441
    %v1734 = vpack.c.b16 %v1444, %v1443
    %v1735 = vpack.c.b16 %v1446, %v1445
    %v1736 = vpack.c.b16 %v1448, %v1447
    %v1737 = vpack.c.b16 %v1450, %v1449
    %v1738 = vpack.c.b16 %v1452, %v1451
    %v1739 = vpack.c.b16 %v1454, %v1453
    %v1740 = vpack.c.b16 %v1456, %v1455
    %v1741 = vpack.c.b16 %v1458, %v1457
    %v1742 = vpack.c.b16 %v1460, %v1459
    %v1743 = vpack.c.b16 %v1462, %v1461
    %v1744 = vpack.c.b16 %v1464, %v1463
    %v1745 = vpack.c.b16 %v1466, %v1465
    %v1746 = vpack.c.b16 %v1468, %v1467
    %v1747 = vpack.c.b16 %v1470, %v1469
    %v1748 = vpack.c.b16 %v1472, %v1471
    %v1749 = vpack.c.b16 %v1474, %v1473
    %v1750 = vpack.c.b16 %v1476, %v1475
    %v1751 = vpack.c.b16 %v1478, %v1477
    %v1752 = vpack.c.b16 %v1480, %v1479
    %v1753 = vpack.c.b16 %v1482, %v1481
    %v1754 = vpack.c.b16 %v1484, %v1483
    %v1755 = vpack.c.b16 %v1486, %v1485
    %v1756 = vpack.c.b16 %v1488, %v1487
    %v1757 = vpack.c.b16 %v1490, %v1489
    %v1758 = vpack.c.b16 %v1492, %v1491
    %v1759 = vpack.c.b16 %v1494, %v1493
    %v1760 = vpack.c.b16 %v1496, %v1495
    %v1761 = vpack.c.b16 %v1498, %v1497
    %v1762 = vpack.c.b16 %v1500, %v1499
    %v1763 = vpack.c.b16 %v1502, %v1501
    %v1764 = vpack.c.b16 %v1504, %v1503
    %v1765 = vpack.c.b16 %v1506, %v1505
    %v1766 = vpack.c.b16 %v1508, %v1507
    %v1767 = vpack.c.b16 %v1510, %v1509
    %v1768 = vpack.c.b16 %v1512, %v1511
    %v1769 = vpack.c.b16 %v1514, %v1513
    %v1770 = vpack.c.b16 %v1516, %v1515
    %v1771 = vpack.c.b16 %v1518, %v1517
    %v1772 = vpack.c.b16 %v1520, %v1519
    %v1773 = vpack.c.b16 %v1522, %v1521
    %v1774 = vpack.c.b16 %v1524, %v1523
    %v1775 = vpack.c.b16 %v1526, %v1525
    %v1776 = vpack.c.b16 %v1528, %v1527
    %v1777 = vpack.c.b16 %v1530, %v1529
    %v1778 = vpack.c.b16 %v1532, %v1531
    %v1779 = vpack.c.b16 %v1534, %v1533
    %v1780 = vpack.c.b16 %v1536, %v1535
    %v1781 = vpack.c.b16 %v1538, %v1537
    %v1782 = vpack.c.b16 %v1540, %v1539
    %v1783 = vpack.c.b16 %v1542, %v1541
    %v1784 = vpack.c.b16 %v1544, %v1543
    %v1785 = vpack.c.b16 %v1546, %v1545
    %v1786 = vpack.c.b16 %v1548, %v1547
    %v1787 = vpack.c.b16 %v1550, %v1549
    %v1788 = vpack.c.b16 %v1552, %v1551
    %v1789 = vpack.c.b16 %v1554, %v1553
    %v1790 = vpack.c.b16 %v1556, %v1555
    %v1791 = vpack.c.b16 %v1558, %v1557
    %v1792 = vpack.c.b16 %v1560, %v1559
    %v1793 = vpack.c.b16 %v1562, %v1561
    %v1794 = vpack.c.b16 %v1564, %v1563
    %v1795 = vpack.c.b16 %v1566, %v1565
    %v1796 = vpack.c.b16 %v1568, %v1567
    %v1797 = vpack.c.b16 %v1570, %v1569
    %v1798 = vpack.c.b16 %v1572, %v1571
    %v1799 = vpack.c.b16 %v1573, %v1573
    %vm2025 = vcmask 179200
    %v2027 = vsel %vm2025, %v643, 0
    %vm2029 = vcmask 1042432
    %v2031 = vsel %vm2029, %v1799, 0
    %2033 = vmatprep.subr.bf16.mxu0 0
    %2034 = vmatpush1.bf16.msra.mxu0 %v1574
    %2035 = vmatprep.subr.bf16.mxu0 0
    %2036 = vmatpush1.bf16.msra.mxu0 %v1575
    %2037 = vmatprep.subr.bf16.mxu0 0
    %2038 = vmatpush1.bf16.msra.mxu0 %v1576
    %2039 = vmatprep.subr.bf16.mxu0 0
    %2040 = vmatpush1.bf16.msra.mxu0 %v1577
    %2041 = vmatprep.subr.bf16.mxu0 0
    %2042 = vmatpush1.bf16.msra.mxu0 %v1578
    %2043 = vmatprep.subr.bf16.mxu0 0
    %2044 = vmatpush1.bf16.msra.mxu0 %v1579
    %2045 = vmatprep.subr.bf16.mxu0 0
    %2046 = vmatpush1.bf16.msra.mxu0 %v1580
    %2047 = vmatprep.subr.bf16.mxu0 0
    %2048 = vmatpush1.bf16.msra.mxu0 %v1581
    %2049 = vmatprep.subr.bf16.mxu0 0
    %2050 = vmatpush1.bf16.msra.mxu0 %v1582
    %2051 = vmatprep.subr.bf16.mxu0 0
    %2052 = vmatpush1.bf16.msra.mxu0 %v1583
    %2053 = vmatprep.subr.bf16.mxu0 0
    %2054 = vmatpush1.bf16.msra.mxu0 %v1584
    %2055 = vmatprep.subr.bf16.mxu0 0
    %2056 = vmatpush1.bf16.msra.mxu0 %v1585
    %2057 = vmatprep.subr.bf16.mxu0 0
    %2058 = vmatpush1.bf16.msra.mxu0 %v1586
    %2059 = vmatprep.subr.bf16.mxu0 0
    %2060 = vmatpush1.bf16.msra.mxu0 %v1587
    %2061 = vmatprep.subr.bf16.mxu0 0
    %2062 = vmatpush1.bf16.msra.mxu0 %v1588
    %2063 = vmatprep.subr.bf16.mxu0 0
    %2064 = vmatpush1.bf16.msra.mxu0 %v1589
    %2065 = vmatprep.mubr.bf16.mxu0 %v616
    %2066 = vmatmul.mubr.bf16.gmra.mrb[0].mxu0 %v615
    %v2067 = vpop.f32.mrb[0].mxu0
    %v2068 = vadd.f32 %v525, %v2067
    %v2069 = vpop.f32.mrb[0].mxu0
    %v2070 = vpop.f32.mrb[0].mxu0
    %v2071 = vadd.f32 %v525, %v2070
    %v2072 = vpop.f32.mrb[0].mxu0
    %2073 = vdwg.mxu0
    %2074 = vmatprep.subr.bf16.mxu0 0
    %2075 = vmatpush1.bf16.msra.mxu0 %v1590
    %2076 = vmatprep.subr.bf16.mxu0 0
    %2077 = vmatpush1.bf16.msra.mxu0 %v1591
    %2078 = vmatprep.subr.bf16.mxu0 0
    %2079 = vmatpush1.bf16.msra.mxu0 %v1592
    %2080 = vmatprep.subr.bf16.mxu0 0
    %2081 = vmatpush1.bf16.msra.mxu0 %v1593
    %2082 = vmatprep.subr.bf16.mxu0 0
    %2083 = vmatpush1.bf16.msra.mxu0 %v1594
    %2084 = vmatprep.subr.bf16.mxu0 0
    %2085 = vmatpush1.bf16.msra.mxu0 %v1595
    %2086 = vmatprep.subr.bf16.mxu0 0
    %2087 = vmatpush1.bf16.msra.mxu0 %v1596
    %2088 = vmatprep.subr.bf16.mxu0 0
    %2089 = vmatpush1.bf16.msra.mxu0 %v1597
    %2090 = vmatprep.subr.bf16.mxu0 0
    %2091 = vmatpush1.bf16.msra.mxu0 %v1598
    %2092 = vmatprep.subr.bf16.mxu0 0
    %2093 = vmatpush1.bf16.msra.mxu0 %v1599
    %2094 = vmatprep.subr.bf16.mxu0 0
    %2095 = vmatpush1.bf16.msra.mxu0 %v1600
    %2096 = vmatprep.subr.bf16.mxu0 0
    %2097 = vmatpush1.bf16.msra.mxu0 %v1601
    %2098 = vmatprep.subr.bf16.mxu0 0
    %2099 = vmatpush1.bf16.msra.mxu0 %v1602
    %2100 = vmatprep.subr.bf16.mxu0 0
    %2101 = vmatpush1.bf16.msra.mxu0 %v1603
    %2102 = vmatprep.subr.bf16.mxu0 0
    %2103 = vmatpush1.bf16.msra.mxu0 %v1604
    %2104 = vmatprep.subr.bf16.mxu0 0
    %2105 = vmatpush1.bf16.msra.mxu0 %v1605
    %2106 = vmatprep.mubr.bf16.mxu0 %v618
    %2107 = vmatmul.mubr.bf16.gmra.mrb[0].mxu0 %v617
    %v2108 = vpop.f32.mrb[0].mxu0
    %v2109 = vadd.f32 %v2068, %v2108
    %v2110 = vpop.f32.mrb[0].mxu0
    %v2111 = vpop.f32.mrb[0].mxu0
    %v2112 = vadd.f32 %v2071, %v2111
    %v2113 = vpop.f32.mrb[0].mxu0
    %2114 = vdwg.mxu0
    %2115 = vmatprep.subr.bf16.mxu0 0
    %2116 = vmatpush1.bf16.msra.mxu0 %v1606
    %2117 = vmatprep.subr.bf16.mxu0 0
    %2118 = vmatpush1.bf16.msra.mxu0 %v1607
    %2119 = vmatprep.subr.bf16.mxu0 0
    %2120 = vmatpush1.bf16.msra.mxu0 %v1608
    %2121 = vmatprep.subr.bf16.mxu0 0
    %2122 = vmatpush1.bf16.msra.mxu0 %v1609
    %2123 = vmatprep.subr.bf16.mxu0 0
    %2124 = vmatpush1.bf16.msra.mxu0 %v1610
    %2125 = vmatprep.subr.bf16.mxu0 0
    %2126 = vmatpush1.bf16.msra.mxu0 %v1611
    %2127 = vmatprep.subr.bf16.mxu0 0
    %2128 = vmatpush1.bf16.msra.mxu0 %v1612
    %2129 = vmatprep.subr.bf16.mxu0 0
    %2130 = vmatpush1.bf16.msra.mxu0 %v1613
    %2131 = vmatprep.subr.bf16.mxu0 0
    %2132 = vmatpush1.bf16.msra.mxu0 %v1614
    %2133 = vmatprep.subr.bf16.mxu0 0
    %2134 = vmatpush1.bf16.msra.mxu0 %v1615
    %2135 = vmatprep.subr.bf16.mxu0 0
    %2136 = vmatpush1.bf16.msra.mxu0 %v1616
    %2137 = vmatprep.subr.bf16.mxu0 0
    %2138 = vmatpush1.bf16.msra.mxu0 %v1617
    %2139 = vmatprep.subr.bf16.mxu0 0
    %2140 = vmatpush1.bf16.msra.mxu0 %v1618
    %2141 = vmatprep.subr.bf16.mxu0 0
    %2142 = vmatpush1.bf16.msra.mxu0 %v1619
    %2143 = vmatprep.subr.bf16.mxu0 0
    %2144 = vmatpush1.bf16.msra.mxu0 %v1620
    %2145 = vmatprep.subr.bf16.mxu0 0
    %2146 = vmatpush1.bf16.msra.mxu0 %v1621
    %2147 = vmatprep.mubr.bf16.mxu0 %v620
    %2148 = vmatmul.mubr.bf16.gmra.mrb[0].mxu0 %v619
    %v2149 = vpop.f32.mrb[0].mxu0
    %v2150 = vadd.f32 %v2109, %v2149
    %v2151 = vpop.f32.mrb[0].mxu0
    %v2152 = vpop.f32.mrb[0].mxu0
    %v2153 = vadd.f32 %v2112, %v2152
    %v2154 = vpop.f32.mrb[0].mxu0
    %2155 = vdwg.mxu0
    %2156 = vmatprep.subr.bf16.mxu0 0
    %2157 = vmatpush1.bf16.msra.mxu0 %v1622
    %2158 = vmatprep.subr.bf16.mxu0 0
    %2159 = vmatpush1.bf16.msra.mxu0 %v1623
    %2160 = vmatprep.subr.bf16.mxu0 0
    %2161 = vmatpush1.bf16.msra.mxu0 %v1624
    %2162 = vmatprep.subr.bf16.mxu0 0
    %2163 = vmatpush1.bf16.msra.mxu0 %v1625
    %2164 = vmatprep.subr.bf16.mxu0 0
    %2165 = vmatpush1.bf16.msra.mxu0 %v1626
    %2166 = vmatprep.subr.bf16.mxu0 0
    %2167 = vmatpush1.bf16.msra.mxu0 %v1627
    %2168 = vmatprep.subr.bf16.mxu0 0
    %2169 = vmatpush1.bf16.msra.mxu0 %v1628
    %2170 = vmatprep.subr.bf16.mxu0 0
    %2171 = vmatpush1.bf16.msra.mxu0 %v1629
    %2172 = vmatprep.subr.bf16.mxu0 0
    %2173 = vmatpush1.bf16.msra.mxu0 %v1630
    %2174 = vmatprep.subr.bf16.mxu0 0
    %2175 = vmatpush1.bf16.msra.mxu0 %v1631
    %2176 = vmatprep.subr.bf16.mxu0 0
    %2177 = vmatpush1.bf16.msra.mxu0 %v1632
    %2178 = vmatprep.subr.bf16.mxu0 0
    %2179 = vmatpush1.bf16.msra.mxu0 %v1633
    %2180 = vmatprep.subr.bf16.mxu0 0
    %2181 = vmatpush1.bf16.msra.mxu0 %v1634
    %2182 = vmatprep.subr.bf16.mxu0 0
    %2183 = vmatpush1.bf16.msra.mxu0 %v1635
    %2184 = vmatprep.subr.bf16.mxu0 0
    %2185 = vmatpush1.bf16.msra.mxu0 %v1636
    %2186 = vmatprep.subr.bf16.mxu0 0
    %2187 = vmatpush1.bf16.msra.mxu0 %v1637
    %2188 = vmatprep.mubr.bf16.mxu0 %v622
    %2189 = vmatmul.mubr.bf16.gmra.mrb[0].mxu0 %v621
    %v2190 = vpop.f32.mrb[0].mxu0
    %v2191 = vadd.f32 %v2150, %v2190
    %v2192 = vpop.f32.mrb[0].mxu0
    %v2193 = vpop.f32.mrb[0].mxu0
    %v2194 = vadd.f32 %v2153, %v2193
    %v2195 = vpop.f32.mrb[0].mxu0
    %2196 = vdwg.mxu0
    %2197 = vmatprep.subr.bf16.mxu0 0
    %2198 = vmatpush1.bf16.msra.mxu0 %v1638
    %2199 = vmatprep.subr.bf16.mxu0 0
    %2200 = vmatpush1.bf16.msra.mxu0 %v1639
    %2201 = vmatprep.subr.bf16.mxu0 0
    %2202 = vmatpush1.bf16.msra.mxu0 %v1640
    %2203 = vmatprep.subr.bf16.mxu0 0
    %2204 = vmatpush1.bf16.msra.mxu0 %v1641
    %2205 = vmatprep.subr.bf16.mxu0 0
    %2206 = vmatpush1.bf16.msra.mxu0 %v1642
    %2207 = vmatprep.subr.bf16.mxu0 0
    %2208 = vmatpush1.bf16.msra.mxu0 %v1643
    %2209 = vmatprep.subr.bf16.mxu0 0
    %2210 = vmatpush1.bf16.msra.mxu0 %v1644
    %2211 = vmatprep.subr.bf16.mxu0 0
    %2212 = vmatpush1.bf16.msra.mxu0 %v1645
    %2213 = vmatprep.subr.bf16.mxu0 0
    %2214 = vmatpush1.bf16.msra.mxu0 %v1646
    %2215 = vmatprep.subr.bf16.mxu0 0
    %2216 = vmatpush1.bf16.msra.mxu0 %v1647
    %2217 = vmatprep.subr.bf16.mxu0 0
    %2218 = vmatpush1.bf16.msra.mxu0 %v1648
    %2219 = vmatprep.subr.bf16.mxu0 0
    %2220 = vmatpush1.bf16.msra.mxu0 %v1649
    %2221 = vmatprep.subr.bf16.mxu0 0
    %2222 = vmatpush1.bf16.msra.mxu0 %v1650
    %2223 = vmatprep.subr.bf16.mxu0 0
    %2224 = vmatpush1.bf16.msra.mxu0 %v1651
    %2225 = vmatprep.subr.bf16.mxu0 0
    %2226 = vmatpush1.bf16.msra.mxu0 %v1652
    %2227 = vmatprep.subr.bf16.mxu0 0
    %2228 = vmatpush1.bf16.msra.mxu0 %v1653
    %2229 = vmatprep.mubr.bf16.mxu0 %v624
    %2230 = vmatmul.mubr.bf16.gmra.mrb[0].mxu0 %v623
    %v2231 = vpop.f32.mrb[0].mxu0
    %v2232 = vadd.f32 %v2191, %v2231
    %v2233 = vpop.f32.mrb[0].mxu0
    %v2234 = vpop.f32.mrb[0].mxu0
    %v2235 = vadd.f32 %v2194, %v2234
    %v2236 = vpop.f32.mrb[0].mxu0
    %2237 = vdwg.mxu0
    %2238 = vmatprep.subr.bf16.mxu0 0
    %2239 = vmatpush1.bf16.msra.mxu0 %v1654
    %2240 = vmatprep.subr.bf16.mxu0 0
    %2241 = vmatpush1.bf16.msra.mxu0 %v1655
    %2242 = vmatprep.subr.bf16.mxu0 0
    %2243 = vmatpush1.bf16.msra.mxu0 %v1656
    %2244 = vmatprep.subr.bf16.mxu0 0
    %2245 = vmatpush1.bf16.msra.mxu0 %v1657
    %2246 = vmatprep.subr.bf16.mxu0 0
    %2247 = vmatpush1.bf16.msra.mxu0 %v1658
    %2248 = vmatprep.subr.bf16.mxu0 0
    %2249 = vmatpush1.bf16.msra.mxu0 %v1659
    %2250 = vmatprep.subr.bf16.mxu0 0
    %2251 = vmatpush1.bf16.msra.mxu0 %v1660
    %2252 = vmatprep.subr.bf16.mxu0 0
    %2253 = vmatpush1.bf16.msra.mxu0 %v1661
    %2254 = vmatprep.subr.bf16.mxu0 0
    %2255 = vmatpush1.bf16.msra.mxu0 %v1662
    %2256 = vmatprep.subr.bf16.mxu0 0
    %2257 = vmatpush1.bf16.msra.mxu0 %v1663
    %2258 = vmatprep.subr.bf16.mxu0 0
    %2259 = vmatpush1.bf16.msra.mxu0 %v1664
    %2260 = vmatprep.subr.bf16.mxu0 0
    %2261 = vmatpush1.bf16.msra.mxu0 %v1665
    %2262 = vmatprep.subr.bf16.mxu0 0
    %2263 = vmatpush1.bf16.msra.mxu0 %v1666
    %2264 = vmatprep.subr.bf16.mxu0 0
    %2265 = vmatpush1.bf16.msra.mxu0 %v1667
    %2266 = vmatprep.subr.bf16.mxu0 0
    %2267 = vmatpush1.bf16.msra.mxu0 %v1668
    %2268 = vmatprep.subr.bf16.mxu0 0
    %2269 = vmatpush1.bf16.msra.mxu0 %v1669
    %2270 = vmatprep.mubr.bf16.mxu0 %v626
    %2271 = vmatmul.mubr.bf16.gmra.mrb[0].mxu0 %v625
    %v2272 = vpop.f32.mrb[0].mxu0
    %v2273 = vadd.f32 %v2232, %v2272
    %v2274 = vpop.f32.mrb[0].mxu0
    %v2275 = vpop.f32.mrb[0].mxu0
    %v2276 = vadd.f32 %v2235, %v2275
    %v2277 = vpop.f32.mrb[0].mxu0
    %2278 = vdwg.mxu0
    %2279 = vmatprep.subr.bf16.mxu0 0
    %2280 = vmatpush1.bf16.msra.mxu0 %v1670
    %2281 = vmatprep.subr.bf16.mxu0 0
    %2282 = vmatpush1.bf16.msra.mxu0 %v1671
    %2283 = vmatprep.subr.bf16.mxu0 0
    %2284 = vmatpush1.bf16.msra.mxu0 %v1672
    %2285 = vmatprep.subr.bf16.mxu0 0
    %2286 = vmatpush1.bf16.msra.mxu0 %v1673
    %2287 = vmatprep.subr.bf16.mxu0 0
    %2288 = vmatpush1.bf16.msra.mxu0 %v1674
    %2289 = vmatprep.subr.bf16.mxu0 0
    %2290 = vmatpush1.bf16.msra.mxu0 %v1675
    %2291 = vmatprep.subr.bf16.mxu0 0
    %2292 = vmatpush1.bf16.msra.mxu0 %v1676
    %2293 = vmatprep.subr.bf16.mxu0 0
    %2294 = vmatpush1.bf16.msra.mxu0 %v1677
    %2295 = vmatprep.subr.bf16.mxu0 0
    %2296 = vmatpush1.bf16.msra.mxu0 %v1678
    %2297 = vmatprep.subr.bf16.mxu0 0
    %2298 = vmatpush1.bf16.msra.mxu0 %v1679
    %2299 = vmatprep.subr.bf16.mxu0 0
    %2300 = vmatpush1.bf16.msra.mxu0 %v1680
    %2301 = vmatprep.subr.bf16.mxu0 0
    %2302 = vmatpush1.bf16.msra.mxu0 %v1681
    %2303 = vmatprep.subr.bf16.mxu0 0
    %2304 = vmatpush1.bf16.msra.mxu0 %v1682
    %2305 = vmatprep.subr.bf16.mxu0 0
    %2306 = vmatpush1.bf16.msra.mxu0 %v1683
    %2307 = vmatprep.subr.bf16.mxu0 0
    %2308 = vmatpush1.bf16.msra.mxu0 %v1684
    %2309 = vmatprep.subr.bf16.mxu0 0
    %2310 = vmatpush1.bf16.msra.mxu0 %v1685
    %2311 = vmatprep.mubr.bf16.mxu0 %v628
    %2312 = vmatmul.mubr.bf16.gmra.mrb[0].mxu0 %v627
    %v2313 = vpop.f32.mrb[0].mxu0
    %v2314 = vadd.f32 %v2273, %v2313
    %v2315 = vpop.f32.mrb[0].mxu0
    %v2316 = vpop.f32.mrb[0].mxu0
    %v2317 = vadd.f32 %v2276, %v2316
    %v2318 = vpop.f32.mrb[0].mxu0
    %2319 = vdwg.mxu0
    %2320 = vmatprep.subr.bf16.mxu0 0
    %2321 = vmatpush1.bf16.msra.mxu0 %v1686
    %2322 = vmatprep.subr.bf16.mxu0 0
    %2323 = vmatpush1.bf16.msra.mxu0 %v1687
    %2324 = vmatprep.subr.bf16.mxu0 0
    %2325 = vmatpush1.bf16.msra.mxu0 %v1688
    %2326 = vmatprep.subr.bf16.mxu0 0
    %2327 = vmatpush1.bf16.msra.mxu0 %v1689
    %2328 = vmatprep.subr.bf16.mxu0 0
    %2329 = vmatpush1.bf16.msra.mxu0 %v1690
    %2330 = vmatprep.subr.bf16.mxu0 0
    %2331 = vmatpush1.bf16.msra.mxu0 %v1691
    %2332 = vmatprep.subr.bf16.mxu0 0
    %2333 = vmatpush1.bf16.msra.mxu0 %v1692
    %2334 = vmatprep.subr.bf16.mxu0 0
    %2335 = vmatpush1.bf16.msra.mxu0 %v1693
    %2336 = vmatprep.subr.bf16.mxu0 0
    %2337 = vmatpush1.bf16.msra.mxu0 %v1694
    %2338 = vmatprep.subr.bf16.mxu0 0
    %2339 = vmatpush1.bf16.msra.mxu0 %v1695
    %2340 = vmatprep.subr.bf16.mxu0 0
    %2341 = vmatpush1.bf16.msra.mxu0 %v1696
    %2342 = vmatprep.subr.bf16.mxu0 0
    %2343 = vmatpush1.bf16.msra.mxu0 %v1697
    %2344 = vmatprep.subr.bf16.mxu0 0
    %2345 = vmatpush1.bf16.msra.mxu0 %v1698
    %2346 = vmatprep.subr.bf16.mxu0 0
    %2347 = vmatpush1.bf16.msra.mxu0 %v1699
    %2348 = vmatprep.subr.bf16.mxu0 0
    %2349 = vmatpush1.bf16.msra.mxu0 %v1700
    %2350 = vmatprep.subr.bf16.mxu0 0
    %2351 = vmatpush1.bf16.msra.mxu0 %v1701
    %2352 = vmatprep.mubr.bf16.mxu0 %v630
    %2353 = vmatmul.mubr.bf16.gmra.mrb[0].mxu0 %v629
    %v2354 = vpop.f32.mrb[0].mxu0
    %v2355 = vadd.f32 %v2314, %v2354
    %v2356 = vpop.f32.mrb[0].mxu0
    %v2357 = vpop.f32.mrb[0].mxu0
    %v2358 = vadd.f32 %v2317, %v2357
    %v2359 = vpop.f32.mrb[0].mxu0
    %2360 = vdwg.mxu0
    %2361 = vmatprep.subr.bf16.mxu0 0
    %2362 = vmatpush1.bf16.msra.mxu0 %v1702
    %2363 = vmatprep.subr.bf16.mxu0 0
    %2364 = vmatpush1.bf16.msra.mxu0 %v1703
    %2365 = vmatprep.subr.bf16.mxu0 0
    %2366 = vmatpush1.bf16.msra.mxu0 %v1704
    %2367 = vmatprep.subr.bf16.mxu0 0
    %2368 = vmatpush1.bf16.msra.mxu0 %v1705
    %2369 = vmatprep.subr.bf16.mxu0 0
    %2370 = vmatpush1.bf16.msra.mxu0 %v1706
    %2371 = vmatprep.subr.bf16.mxu0 0
    %2372 = vmatpush1.bf16.msra.mxu0 %v1707
    %2373 = vmatprep.subr.bf16.mxu0 0
    %2374 = vmatpush1.bf16.msra.mxu0 %v1708
    %2375 = vmatprep.subr.bf16.mxu0 0
    %2376 = vmatpush1.bf16.msra.mxu0 %v1709
    %2377 = vmatprep.subr.bf16.mxu0 0
    %2378 = vmatpush1.bf16.msra.mxu0 %v1710
    %2379 = vmatprep.subr.bf16.mxu0 0
    %2380 = vmatpush1.bf16.msra.mxu0 %v1711
    %2381 = vmatprep.subr.bf16.mxu0 0
    %2382 = vmatpush1.bf16.msra.mxu0 %v1712
    %2383 = vmatprep.subr.bf16.mxu0 0
    %2384 = vmatpush1.bf16.msra.mxu0 %v1713
    %2385 = vmatprep.subr.bf16.mxu0 0
    %2386 = vmatpush1.bf16.msra.mxu0 %v1714
    %2387 = vmatprep.subr.bf16.mxu0 0
    %2388 = vmatpush1.bf16.msra.mxu0 %v1715
    %2389 = vmatprep.subr.bf16.mxu0 0
    %2390 = vmatpush1.bf16.msra.mxu0 %v1716
    %2391 = vmatprep.subr.bf16.mxu0 0
    %2392 = vmatpush1.bf16.msra.mxu0 %v1717
    %2393 = vmatprep.mubr.bf16.mxu0 %v632
    %2394 = vmatmul.mubr.bf16.gmra.mrb[0].mxu0 %v631
    %v2395 = vpop.f32.mrb[0].mxu0
    %v2396 = vadd.f32 %v2355, %v2395
    %v2397 = vpop.f32.mrb[0].mxu0
    %v2398 = vpop.f32.mrb[0].mxu0
    %v2399 = vadd.f32 %v2358, %v2398
    %v2400 = vpop.f32.mrb[0].mxu0
    %2401 = vdwg.mxu0
    %2402 = vmatprep.subr.bf16.mxu0 0
    %2403 = vmatpush1.bf16.msra.mxu0 %v1718
    %2404 = vmatprep.subr.bf16.mxu0 0
    %2405 = vmatpush1.bf16.msra.mxu0 %v1719
    %2406 = vmatprep.subr.bf16.mxu0 0
    %2407 = vmatpush1.bf16.msra.mxu0 %v1720
    %2408 = vmatprep.subr.bf16.mxu0 0
    %2409 = vmatpush1.bf16.msra.mxu0 %v1721
    %2410 = vmatprep.subr.bf16.mxu0 0
    %2411 = vmatpush1.bf16.msra.mxu0 %v1722
    %2412 = vmatprep.subr.bf16.mxu0 0
    %2413 = vmatpush1.bf16.msra.mxu0 %v1723
    %2414 = vmatprep.subr.bf16.mxu0 0
    %2415 = vmatpush1.bf16.msra.mxu0 %v1724
    %2416 = vmatprep.subr.bf16.mxu0 0
    %2417 = vmatpush1.bf16.msra.mxu0 %v1725
    %2418 = vmatprep.subr.bf16.mxu0 0
    %2419 = vmatpush1.bf16.msra.mxu0 %v1726
    %2420 = vmatprep.subr.bf16.mxu0 0
    %2421 = vmatpush1.bf16.msra.mxu0 %v1727
    %2422 = vmatprep.subr.bf16.mxu0 0
    %2423 = vmatpush1.bf16.msra.mxu0 %v1728
    %2424 = vmatprep.subr.bf16.mxu0 0
    %2425 = vmatpush1.bf16.msra.mxu0 %v1729
    %2426 = vmatprep.subr.bf16.mxu0 0
    %2427 = vmatpush1.bf16.msra.mxu0 %v1730
    %2428 = vmatprep.subr.bf16.mxu0 0
    %2429 = vmatpush1.bf16.msra.mxu0 %v1731
    %2430 = vmatprep.subr.bf16.mxu0 0
    %2431 = vmatpush1.bf16.msra.mxu0 %v1732
    %2432 = vmatprep.subr.bf16.mxu0 0
    %2433 = vmatpush1.bf16.msra.mxu0 %v1733
    %2434 = vmatprep.mubr.bf16.mxu0 %v634
    %2435 = vmatmul.mubr.bf16.gmra.mrb[0].mxu0 %v633
    %v2436 = vpop.f32.mrb[0].mxu0
    %v2437 = vadd.f32 %v2396, %v2436
    %v2438 = vpop.f32.mrb[0].mxu0
    %v2439 = vpop.f32.mrb[0].mxu0
    %v2440 = vadd.f32 %v2399, %v2439
    %v2441 = vpop.f32.mrb[0].mxu0
    %2442 = vdwg.mxu0
    %2443 = vmatprep.subr.bf16.mxu0 0
    %2444 = vmatpush1.bf16.msra.mxu0 %v1734
    %2445 = vmatprep.subr.bf16.mxu0 0
    %2446 = vmatpush1.bf16.msra.mxu0 %v1735
    %2447 = vmatprep.subr.bf16.mxu0 0
    %2448 = vmatpush1.bf16.msra.mxu0 %v1736
    %2449 = vmatprep.subr.bf16.mxu0 0
    %2450 = vmatpush1.bf16.msra.mxu0 %v1737
    %2451 = vmatprep.subr.bf16.mxu0 0
    %2452 = vmatpush1.bf16.msra.mxu0 %v1738
    %2453 = vmatprep.subr.bf16.mxu0 0
    %2454 = vmatpush1.bf16.msra.mxu0 %v1739
    %2455 = vmatprep.subr.bf16.mxu0 0
    %2456 = vmatpush1.bf16.msra.mxu0 %v1740
    %2457 = vmatprep.subr.bf16.mxu0 0
    %2458 = vmatpush1.bf16.msra.mxu0 %v1741
    %2459 = vmatprep.subr.bf16.mxu0 0
    %2460 = vmatpush1.bf16.msra.mxu0 %v1742
    %2461 = vmatprep.subr.bf16.mxu0 0
    %2462 = vmatpush1.bf16.msra.mxu0 %v1743
    %2463 = vmatprep.subr.bf16.mxu0 0
    %2464 = vmatpush1.bf16.msra.mxu0 %v1744
    %2465 = vmatprep.subr.bf16.mxu0 0
    %2466 = vmatpush1.bf16.msra.mxu0 %v1745
    %2467 = vmatprep.subr.bf16.mxu0 0
    %2468 = vmatpush1.bf16.msra.mxu0 %v1746
    %2469 = vmatprep.subr.bf16.mxu0 0
    %2470 = vmatpush1.bf16.msra.mxu0 %v1747
    %2471 = vmatprep.subr.bf16.mxu0 0
    %2472 = vmatpush1.bf16.msra.mxu0 %v1748
    %2473 = vmatprep.subr.bf16.mxu0 0
    %2474 = vmatpush1.bf16.msra.mxu0 %v1749
    %2475 = vmatprep.mubr.bf16.mxu0 %v636
    %2476 = vmatmul.mubr.bf16.gmra.mrb[0].mxu0 %v635
    %v2477 = vpop.f32.mrb[0].mxu0
    %v2478 = vadd.f32 %v2437, %v2477
    %v2479 = vpop.f32.mrb[0].mxu0
    %v2480 = vpop.f32.mrb[0].mxu0
    %v2481 = vadd.f32 %v2440, %v2480
    %v2482 = vpop.f32.mrb[0].mxu0
    %2483 = vdwg.mxu0
    %2484 = vmatprep.subr.bf16.mxu0 0
    %2485 = vmatpush1.bf16.msra.mxu0 %v1750
    %2486 = vmatprep.subr.bf16.mxu0 0
    %2487 = vmatpush1.bf16.msra.mxu0 %v1751
    %2488 = vmatprep.subr.bf16.mxu0 0
    %2489 = vmatpush1.bf16.msra.mxu0 %v1752
    %2490 = vmatprep.subr.bf16.mxu0 0
    %2491 = vmatpush1.bf16.msra.mxu0 %v1753
    %2492 = vmatprep.subr.bf16.mxu0 0
    %2493 = vmatpush1.bf16.msra.mxu0 %v1754
    %2494 = vmatprep.subr.bf16.mxu0 0
    %2495 = vmatpush1.bf16.msra.mxu0 %v1755
    %2496 = vmatprep.subr.bf16.mxu0 0
    %2497 = vmatpush1.bf16.msra.mxu0 %v1756
    %2498 = vmatprep.subr.bf16.mxu0 0
    %2499 = vmatpush1.bf16.msra.mxu0 %v1757
    %2500 = vmatprep.subr.bf16.mxu0 0
    %2501 = vmatpush1.bf16.msra.mxu0 %v1758
    %2502 = vmatprep.subr.bf16.mxu0 0
    %2503 = vmatpush1.bf16.msra.mxu0 %v1759
    %2504 = vmatprep.subr.bf16.mxu0 0
    %2505 = vmatpush1.bf16.msra.mxu0 %v1760
    %2506 = vmatprep.subr.bf16.mxu0 0
    %2507 = vmatpush1.bf16.msra.mxu0 %v1761
    %2508 = vmatprep.subr.bf16.mxu0 0
    %2509 = vmatpush1.bf16.msra.mxu0 %v1762
    %2510 = vmatprep.subr.bf16.mxu0 0
    %2511 = vmatpush1.bf16.msra.mxu0 %v1763
    %2512 = vmatprep.subr.bf16.mxu0 0
    %2513 = vmatpush1.bf16.msra.mxu0 %v1764
    %2514 = vmatprep.subr.bf16.mxu0 0
    %2515 = vmatpush1.bf16.msra.mxu0 %v1765
    %2516 = vmatprep.mubr.bf16.mxu0 %v638
    %2517 = vmatmul.mubr.bf16.gmra.mrb[0].mxu0 %v637
    %v2518 = vpop.f32.mrb[0].mxu0
    %v2519 = vadd.f32 %v2478, %v2518
    %v2520 = vpop.f32.mrb[0].mxu0
    %v2521 = vpop.f32.mrb[0].mxu0
    %v2522 = vadd.f32 %v2481, %v2521
    %v2523 = vpop.f32.mrb[0].mxu0
    %2524 = vdwg.mxu0
    %2525 = vmatprep.subr.bf16.mxu0 0
    %2526 = vmatpush1.bf16.msra.mxu0 %v1766
    %2527 = vmatprep.subr.bf16.mxu0 0
    %2528 = vmatpush1.bf16.msra.mxu0 %v1767
    %2529 = vmatprep.subr.bf16.mxu0 0
    %2530 = vmatpush1.bf16.msra.mxu0 %v1768
    %2531 = vmatprep.subr.bf16.mxu0 0
    %2532 = vmatpush1.bf16.msra.mxu0 %v1769
    %2533 = vmatprep.subr.bf16.mxu0 0
    %2534 = vmatpush1.bf16.msra.mxu0 %v1770
    %2535 = vmatprep.subr.bf16.mxu0 0
    %2536 = vmatpush1.bf16.msra.mxu0 %v1771
    %2537 = vmatprep.subr.bf16.mxu0 0
    %2538 = vmatpush1.bf16.msra.mxu0 %v1772
    %2539 = vmatprep.subr.bf16.mxu0 0
    %2540 = vmatpush1.bf16.msra.mxu0 %v1773
    %2541 = vmatprep.subr.bf16.mxu0 0
    %2542 = vmatpush1.bf16.msra.mxu0 %v1774
    %2543 = vmatprep.subr.bf16.mxu0 0
    %2544 = vmatpush1.bf16.msra.mxu0 %v1775
    %2545 = vmatprep.subr.bf16.mxu0 0
    %2546 = vmatpush1.bf16.msra.mxu0 %v1776
    %2547 = vmatprep.subr.bf16.mxu0 0
    %2548 = vmatpush1.bf16.msra.mxu0 %v1777
    %2549 = vmatprep.subr.bf16.mxu0 0
    %2550 = vmatpush1.bf16.msra.mxu0 %v1778
    %2551 = vmatprep.subr.bf16.mxu0 0
    %2552 = vmatpush1.bf16.msra.mxu0 %v1779
    %2553 = vmatprep.subr.bf16.mxu0 0
    %2554 = vmatpush1.bf16.msra.mxu0 %v1780
    %2555 = vmatprep.subr.bf16.mxu0 0
    %2556 = vmatpush1.bf16.msra.mxu0 %v1781
    %2557 = vmatprep.mubr.bf16.mxu0 %v640
    %2558 = vmatmul.mubr.bf16.gmra.mrb[0].mxu0 %v639
    %v2559 = vpop.f32.mrb[0].mxu0
    %v2560 = vadd.f32 %v2519, %v2559
    %v2561 = vpop.f32.mrb[0].mxu0
    %v2562 = vpop.f32.mrb[0].mxu0
    %v2563 = vadd.f32 %v2522, %v2562
    %v2564 = vpop.f32.mrb[0].mxu0
    %2565 = vdwg.mxu0
    %2566 = vmatprep.subr.bf16.mxu0 0
    %2567 = vmatpush1.bf16.msra.mxu0 %v1782
    %2568 = vmatprep.subr.bf16.mxu0 0
    %2569 = vmatpush1.bf16.msra.mxu0 %v1783
    %2570 = vmatprep.subr.bf16.mxu0 0
    %2571 = vmatpush1.bf16.msra.mxu0 %v1784
    %2572 = vmatprep.subr.bf16.mxu0 0
    %2573 = vmatpush1.bf16.msra.mxu0 %v1785
    %2574 = vmatprep.subr.bf16.mxu0 0
    %2575 = vmatpush1.bf16.msra.mxu0 %v1786
    %2576 = vmatprep.subr.bf16.mxu0 0
    %2577 = vmatpush1.bf16.msra.mxu0 %v1787
    %2578 = vmatprep.subr.bf16.mxu0 0
    %2579 = vmatpush1.bf16.msra.mxu0 %v1788
    %2580 = vmatprep.subr.bf16.mxu0 0
    %2581 = vmatpush1.bf16.msra.mxu0 %v1789
    %2582 = vmatprep.subr.bf16.mxu0 0
    %2583 = vmatpush1.bf16.msra.mxu0 %v1790
    %2584 = vmatprep.subr.bf16.mxu0 0
    %2585 = vmatpush1.bf16.msra.mxu0 %v1791
    %2586 = vmatprep.subr.bf16.mxu0 0
    %2587 = vmatpush1.bf16.msra.mxu0 %v1792
    %2588 = vmatprep.subr.bf16.mxu0 0
    %2589 = vmatpush1.bf16.msra.mxu0 %v1793
    %2590 = vmatprep.subr.bf16.mxu0 0
    %2591 = vmatpush1.bf16.msra.mxu0 %v1794
    %2592 = vmatprep.subr.bf16.mxu0 0
    %2593 = vmatpush1.bf16.msra.mxu0 %v1795
    %2594 = vmatprep.subr.bf16.mxu0 0
    %2595 = vmatpush1.bf16.msra.mxu0 %v1796
    %2596 = vmatprep.subr.bf16.mxu0 0
    %2597 = vmatpush1.bf16.msra.mxu0 %v1797
    %2598 = vmatprep.mubr.bf16.mxu0 %v642
    %2599 = vmatmul.mubr.bf16.gmra.mrb[0].mxu0 %v641
    %v2600 = vpop.f32.mrb[0].mxu0
    %v2601 = vadd.f32 %v2560, %v2600
    %v2602 = vpop.f32.mrb[0].mxu0
    %v2603 = vpop.f32.mrb[0].mxu0
    %v2604 = vadd.f32 %v2563, %v2603
    %v2605 = vpop.f32.mrb[0].mxu0
    %2606 = vdwg.mxu0
    %2607 = vmatprep.subr.bf16.mxu0 0
    %2608 = vmatpush1.bf16.msra.mxu0 %v1798
    %2609 = vmatprep.subr.bf16.mxu0 0
    %2610 = vmatpush1.bf16.msra.mxu0 %v2031
    %2611 = vmatprep.subr.bf16.mxu0 0
    %2612 = vmatpush1.bf16.msra.mxu0 0
    %2613 = vmatprep.subr.bf16.mxu0 0
    %2614 = vmatpush1.bf16.msra.mxu0 0
    %2615 = vmatprep.subr.bf16.mxu0 0
    %2616 = vmatpush1.bf16.msra.mxu0 0
    %2617 = vmatprep.subr.bf16.mxu0 0
    %2618 = vmatpush1.bf16.msra.mxu0 0
    %2619 = vmatprep.subr.bf16.mxu0 0
    %2620 = vmatpush1.bf16.msra.mxu0 0
    %2621 = vmatprep.subr.bf16.mxu0 0
    %2622 = vmatpush1.bf16.msra.mxu0 0
    %2623 = vmatprep.subr.bf16.mxu0 0
    %2624 = vmatpush1.bf16.msra.mxu0 0
    %2625 = vmatprep.subr.bf16.mxu0 0
    %2626 = vmatpush1.bf16.msra.mxu0 0
    %2627 = vmatprep.subr.bf16.mxu0 0
    %2628 = vmatpush1.bf16.msra.mxu0 0
    %2629 = vmatprep.subr.bf16.mxu0 0
    %2630 = vmatpush1.bf16.msra.mxu0 0
    %2631 = vmatprep.subr.bf16.mxu0 0
    %2632 = vmatpush1.bf16.msra.mxu0 0
    %2633 = vmatprep.subr.bf16.mxu0 0
    %2634 = vmatpush1.bf16.msra.mxu0 0
    %2635 = vmatprep.subr.bf16.mxu0 0
    %2636 = vmatpush1.bf16.msra.mxu0 0
    %2637 = vmatprep.subr.bf16.mxu0 0
    %2638 = vmatpush1.bf16.msra.mxu0 0
    %2639 = vmatprep.mubr.bf16.mxu0 0
    %2640 = vmatmul.mubr.bf16.gmra.mrb[0].mxu0 %v2027
    %v2641 = vpop.f32.mrb[0].mxu0
    %v2642 = vadd.f32 %v2601, %v2641
    %v2643 = vpop.f32.mrb[0].mxu0
    %v2644 = vpop.f32.mrb[0].mxu0
    %v2645 = vadd.f32 %v2604, %v2644
    %v2646 = vpop.f32.mrb[0].mxu0
    %2647 = vdwg.mxu0
    %v2648 = vtanh.pop %v2642
    %v2649 = vtanh.pop %v2645
    %v2650 = vld [vmem:[%s4] sm:$0xff]
    %v2651 = vld [vmem:[%s4 + $0x8] sm:$0xff]
    %v2652 = vld [vmem:[%s5] sm:$0x1]
    %v2654 = vlaneseq
    %v2655 = vshrl.u32 %v2654, 7
    %v2656 = vsub.s32 0, %v2655
    %v2657 = vrot.slane %v2652, %v2656
    %vm2659 = vcmask 130048
    %v2661 = vsel %vm2659, %v2648, 0
    %v2664 = vsel %vm2659, %v2649, 0
    %2666 = vmatprep.subr.mxu0 0.0
    %2667 = vmatpush1.msra.mxu0 %v2650
    %2668 = vmatprep.subr.mxu0 0.0
    %2669 = vmatpush1.msra.mxu0 %v2651
    %2670 = vmatprep.subr.mxu0 0.0
    %2671 = vmatpush1.msra.mxu0 0.0
    %2672 = vmatprep.subr.mxu0 0.0
    %2673 = vmatpush1.msra.mxu0 0.0
    %2674 = vmatprep.subr.mxu0 0.0
    %2675 = vmatpush1.msra.mxu0 0.0
    %2676 = vmatprep.subr.mxu0 0.0
    %2677 = vmatpush1.msra.mxu0 0.0
    %2678 = vmatprep.subr.mxu0 0.0
    %2679 = vmatpush1.msra.mxu0 0.0
    %2680 = vmatprep.subr.mxu0 0.0
    %2681 = vmatpush1.msra.mxu0 0.0
    %2682 = vmatprep.subr.mxu0 0.0
    %2683 = vmatpush1.msra.mxu0 0.0
    %2684 = vmatprep.subr.mxu0 0.0
    %2685 = vmatpush1.msra.mxu0 0.0
    %2686 = vmatprep.subr.mxu0 0.0
    %2687 = vmatpush1.msra.mxu0 0.0
    %2688 = vmatprep.subr.mxu0 0.0
    %2689 = vmatpush1.msra.mxu0 0.0
    %2690 = vmatprep.subr.mxu0 0.0
    %2691 = vmatpush1.msra.mxu0 0.0
    %2692 = vmatprep.subr.mxu0 0.0
    %2693 = vmatpush1.msra.mxu0 0.0
    %2694 = vmatprep.subr.mxu0 0.0
    %2695 = vmatpush1.msra.mxu0 0.0
    %2696 = vmatprep.subr.mxu0 0.0
    %2697 = vmatpush1.msra.mxu0 0.0
    %2698 = vmatprep.subr.mxu0 0.0
    %2699 = vmatpush1.msra.mxu0 0.0
    %2700 = vmatprep.subr.mxu0 0.0
    %2701 = vmatpush1.msra.mxu0 0.0
    %2702 = vmatprep.subr.mxu0 0.0
    %2703 = vmatpush1.msra.mxu0 0.0
    %2704 = vmatprep.subr.mxu0 0.0
    %2705 = vmatpush1.msra.mxu0 0.0
    %2706 = vmatprep.subr.mxu0 0.0
    %2707 = vmatpush1.msra.mxu0 0.0
    %2708 = vmatprep.subr.mxu0 0.0
    %2709 = vmatpush1.msra.mxu0 0.0
    %2710 = vmatprep.subr.mxu0 0.0
    %2711 = vmatpush1.msra.mxu0 0.0
    %2712 = vmatprep.subr.mxu0 0.0
    %2713 = vmatpush1.msra.mxu0 0.0
    %2714 = vmatprep.subr.mxu0 0.0
    %2715 = vmatpush1.msra.mxu0 0.0
    %2716 = vmatprep.subr.mxu0 0.0
    %2717 = vmatpush1.msra.mxu0 0.0
    %2718 = vmatprep.subr.mxu0 0.0
    %2719 = vmatpush1.msra.mxu0 0.0
    %2720 = vmatprep.subr.mxu0 0.0
    %2721 = vmatpush1.msra.mxu0 0.0
    %2722 = vmatprep.subr.mxu0 0.0
    %2723 = vmatpush1.msra.mxu0 0.0
    %2724 = vmatprep.subr.mxu0 0.0
    %2725 = vmatpush1.msra.mxu0 0.0
    %2726 = vmatprep.subr.mxu0 0.0
    %2727 = vmatpush1.msra.mxu0 0.0
    %2728 = vmatprep.subr.mxu0 0.0
    %2729 = vmatpush1.msra.mxu0 0.0
    %2730 = vmatprep.mubr.f32.mxu0 0.0
    %2731 = vmatmul.mubr.f32.gmra.mrb[0].mxu0 %v2661
    %v2732 = vpop.f32.mrb[0].mxu0
    %v2733 = vadd.f32 %v2657, %v2732
    %v2734 = vpop.f32.mrb[0].mxu0
    %2735 = vmatprep.mubr.f32.mxu0 0.0
    %2736 = vmatmul.mubr.f32.gmra.mrb[0].mxu0 %v2664
    %v2737 = vpop.f32.mrb[0].mxu0
    %v2738 = vadd.f32 %v2657, %v2737
    %v2739 = vpop.f32.mrb[0].mxu0
    %2740 = vdwg.mxu0
    %2741 = vst.msk [vmem:[%s11] sm:$0xff] %vm2659, %v2733
    %2742 = vst.msk [vmem:[%s11 + $0x8] sm:$0xff] %vm2659, %v2738
    %v2743 = vld [vmem:[%s1] sm:$0xff]
    %v2744 = vld [vmem:[%s1 + $0x8] sm:$0xff]
    %v2745 = vmul.f32 %v2733, 0.5
    %v2746 = vmul.f32 %v2738, 0.5
    %v2747 = vmul.f32 %v2745, 1.442695
    %v2748 = vpow.pop %v2747
    %v2749 = vmul.f32 %v2746, 1.442695
    %v2750 = vpow.pop %v2749
    %2753 = vrot.lane.b32.xlu0 %v2748, 120
    %v2754 = vpop.permute.xlu0 %2753
    %2755 = vrot.lane.b32.xlu0 %v2750, 120
    %v2756 = vpop.permute.xlu0 %2755
    %v2759 = vmul.f32 %v2743, %v2754
    %v2760 = vmul.f32 %v2744, %v2756
    %v2761 = vadd.f32 %v2733, %v2759
    %v2762 = vadd.f32 %v2738, %v2760
    %v2763 = vtanh.pop %v2761
    %v2764 = vtanh.pop %v2762
    %v2765 = vld [vmem:[%s6] sm:$0xff]
    %v2766 = vld [vmem:[%s7] sm:$0x1]
    %v2768 = vlaneseq
    %v2769 = vshrl.u32 %v2768, 7
    %v2770 = vsub.s32 0, %v2769
    %v2771 = vrot.slane %v2766, %v2770
    %vm2773 = vcmask 64512
    %v2775 = vsel %vm2773, %v2763, 0
    %v2778 = vsel %vm2773, %v2764, 0
    %2780 = vmatprep.subr.mxu0 0.0
    %2781 = vmatpush1.msra.mxu0 %v2765
    %2782 = vmatprep.subr.mxu0 0.0
    %2783 = vmatpush1.msra.mxu0 0.0
    %2784 = vmatprep.subr.mxu0 0.0
    %2785 = vmatpush1.msra.mxu0 0.0
    %2786 = vmatprep.subr.mxu0 0.0
    %2787 = vmatpush1.msra.mxu0 0.0
    %2788 = vmatprep.subr.mxu0 0.0
    %2789 = vmatpush1.msra.mxu0 0.0
    %2790 = vmatprep.subr.mxu0 0.0
    %2791 = vmatpush1.msra.mxu0 0.0
    %2792 = vmatprep.subr.mxu0 0.0
    %2793 = vmatpush1.msra.mxu0 0.0
    %2794 = vmatprep.subr.mxu0 0.0
    %2795 = vmatpush1.msra.mxu0 0.0
    %2796 = vmatprep.subr.mxu0 0.0
    %2797 = vmatpush1.msra.mxu0 0.0
    %2798 = vmatprep.subr.mxu0 0.0
    %2799 = vmatpush1.msra.mxu0 0.0
    %2800 = vmatprep.subr.mxu0 0.0
    %2801 = vmatpush1.msra.mxu0 0.0
    %2802 = vmatprep.subr.mxu0 0.0
    %2803 = vmatpush1.msra.mxu0 0.0
    %2804 = vmatprep.subr.mxu0 0.0
    %2805 = vmatpush1.msra.mxu0 0.0
    %2806 = vmatprep.subr.mxu0 0.0
    %2807 = vmatpush1.msra.mxu0 0.0
    %2808 = vmatprep.subr.mxu0 0.0
    %2809 = vmatpush1.msra.mxu0 0.0
    %2810 = vmatprep.subr.mxu0 0.0
    %2811 = vmatpush1.msra.mxu0 0.0
    %2812 = vmatprep.subr.mxu0 0.0
    %2813 = vmatpush1.msra.mxu0 0.0
    %2814 = vmatprep.subr.mxu0 0.0
    %2815 = vmatpush1.msra.mxu0 0.0
    %2816 = vmatprep.subr.mxu0 0.0
    %2817 = vmatpush1.msra.mxu0 0.0
    %2818 = vmatprep.subr.mxu0 0.0
    %2819 = vmatpush1.msra.mxu0 0.0
    %2820 = vmatprep.subr.mxu0 0.0
    %2821 = vmatpush1.msra.mxu0 0.0
    %2822 = vmatprep.subr.mxu0 0.0
    %2823 = vmatpush1.msra.mxu0 0.0
    %2824 = vmatprep.subr.mxu0 0.0
    %2825 = vmatpush1.msra.mxu0 0.0
    %2826 = vmatprep.subr.mxu0 0.0
    %2827 = vmatpush1.msra.mxu0 0.0
    %2828 = vmatprep.subr.mxu0 0.0
    %2829 = vmatpush1.msra.mxu0 0.0
    %2830 = vmatprep.subr.mxu0 0.0
    %2831 = vmatpush1.msra.mxu0 0.0
    %2832 = vmatprep.subr.mxu0 0.0
    %2833 = vmatpush1.msra.mxu0 0.0
    %2834 = vmatprep.subr.mxu0 0.0
    %2835 = vmatpush1.msra.mxu0 0.0
    %2836 = vmatprep.subr.mxu0 0.0
    %2837 = vmatpush1.msra.mxu0 0.0
    %2838 = vmatprep.subr.mxu0 0.0
    %2839 = vmatpush1.msra.mxu0 0.0
    %2840 = vmatprep.subr.mxu0 0.0
    %2841 = vmatpush1.msra.mxu0 0.0
    %2842 = vmatprep.subr.mxu0 0.0
    %2843 = vmatpush1.msra.mxu0 0.0
    %2844 = vmatprep.mubr.f32.mxu0 0.0
    %2845 = vmatmul.mubr.f32.gmra.mrb[0].mxu0 %v2775
    %v2846 = vpop.f32.mrb[0].mxu0
    %v2847 = vadd.f32 %v2771, %v2846
    %v2848 = vpop.f32.mrb[0].mxu0
    %2849 = vmatprep.mubr.f32.mxu0 0.0
    %2850 = vmatmul.mubr.f32.gmra.mrb[0].mxu0 %v2778
    %v2851 = vpop.f32.mrb[0].mxu0
    %v2852 = vadd.f32 %v2771, %v2851
    %v2853 = vpop.f32.mrb[0].mxu0
    %2854 = vdwg.mxu0
    %v2855 = vmax.f32 %v2847, 0.0
    %v2856 = vmax.f32 %v2852, 0.0
    %v2857 = vpack.c.bf16 %v2856, %v2855
    %v2858 = vld [vmem:[%s8] sm:$0xff]
    %v2859 = vld [vmem:[%s8 + $0x8] sm:$0xff]
    %v2860 = vld [vmem:[%s8 + $0x10] sm:$0xff]
    %v2861 = vld [vmem:[%s8 + $0x18] sm:$0xff]
    %v2862 = vld [vmem:[%s8 + $0x20] sm:$0xff]
    %v2863 = vld [vmem:[%s8 + $0x28] sm:$0xff]
    %v2864 = vld [vmem:[%s8 + $0x30] sm:$0xff]
    %v2865 = vld [vmem:[%s8 + $0x38] sm:$0xff]
    %v2866 = vld [vmem:[%s8 + $0x40] sm:$0xff]
    %v2867 = vld [vmem:[%s8 + $0x48] sm:$0xff]
    %v2868 = vld [vmem:[%s8 + $0x50] sm:$0xff]
    %v2869 = vld [vmem:[%s8 + $0x58] sm:$0xff]
    %v2870 = vld [vmem:[%s8 + $0x60] sm:$0xff]
    %v2871 = vld [vmem:[%s8 + $0x68] sm:$0xff]
    %v2872 = vld [vmem:[%s8 + $0x70] sm:$0xf]
    %v2873 = vld [vmem:[%s8 + $0x74] sm:$0xff]
    %v2874 = vld [vmem:[%s8 + $0x7c] sm:$0xff]
    %v2875 = vld [vmem:[%s8 + $0x84] sm:$0xff]
    %v2876 = vld [vmem:[%s8 + $0x8c] sm:$0xff]
    %v2877 = vld [vmem:[%s8 + $0x94] sm:$0xff]
    %v2878 = vld [vmem:[%s8 + $0x9c] sm:$0xff]
    %v2879 = vld [vmem:[%s8 + $0xa4] sm:$0xff]
    %v2880 = vld [vmem:[%s8 + $0xac] sm:$0xff]
    %v2881 = vld [vmem:[%s8 + $0xb4] sm:$0xff]
    %v2882 = vld [vmem:[%s8 + $0xbc] sm:$0xff]
    %v2883 = vld [vmem:[%s8 + $0xc4] sm:$0xff]
    %v2884 = vld [vmem:[%s8 + $0xcc] sm:$0xff]
    %v2885 = vld [vmem:[%s8 + $0xd4] sm:$0xff]
    %v2886 = vld [vmem:[%s8 + $0xdc] sm:$0xff]
    %v2887 = vld [vmem:[%s8 + $0xe4] sm:$0xf]
    %v2888 = vld [vmem:[%s9] sm:$0xff]
    %v2889 = vld [vmem:[%s9 + $0x8] sm:$0xff]
    %v2890 = vld [vmem:[%s9 + $0x10] sm:$0xff]
    %v2891 = vld [vmem:[%s9 + $0x18] sm:$0x1f]
    %v2896 = vlaneseq
    %v2897 = vshrl.u32 %v2896, 7
    %v2898 = vsub.s32 0, %v2897
    %v2899 = vrot.slane %v2888, %v2898
    %v2900 = vlaneseq
    %v2901 = vshrl.u32 %v2900, 7
    %v2902 = vsub.s32 1, %v2901
    %v2903 = vrot.slane %v2888, %v2902
    %v2904 = vlaneseq
    %v2905 = vshrl.u32 %v2904, 7
    %v2906 = vsub.s32 2, %v2905
    %v2907 = vrot.slane %v2888, %v2906
    %v2908 = vlaneseq
    %v2909 = vshrl.u32 %v2908, 7
    %v2910 = vsub.s32 3, %v2909
    %v2911 = vrot.slane %v2888, %v2910
    %v2912 = vlaneseq
    %v2913 = vshrl.u32 %v2912, 7
    %v2914 = vsub.s32 4, %v2913
    %v2915 = vrot.slane %v2888, %v2914
    %v2916 = vlaneseq
    %v2917 = vshrl.u32 %v2916, 7
    %v2918 = vsub.s32 5, %v2917
    %v2919 = vrot.slane %v2888, %v2918
    %v2920 = vlaneseq
    %v2921 = vshrl.u32 %v2920, 7
    %v2922 = vsub.s32 6, %v2921
    %v2923 = vrot.slane %v2888, %v2922
    %v2924 = vlaneseq
    %v2925 = vshrl.u32 %v2924, 7
    %v2926 = vsub.s32 7, %v2925
    %v2927 = vrot.slane %v2888, %v2926
    %v2928 = vlaneseq
    %v2929 = vshrl.u32 %v2928, 7
    %v2930 = vsub.s32 0, %v2929
    %v2931 = vrot.slane %v2889, %v2930
    %v2932 = vlaneseq
    %v2933 = vshrl.u32 %v2932, 7
    %v2934 = vsub.s32 1, %v2933
    %v2935 = vrot.slane %v2889, %v2934
    %v2936 = vlaneseq
    %v2937 = vshrl.u32 %v2936, 7
    %v2938 = vsub.s32 2, %v2937
    %v2939 = vrot.slane %v2889, %v2938
    %v2940 = vlaneseq
    %v2941 = vshrl.u32 %v2940, 7
    %v2942 = vsub.s32 3, %v2941
    %v2943 = vrot.slane %v2889, %v2942
    %v2944 = vlaneseq
    %v2945 = vshrl.u32 %v2944, 7
    %v2946 = vsub.s32 4, %v2945
    %v2947 = vrot.slane %v2889, %v2946
    %v2948 = vlaneseq
    %v2949 = vshrl.u32 %v2948, 7
    %v2950 = vsub.s32 5, %v2949
    %v2951 = vrot.slane %v2889, %v2950
    %v2952 = vlaneseq
    %v2953 = vshrl.u32 %v2952, 7
    %v2954 = vsub.s32 6, %v2953
    %v2955 = vrot.slane %v2889, %v2954
    %v2956 = vlaneseq
    %v2957 = vshrl.u32 %v2956, 7
    %v2958 = vsub.s32 7, %v2957
    %v2959 = vrot.slane %v2889, %v2958
    %v2960 = vlaneseq
    %v2961 = vshrl.u32 %v2960, 7
    %v2962 = vsub.s32 0, %v2961
    %v2963 = vrot.slane %v2890, %v2962
    %v2964 = vlaneseq
    %v2965 = vshrl.u32 %v2964, 7
    %v2966 = vsub.s32 1, %v2965
    %v2967 = vrot.slane %v2890, %v2966
    %v2968 = vlaneseq
    %v2969 = vshrl.u32 %v2968, 7
    %v2970 = vsub.s32 2, %v2969
    %v2971 = vrot.slane %v2890, %v2970
    %v2972 = vlaneseq
    %v2973 = vshrl.u32 %v2972, 7
    %v2974 = vsub.s32 3, %v2973
    %v2975 = vrot.slane %v2890, %v2974
    %v2976 = vlaneseq
    %v2977 = vshrl.u32 %v2976, 7
    %v2978 = vsub.s32 4, %v2977
    %v2979 = vrot.slane %v2890, %v2978
    %v2980 = vlaneseq
    %v2981 = vshrl.u32 %v2980, 7
    %v2982 = vsub.s32 5, %v2981
    %v2983 = vrot.slane %v2890, %v2982
    %v2984 = vlaneseq
    %v2985 = vshrl.u32 %v2984, 7
    %v2986 = vsub.s32 6, %v2985
    %v2987 = vrot.slane %v2890, %v2986
    %v2988 = vlaneseq
    %v2989 = vshrl.u32 %v2988, 7
    %v2990 = vsub.s32 7, %v2989
    %v2991 = vrot.slane %v2890, %v2990
    %v2992 = vlaneseq
    %v2993 = vshrl.u32 %v2992, 7
    %v2994 = vsub.s32 0, %v2993
    %v2995 = vrot.slane %v2891, %v2994
    %v2996 = vlaneseq
    %v2997 = vshrl.u32 %v2996, 7
    %v2998 = vsub.s32 1, %v2997
    %v2999 = vrot.slane %v2891, %v2998
    %v3000 = vlaneseq
    %v3001 = vshrl.u32 %v3000, 7
    %v3002 = vsub.s32 2, %v3001
    %v3003 = vrot.slane %v2891, %v3002
    %v3004 = vlaneseq
    %v3005 = vshrl.u32 %v3004, 7
    %v3006 = vsub.s32 3, %v3005
    %v3007 = vrot.slane %v2891, %v3006
    %v3008 = vlaneseq
    %v3009 = vshrl.u32 %v3008, 7
    %v3010 = vsub.s32 4, %v3009
    %v3011 = vrot.slane %v2891, %v3010
    %v3071 = vunpack.c.l.b16 %v2858
    %v3072 = vunpack.c.h.b16 %v2858
    %v3073 = vunpack.c.l.b16 %v2859
    %v3074 = vunpack.c.h.b16 %v2859
    %v3075 = vunpack.c.l.b16 %v2860
    %v3076 = vunpack.c.h.b16 %v2860
    %v3077 = vunpack.c.l.b16 %v2861
    %v3078 = vunpack.c.h.b16 %v2861
    %v3079 = vunpack.c.l.b16 %v2862
    %v3080 = vunpack.c.h.b16 %v2862
    %v3081 = vunpack.c.l.b16 %v2863
    %v3082 = vunpack.c.h.b16 %v2863
    %v3083 = vunpack.c.l.b16 %v2864
    %v3084 = vunpack.c.h.b16 %v2864
    %v3085 = vunpack.c.l.b16 %v2865
    %v3086 = vunpack.c.h.b16 %v2865
    %v3087 = vunpack.c.l.b16 %v2866
    %v3088 = vunpack.c.h.b16 %v2866
    %v3089 = vunpack.c.l.b16 %v2867
    %v3090 = vunpack.c.h.b16 %v2867
    %v3091 = vunpack.c.l.b16 %v2868
    %v3092 = vunpack.c.h.b16 %v2868
    %v3093 = vunpack.c.l.b16 %v2869
    %v3094 = vunpack.c.h.b16 %v2869
    %v3095 = vunpack.c.l.b16 %v2870
    %v3096 = vunpack.c.h.b16 %v2870
    %v3097 = vunpack.c.l.b16 %v2871
    %v3098 = vunpack.c.h.b16 %v2871
    %v3099 = vunpack.c.l.b16 %v2872
    %v3100 = vunpack.c.l.b16 %v2873
    %v3101 = vunpack.c.h.b16 %v2873
    %v3102 = vunpack.c.l.b16 %v2874
    %v3103 = vunpack.c.h.b16 %v2874
    %v3104 = vunpack.c.l.b16 %v2875
    %v3105 = vunpack.c.h.b16 %v2875
    %v3106 = vunpack.c.l.b16 %v2876
    %v3107 = vunpack.c.h.b16 %v2876
    %v3108 = vunpack.c.l.b16 %v2877
    %v3109 = vunpack.c.h.b16 %v2877
    %v3110 = vunpack.c.l.b16 %v2878
    %v3111 = vunpack.c.h.b16 %v2878
    %v3112 = vunpack.c.l.b16 %v2879
    %v3113 = vunpack.c.h.b16 %v2879
    %v3114 = vunpack.c.l.b16 %v2880
    %v3115 = vunpack.c.h.b16 %v2880
    %v3116 = vunpack.c.l.b16 %v2881
    %v3117 = vunpack.c.h.b16 %v2881
    %v3118 = vunpack.c.l.b16 %v2882
    %v3119 = vunpack.c.h.b16 %v2882
    %v3120 = vunpack.c.l.b16 %v2883
    %v3121 = vunpack.c.h.b16 %v2883
    %v3122 = vunpack.c.l.b16 %v2884
    %v3123 = vunpack.c.h.b16 %v2884
    %v3124 = vunpack.c.l.b16 %v2885
    %v3125 = vunpack.c.h.b16 %v2885
    %v3126 = vunpack.c.l.b16 %v2886
    %v3127 = vunpack.c.h.b16 %v2886
    %v3128 = vunpack.c.l.b16 %v2887
    %v3129 = vpack.c.b16 %v3100, %v3071
    %v3130 = vpack.c.b16 %v3101, %v3072
    %v3131 = vpack.c.b16 %v3102, %v3073
    %v3132 = vpack.c.b16 %v3103, %v3074
    %v3133 = vpack.c.b16 %v3104, %v3075
    %v3134 = vpack.c.b16 %v3105, %v3076
    %v3135 = vpack.c.b16 %v3106, %v3077
    %v3136 = vpack.c.b16 %v3107, %v3078
    %v3137 = vpack.c.b16 %v3108, %v3079
    %v3138 = vpack.c.b16 %v3109, %v3080
    %v3139 = vpack.c.b16 %v3110, %v3081
    %v3140 = vpack.c.b16 %v3111, %v3082
    %v3141 = vpack.c.b16 %v3112, %v3083
    %v3142 = vpack.c.b16 %v3113, %v3084
    %v3143 = vpack.c.b16 %v3114, %v3085
    %v3144 = vpack.c.b16 %v3115, %v3086
    %v3145 = vpack.c.b16 %v3116, %v3087
    %v3146 = vpack.c.b16 %v3117, %v3088
    %v3147 = vpack.c.b16 %v3118, %v3089
    %v3148 = vpack.c.b16 %v3119, %v3090
    %v3149 = vpack.c.b16 %v3120, %v3091
    %v3150 = vpack.c.b16 %v3121, %v3092
    %v3151 = vpack.c.b16 %v3122, %v3093
    %v3152 = vpack.c.b16 %v3123, %v3094
    %v3153 = vpack.c.b16 %v3124, %v3095
    %v3154 = vpack.c.b16 %v3125, %v3096
    %v3155 = vpack.c.b16 %v3126, %v3097
    %v3156 = vpack.c.b16 %v3127, %v3098
    %v3157 = vpack.c.b16 %v3128, %v3099
    %v3188 = vsel %vm2659, %v2857, 0
    %3190 = vmatprep.subr.bf16.mxu0 %v3130
    %3191 = vmatpush1.bf16.msra.mxu0 %v3129
    %3192 = vmatprep.subr.bf16.mxu0 0
    %3193 = vmatpush1.bf16.msra.mxu0 0
    %3194 = vmatprep.subr.bf16.mxu0 0
    %3195 = vmatpush1.bf16.msra.mxu0 0
    %3196 = vmatprep.subr.bf16.mxu0 0
    %3197 = vmatpush1.bf16.msra.mxu0 0
    %3198 = vmatprep.subr.bf16.mxu0 0
    %3199 = vmatpush1.bf16.msra.mxu0 0
    %3200 = vmatprep.subr.bf16.mxu0 0
    %3201 = vmatpush1.bf16.msra.mxu0 0
    %3202 = vmatprep.subr.bf16.mxu0 0
    %3203 = vmatpush1.bf16.msra.mxu0 0
    %3204 = vmatprep.subr.bf16.mxu0 0
    %3205 = vmatpush1.bf16.msra.mxu0 0
    %3206 = vmatprep.subr.bf16.mxu0 0
    %3207 = vmatpush1.bf16.msra.mxu0 0
    %3208 = vmatprep.subr.bf16.mxu0 0
    %3209 = vmatpush1.bf16.msra.mxu0 0
    %3210 = vmatprep.subr.bf16.mxu0 0
    %3211 = vmatpush1.bf16.msra.mxu0 0
    %3212 = vmatprep.subr.bf16.mxu0 0
    %3213 = vmatpush1.bf16.msra.mxu0 0
    %3214 = vmatprep.subr.bf16.mxu0 0
    %3215 = vmatpush1.bf16.msra.mxu0 0
    %3216 = vmatprep.subr.bf16.mxu0 0
    %3217 = vmatpush1.bf16.msra.mxu0 0
    %3218 = vmatprep.subr.bf16.mxu0 0
    %3219 = vmatpush1.bf16.msra.mxu0 0
    %3220 = vmatprep.subr.bf16.mxu0 0
    %3221 = vmatpush1.bf16.msra.mxu0 0
    %3222 = vmatprep.mubr.bf16.mxu0 0
    %3223 = vmatmul.mubr.bf16.gmra.mrb[0].mxu0 %v3188
    %v3224 = vpop.f32.mrb[0].mxu0
    %v3225 = vadd.f32 %v2899, %v3224
    %v3226 = vpop.f32.mrb[0].mxu0
    %v3227 = vadd.f32 %v2903, %v3226
    %v3228 = vpop.f32.mrb[0].mxu0
    %v3229 = vadd.f32 %v2899, %v3228
    %v3230 = vpop.f32.mrb[0].mxu0
    %v3231 = vadd.f32 %v2903, %v3230
    %3232 = vdwg.mxu0
    %3233 = vmatprep.subr.bf16.mxu0 %v3132
    %3234 = vmatpush1.bf16.msra.mxu0 %v3131
    %3235 = vmatprep.subr.bf16.mxu0 0
    %3236 = vmatpush1.bf16.msra.mxu0 0
    %3237 = vmatprep.subr.bf16.mxu0 0
    %3238 = vmatpush1.bf16.msra.mxu0 0
    %3239 = vmatprep.subr.bf16.mxu0 0
    %3240 = vmatpush1.bf16.msra.mxu0 0
    %3241 = vmatprep.subr.bf16.mxu0 0
    %3242 = vmatpush1.bf16.msra.mxu0 0
    %3243 = vmatprep.subr.bf16.mxu0 0
    %3244 = vmatpush1.bf16.msra.mxu0 0
    %3245 = vmatprep.subr.bf16.mxu0 0
    %3246 = vmatpush1.bf16.msra.mxu0 0
    %3247 = vmatprep.subr.bf16.mxu0 0
    %3248 = vmatpush1.bf16.msra.mxu0 0
    %3249 = vmatprep.subr.bf16.mxu0 0
    %3250 = vmatpush1.bf16.msra.mxu0 0
    %3251 = vmatprep.subr.bf16.mxu0 0
    %3252 = vmatpush1.bf16.msra.mxu0 0
    %3253 = vmatprep.subr.bf16.mxu0 0
    %3254 = vmatpush1.bf16.msra.mxu0 0
    %3255 = vmatprep.subr.bf16.mxu0 0
    %3256 = vmatpush1.bf16.msra.mxu0 0
    %3257 = vmatprep.subr.bf16.mxu0 0
    %3258 = vmatpush1.bf16.msra.mxu0 0
    %3259 = vmatprep.subr.bf16.mxu0 0
    %3260 = vmatpush1.bf16.msra.mxu0 0
    %3261 = vmatprep.subr.bf16.mxu0 0
    %3262 = vmatpush1.bf16.msra.mxu0 0
    %3263 = vmatprep.subr.bf16.mxu0 0
    %3264 = vmatpush1.bf16.msra.mxu0 0
    %3265 = vmatprep.mubr.bf16.mxu0 0
    %3266 = vmatmul.mubr.bf16.gmra.mrb[0].mxu0 %v3188
    %v3267 = vpop.f32.mrb[0].mxu0
    %v3268 = vadd.f32 %v2907, %v3267
    %v3269 = vpop.f32.mrb[0].mxu0
    %v3270 = vadd.f32 %v2911, %v3269
    %v3271 = vpop.f32.mrb[0].mxu0
    %v3272 = vadd.f32 %v2907, %v3271
    %v3273 = vpop.f32.mrb[0].mxu0
    %v3274 = vadd.f32 %v2911, %v3273
    %3275 = vdwg.mxu0
    %3276 = vmatprep.subr.bf16.mxu0 %v3134
    %3277 = vmatpush1.bf16.msra.mxu0 %v3133
    %3278 = vmatprep.subr.bf16.mxu0 0
    %3279 = vmatpush1.bf16.msra.mxu0 0
    %3280 = vmatprep.subr.bf16.mxu0 0
    %3281 = vmatpush1.bf16.msra.mxu0 0
    %3282 = vmatprep.subr.bf16.mxu0 0
    %3283 = vmatpush1.bf16.msra.mxu0 0
    %3284 = vmatprep.subr.bf16.mxu0 0
    %3285 = vmatpush1.bf16.msra.mxu0 0
    %3286 = vmatprep.subr.bf16.mxu0 0
    %3287 = vmatpush1.bf16.msra.mxu0 0
    %3288 = vmatprep.subr.bf16.mxu0 0
    %3289 = vmatpush1.bf16.msra.mxu0 0
    %3290 = vmatprep.subr.bf16.mxu0 0
    %3291 = vmatpush1.bf16.msra.mxu0 0
    %3292 = vmatprep.subr.bf16.mxu0 0
    %3293 = vmatpush1.bf16.msra.mxu0 0
    %3294 = vmatprep.subr.bf16.mxu0 0
    %3295 = vmatpush1.bf16.msra.mxu0 0
    %3296 = vmatprep.subr.bf16.mxu0 0
    %3297 = vmatpush1.bf16.msra.mxu0 0
    %3298 = vmatprep.subr.bf16.mxu0 0
    %3299 = vmatpush1.bf16.msra.mxu0 0
    %3300 = vmatprep.subr.bf16.mxu0 0
    %3301 = vmatpush1.bf16.msra.mxu0 0
    %3302 = vmatprep.subr.bf16.mxu0 0
    %3303 = vmatpush1.bf16.msra.mxu0 0
    %3304 = vmatprep.subr.bf16.mxu0 0
    %3305 = vmatpush1.bf16.msra.mxu0 0
    %3306 = vmatprep.subr.bf16.mxu0 0
    %3307 = vmatpush1.bf16.msra.mxu0 0
    %3308 = vmatprep.mubr.bf16.mxu0 0
    %3309 = vmatmul.mubr.bf16.gmra.mrb[0].mxu0 %v3188
    %v3310 = vpop.f32.mrb[0].mxu0
    %v3311 = vadd.f32 %v2915, %v3310
    %v3312 = vpop.f32.mrb[0].mxu0
    %v3313 = vadd.f32 %v2919, %v3312
    %v3314 = vpop.f32.mrb[0].mxu0
    %v3315 = vadd.f32 %v2915, %v3314
    %v3316 = vpop.f32.mrb[0].mxu0
    %v3317 = vadd.f32 %v2919, %v3316
    %3318 = vdwg.mxu0
    %3319 = vmatprep.subr.bf16.mxu0 %v3136
    %3320 = vmatpush1.bf16.msra.mxu0 %v3135
    %3321 = vmatprep.subr.bf16.mxu0 0
    %3322 = vmatpush1.bf16.msra.mxu0 0
    %3323 = vmatprep.subr.bf16.mxu0 0
    %3324 = vmatpush1.bf16.msra.mxu0 0
    %3325 = vmatprep.subr.bf16.mxu0 0
    %3326 = vmatpush1.bf16.msra.mxu0 0
    %3327 = vmatprep.subr.bf16.mxu0 0
    %3328 = vmatpush1.bf16.msra.mxu0 0
    %3329 = vmatprep.subr.bf16.mxu0 0
    %3330 = vmatpush1.bf16.msra.mxu0 0
    %3331 = vmatprep.subr.bf16.mxu0 0
    %3332 = vmatpush1.bf16.msra.mxu0 0
    %3333 = vmatprep.subr.bf16.mxu0 0
    %3334 = vmatpush1.bf16.msra.mxu0 0
    %3335 = vmatprep.subr.bf16.mxu0 0
    %3336 = vmatpush1.bf16.msra.mxu0 0
    %3337 = vmatprep.subr.bf16.mxu0 0
    %3338 = vmatpush1.bf16.msra.mxu0 0
    %3339 = vmatprep.subr.bf16.mxu0 0
    %3340 = vmatpush1.bf16.msra.mxu0 0
    %3341 = vmatprep.subr.bf16.mxu0 0
    %3342 = vmatpush1.bf16.msra.mxu0 0
    %3343 = vmatprep.subr.bf16.mxu0 0
    %3344 = vmatpush1.bf16.msra.mxu0 0
    %3345 = vmatprep.subr.bf16.mxu0 0
    %3346 = vmatpush1.bf16.msra.mxu0 0
    %3347 = vmatprep.subr.bf16.mxu0 0
    %3348 = vmatpush1.bf16.msra.mxu0 0
    %3349 = vmatprep.subr.bf16.mxu0 0
    %3350 = vmatpush1.bf16.msra.mxu0 0
    %3351 = vmatprep.mubr.bf16.mxu0 0
    %3352 = vmatmul.mubr.bf16.gmra.mrb[0].mxu0 %v3188
    %v3353 = vpop.f32.mrb[0].mxu0
    %v3354 = vadd.f32 %v2923, %v3353
    %v3355 = vpop.f32.mrb[0].mxu0
    %v3356 = vadd.f32 %v2927, %v3355
    %v3357 = vpop.f32.mrb[0].mxu0
    %v3358 = vadd.f32 %v2923, %v3357
    %v3359 = vpop.f32.mrb[0].mxu0
    %v3360 = vadd.f32 %v2927, %v3359
    %3361 = vdwg.mxu0
    %3362 = vmatprep.subr.bf16.mxu0 %v3138
    %3363 = vmatpush1.bf16.msra.mxu0 %v3137
    %3364 = vmatprep.subr.bf16.mxu0 0
    %3365 = vmatpush1.bf16.msra.mxu0 0
    %3366 = vmatprep.subr.bf16.mxu0 0
    %3367 = vmatpush1.bf16.msra.mxu0 0
    %3368 = vmatprep.subr.bf16.mxu0 0
    %3369 = vmatpush1.bf16.msra.mxu0 0
    %3370 = vmatprep.subr.bf16.mxu0 0
    %3371 = vmatpush1.bf16.msra.mxu0 0
    %3372 = vmatprep.subr.bf16.mxu0 0
    %3373 = vmatpush1.bf16.msra.mxu0 0
    %3374 = vmatprep.subr.bf16.mxu0 0
    %3375 = vmatpush1.bf16.msra.mxu0 0
    %3376 = vmatprep.subr.bf16.mxu0 0
    %3377 = vmatpush1.bf16.msra.mxu0 0
    %3378 = vmatprep.subr.bf16.mxu0 0
    %3379 = vmatpush1.bf16.msra.mxu0 0
    %3380 = vmatprep.subr.bf16.mxu0 0
    %3381 = vmatpush1.bf16.msra.mxu0 0
    %3382 = vmatprep.subr.bf16.mxu0 0
    %3383 = vmatpush1.bf16.msra.mxu0 0
    %3384 = vmatprep.subr.bf16.mxu0 0
    %3385 = vmatpush1.bf16.msra.mxu0 0
    %3386 = vmatprep.subr.bf16.mxu0 0
    %3387 = vmatpush1.bf16.msra.mxu0 0
    %3388 = vmatprep.subr.bf16.mxu0 0
    %3389 = vmatpush1.bf16.msra.mxu0 0
    %3390 = vmatprep.subr.bf16.mxu0 0
    %3391 = vmatpush1.bf16.msra.mxu0 0
    %3392 = vmatprep.subr.bf16.mxu0 0
    %3393 = vmatpush1.bf16.msra.mxu0 0
    %3394 = vmatprep.mubr.bf16.mxu0 0
    %3395 = vmatmul.mubr.bf16.gmra.mrb[0].mxu0 %v3188
    %v3396 = vpop.f32.mrb[0].mxu0
    %v3397 = vadd.f32 %v2931, %v3396
    %v3398 = vpop.f32.mrb[0].mxu0
    %v3399 = vadd.f32 %v2935, %v3398
    %v3400 = vpop.f32.mrb[0].mxu0
    %v3401 = vadd.f32 %v2931, %v3400
    %v3402 = vpop.f32.mrb[0].mxu0
    %v3403 = vadd.f32 %v2935, %v3402
    %3404 = vdwg.mxu0
    %3405 = vmatprep.subr.bf16.mxu0 %v3140
    %3406 = vmatpush1.bf16.msra.mxu0 %v3139
    %3407 = vmatprep.subr.bf16.mxu0 0
    %3408 = vmatpush1.bf16.msra.mxu0 0
    %3409 = vmatprep.subr.bf16.mxu0 0
    %3410 = vmatpush1.bf16.msra.mxu0 0
    %3411 = vmatprep.subr.bf16.mxu0 0
    %3412 = vmatpush1.bf16.msra.mxu0 0
    %3413 = vmatprep.subr.bf16.mxu0 0
    %3414 = vmatpush1.bf16.msra.mxu0 0
    %3415 = vmatprep.subr.bf16.mxu0 0
    %3416 = vmatpush1.bf16.msra.mxu0 0
    %3417 = vmatprep.subr.bf16.mxu0 0
    %3418 = vmatpush1.bf16.msra.mxu0 0
    %3419 = vmatprep.subr.bf16.mxu0 0
    %3420 = vmatpush1.bf16.msra.mxu0 0
    %3421 = vmatprep.subr.bf16.mxu0 0
    %3422 = vmatpush1.bf16.msra.mxu0 0
    %3423 = vmatprep.subr.bf16.mxu0 0
    %3424 = vmatpush1.bf16.msra.mxu0 0
    %3425 = vmatprep.subr.bf16.mxu0 0
    %3426 = vmatpush1.bf16.msra.mxu0 0
    %3427 = vmatprep.subr.bf16.mxu0 0
    %3428 = vmatpush1.bf16.msra.mxu0 0
    %3429 = vmatprep.subr.bf16.mxu0 0
    %3430 = vmatpush1.bf16.msra.mxu0 0
    %3431 = vmatprep.subr.bf16.mxu0 0
    %3432 = vmatpush1.bf16.msra.mxu0 0
    %3433 = vmatprep.subr.bf16.mxu0 0
    %3434 = vmatpush1.bf16.msra.mxu0 0
    %3435 = vmatprep.subr.bf16.mxu0 0
    %3436 = vmatpush1.bf16.msra.mxu0 0
    %3437 = vmatprep.mubr.bf16.mxu0 0
    %3438 = vmatmul.mubr.bf16.gmra.mrb[0].mxu0 %v3188
    %v3439 = vpop.f32.mrb[0].mxu0
    %v3440 = vadd.f32 %v2939, %v3439
    %v3441 = vpop.f32.mrb[0].mxu0
    %v3442 = vadd.f32 %v2943, %v3441
    %v3443 = vpop.f32.mrb[0].mxu0
    %v3444 = vadd.f32 %v2939, %v3443
    %v3445 = vpop.f32.mrb[0].mxu0
    %v3446 = vadd.f32 %v2943, %v3445
    %3447 = vdwg.mxu0
    %3448 = vmatprep.subr.bf16.mxu0 %v3142
    %3449 = vmatpush1.bf16.msra.mxu0 %v3141
    %3450 = vmatprep.subr.bf16.mxu0 0
    %3451 = vmatpush1.bf16.msra.mxu0 0
    %3452 = vmatprep.subr.bf16.mxu0 0
    %3453 = vmatpush1.bf16.msra.mxu0 0
    %3454 = vmatprep.subr.bf16.mxu0 0
    %3455 = vmatpush1.bf16.msra.mxu0 0
    %3456 = vmatprep.subr.bf16.mxu0 0
    %3457 = vmatpush1.bf16.msra.mxu0 0
    %3458 = vmatprep.subr.bf16.mxu0 0
    %3459 = vmatpush1.bf16.msra.mxu0 0
    %3460 = vmatprep.subr.bf16.mxu0 0
    %3461 = vmatpush1.bf16.msra.mxu0 0
    %3462 = vmatprep.subr.bf16.mxu0 0
    %3463 = vmatpush1.bf16.msra.mxu0 0
    %3464 = vmatprep.subr.bf16.mxu0 0
    %3465 = vmatpush1.bf16.msra.mxu0 0
    %3466 = vmatprep.subr.bf16.mxu0 0
    %3467 = vmatpush1.bf16.msra.mxu0 0
    %3468 = vmatprep.subr.bf16.mxu0 0
    %3469 = vmatpush1.bf16.msra.mxu0 0
    %3470 = vmatprep.subr.bf16.mxu0 0
    %3471 = vmatpush1.bf16.msra.mxu0 0
    %3472 = vmatprep.subr.bf16.mxu0 0
    %3473 = vmatpush1.bf16.msra.mxu0 0
    %3474 = vmatprep.subr.bf16.mxu0 0
    %3475 = vmatpush1.bf16.msra.mxu0 0
    %3476 = vmatprep.subr.bf16.mxu0 0
    %3477 = vmatpush1.bf16.msra.mxu0 0
    %3478 = vmatprep.subr.bf16.mxu0 0
    %3479 = vmatpush1.bf16.msra.mxu0 0
    %3480 = vmatprep.mubr.bf16.mxu0 0
    %3481 = vmatmul.mubr.bf16.gmra.mrb[0].mxu0 %v3188
    %v3482 = vpop.f32.mrb[0].mxu0
    %v3483 = vadd.f32 %v2947, %v3482
    %v3484 = vpop.f32.mrb[0].mxu0
    %v3485 = vadd.f32 %v2951, %v3484
    %v3486 = vpop.f32.mrb[0].mxu0
    %v3487 = vadd.f32 %v2947, %v3486
    %v3488 = vpop.f32.mrb[0].mxu0
    %v3489 = vadd.f32 %v2951, %v3488
    %3490 = vdwg.mxu0
    %3491 = vmatprep.subr.bf16.mxu0 %v3144
    %3492 = vmatpush1.bf16.msra.mxu0 %v3143
    %3493 = vmatprep.subr.bf16.mxu0 0
    %3494 = vmatpush1.bf16.msra.mxu0 0
    %3495 = vmatprep.subr.bf16.mxu0 0
    %3496 = vmatpush1.bf16.msra.mxu0 0
    %3497 = vmatprep.subr.bf16.mxu0 0
    %3498 = vmatpush1.bf16.msra.mxu0 0
    %3499 = vmatprep.subr.bf16.mxu0 0
    %3500 = vmatpush1.bf16.msra.mxu0 0
    %3501 = vmatprep.subr.bf16.mxu0 0
    %3502 = vmatpush1.bf16.msra.mxu0 0
    %3503 = vmatprep.subr.bf16.mxu0 0
    %3504 = vmatpush1.bf16.msra.mxu0 0
    %3505 = vmatprep.subr.bf16.mxu0 0
    %3506 = vmatpush1.bf16.msra.mxu0 0
    %3507 = vmatprep.subr.bf16.mxu0 0
    %3508 = vmatpush1.bf16.msra.mxu0 0
    %3509 = vmatprep.subr.bf16.mxu0 0
    %3510 = vmatpush1.bf16.msra.mxu0 0
    %3511 = vmatprep.subr.bf16.mxu0 0
    %3512 = vmatpush1.bf16.msra.mxu0 0
    %3513 = vmatprep.subr.bf16.mxu0 0
    %3514 = vmatpush1.bf16.msra.mxu0 0
    %3515 = vmatprep.subr.bf16.mxu0 0
    %3516 = vmatpush1.bf16.msra.mxu0 0
    %3517 = vmatprep.subr.bf16.mxu0 0
    %3518 = vmatpush1.bf16.msra.mxu0 0
    %3519 = vmatprep.subr.bf16.mxu0 0
    %3520 = vmatpush1.bf16.msra.mxu0 0
    %3521 = vmatprep.subr.bf16.mxu0 0
    %3522 = vmatpush1.bf16.msra.mxu0 0
    %3523 = vmatprep.mubr.bf16.mxu0 0
    %3524 = vmatmul.mubr.bf16.gmra.mrb[0].mxu0 %v3188
    %v3525 = vpop.f32.mrb[0].mxu0
    %v3526 = vadd.f32 %v2955, %v3525
    %v3527 = vpop.f32.mrb[0].mxu0
    %v3528 = vadd.f32 %v2959, %v3527
    %v3529 = vpop.f32.mrb[0].mxu0
    %v3530 = vadd.f32 %v2955, %v3529
    %v3531 = vpop.f32.mrb[0].mxu0
    %v3532 = vadd.f32 %v2959, %v3531
    %3533 = vdwg.mxu0
    %3534 = vmatprep.subr.bf16.mxu0 %v3146
    %3535 = vmatpush1.bf16.msra.mxu0 %v3145
    %3536 = vmatprep.subr.bf16.mxu0 0
    %3537 = vmatpush1.bf16.msra.mxu0 0
    %3538 = vmatprep.subr.bf16.mxu0 0
    %3539 = vmatpush1.bf16.msra.mxu0 0
    %3540 = vmatprep.subr.bf16.mxu0 0
    %3541 = vmatpush1.bf16.msra.mxu0 0
    %3542 = vmatprep.subr.bf16.mxu0 0
    %3543 = vmatpush1.bf16.msra.mxu0 0
    %3544 = vmatprep.subr.bf16.mxu0 0
    %3545 = vmatpush1.bf16.msra.mxu0 0
    %3546 = vmatprep.subr.bf16.mxu0 0
    %3547 = vmatpush1.bf16.msra.mxu0 0
    %3548 = vmatprep.subr.bf16.mxu0 0
    %3549 = vmatpush1.bf16.msra.mxu0 0
    %3550 = vmatprep.subr.bf16.mxu0 0
    %3551 = vmatpush1.bf16.msra.mxu0 0
    %3552 = vmatprep.subr.bf16.mxu0 0
    %3553 = vmatpush1.bf16.msra.mxu0 0
    %3554 = vmatprep.subr.bf16.mxu0 0
    %3555 = vmatpush1.bf16.msra.mxu0 0
    %3556 = vmatprep.subr.bf16.mxu0 0
    %3557 = vmatpush1.bf16.msra.mxu0 0
    %3558 = vmatprep.subr.bf16.mxu0 0
    %3559 = vmatpush1.bf16.msra.mxu0 0
    %3560 = vmatprep.subr.bf16.mxu0 0
    %3561 = vmatpush1.bf16.msra.mxu0 0
    %3562 = vmatprep.subr.bf16.mxu0 0
    %3563 = vmatpush1.bf16.msra.mxu0 0
    %3564 = vmatprep.subr.bf16.mxu0 0
    %3565 = vmatpush1.bf16.msra.mxu0 0
    %3566 = vmatprep.mubr.bf16.mxu0 0
    %3567 = vmatmul.mubr.bf16.gmra.mrb[0].mxu0 %v3188
    %v3568 = vpop.f32.mrb[0].mxu0
    %v3569 = vadd.f32 %v2963, %v3568
    %v3570 = vpop.f32.mrb[0].mxu0
    %v3571 = vadd.f32 %v2967, %v3570
    %v3572 = vpop.f32.mrb[0].mxu0
    %v3573 = vadd.f32 %v2963, %v3572
    %v3574 = vpop.f32.mrb[0].mxu0
    %v3575 = vadd.f32 %v2967, %v3574
    %3576 = vdwg.mxu0
    %3577 = vmatprep.subr.bf16.mxu0 %v3148
    %3578 = vmatpush1.bf16.msra.mxu0 %v3147
    %3579 = vmatprep.subr.bf16.mxu0 0
    %3580 = vmatpush1.bf16.msra.mxu0 0
    %3581 = vmatprep.subr.bf16.mxu0 0
    %3582 = vmatpush1.bf16.msra.mxu0 0
    %3583 = vmatprep.subr.bf16.mxu0 0
    %3584 = vmatpush1.bf16.msra.mxu0 0
    %3585 = vmatprep.subr.bf16.mxu0 0
    %3586 = vmatpush1.bf16.msra.mxu0 0
    %3587 = vmatprep.subr.bf16.mxu0 0
    %3588 = vmatpush1.bf16.msra.mxu0 0
    %3589 = vmatprep.subr.bf16.mxu0 0
    %3590 = vmatpush1.bf16.msra.mxu0 0
    %3591 = vmatprep.subr.bf16.mxu0 0
    %3592 = vmatpush1.bf16.msra.mxu0 0
    %3593 = vmatprep.subr.bf16.mxu0 0
    %3594 = vmatpush1.bf16.msra.mxu0 0
    %3595 = vmatprep.subr.bf16.mxu0 0
    %3596 = vmatpush1.bf16.msra.mxu0 0
    %3597 = vmatprep.subr.bf16.mxu0 0
    %3598 = vmatpush1.bf16.msra.mxu0 0
    %3599 = vmatprep.subr.bf16.mxu0 0
    %3600 = vmatpush1.bf16.msra.mxu0 0
    %3601 = vmatprep.subr.bf16.mxu0 0
    %3602 = vmatpush1.bf16.msra.mxu0 0
    %3603 = vmatprep.subr.bf16.mxu0 0
    %3604 = vmatpush1.bf16.msra.mxu0 0
    %3605 = vmatprep.subr.bf16.mxu0 0
    %3606 = vmatpush1.bf16.msra.mxu0 0
    %3607 = vmatprep.subr.bf16.mxu0 0
    %3608 = vmatpush1.bf16.msra.mxu0 0
    %3609 = vmatprep.mubr.bf16.mxu0 0
    %3610 = vmatmul.mubr.bf16.gmra.mrb[0].mxu0 %v3188
    %v3611 = vpop.f32.mrb[0].mxu0
    %v3612 = vadd.f32 %v2971, %v3611
    %v3613 = vpop.f32.mrb[0].mxu0
    %v3614 = vadd.f32 %v2975, %v3613
    %v3615 = vpop.f32.mrb[0].mxu0
    %v3616 = vadd.f32 %v2971, %v3615
    %v3617 = vpop.f32.mrb[0].mxu0
    %v3618 = vadd.f32 %v2975, %v3617
    %3619 = vdwg.mxu0
    %3620 = vmatprep.subr.bf16.mxu0 %v3150
    %3621 = vmatpush1.bf16.msra.mxu0 %v3149
    %3622 = vmatprep.subr.bf16.mxu0 0
    %3623 = vmatpush1.bf16.msra.mxu0 0
    %3624 = vmatprep.subr.bf16.mxu0 0
    %3625 = vmatpush1.bf16.msra.mxu0 0
    %3626 = vmatprep.subr.bf16.mxu0 0
    %3627 = vmatpush1.bf16.msra.mxu0 0
    %3628 = vmatprep.subr.bf16.mxu0 0
    %3629 = vmatpush1.bf16.msra.mxu0 0
    %3630 = vmatprep.subr.bf16.mxu0 0
    %3631 = vmatpush1.bf16.msra.mxu0 0
    %3632 = vmatprep.subr.bf16.mxu0 0
    %3633 = vmatpush1.bf16.msra.mxu0 0
    %3634 = vmatprep.subr.bf16.mxu0 0
    %3635 = vmatpush1.bf16.msra.mxu0 0
    %3636 = vmatprep.subr.bf16.mxu0 0
    %3637 = vmatpush1.bf16.msra.mxu0 0
    %3638 = vmatprep.subr.bf16.mxu0 0
    %3639 = vmatpush1.bf16.msra.mxu0 0
    %3640 = vmatprep.subr.bf16.mxu0 0
    %3641 = vmatpush1.bf16.msra.mxu0 0
    %3642 = vmatprep.subr.bf16.mxu0 0
    %3643 = vmatpush1.bf16.msra.mxu0 0
    %3644 = vmatprep.subr.bf16.mxu0 0
    %3645 = vmatpush1.bf16.msra.mxu0 0
    %3646 = vmatprep.subr.bf16.mxu0 0
    %3647 = vmatpush1.bf16.msra.mxu0 0
    %3648 = vmatprep.subr.bf16.mxu0 0
    %3649 = vmatpush1.bf16.msra.mxu0 0
    %3650 = vmatprep.subr.bf16.mxu0 0
    %3651 = vmatpush1.bf16.msra.mxu0 0
    %3652 = vmatprep.mubr.bf16.mxu0 0
    %3653 = vmatmul.mubr.bf16.gmra.mrb[0].mxu0 %v3188
    %v3654 = vpop.f32.mrb[0].mxu0
    %v3655 = vadd.f32 %v2979, %v3654
    %v3656 = vpop.f32.mrb[0].mxu0
    %v3657 = vadd.f32 %v2983, %v3656
    %v3658 = vpop.f32.mrb[0].mxu0
    %v3659 = vadd.f32 %v2979, %v3658
    %v3660 = vpop.f32.mrb[0].mxu0
    %v3661 = vadd.f32 %v2983, %v3660
    %3662 = vdwg.mxu0
    %3663 = vmatprep.subr.bf16.mxu0 %v3152
    %3664 = vmatpush1.bf16.msra.mxu0 %v3151
    %3665 = vmatprep.subr.bf16.mxu0 0
    %3666 = vmatpush1.bf16.msra.mxu0 0
    %3667 = vmatprep.subr.bf16.mxu0 0
    %3668 = vmatpush1.bf16.msra.mxu0 0
    %3669 = vmatprep.subr.bf16.mxu0 0
    %3670 = vmatpush1.bf16.msra.mxu0 0
    %3671 = vmatprep.subr.bf16.mxu0 0
    %3672 = vmatpush1.bf16.msra.mxu0 0
    %3673 = vmatprep.subr.bf16.mxu0 0
    %3674 = vmatpush1.bf16.msra.mxu0 0
    %3675 = vmatprep.subr.bf16.mxu0 0
    %3676 = vmatpush1.bf16.msra.mxu0 0
    %3677 = vmatprep.subr.bf16.mxu0 0
    %3678 = vmatpush1.bf16.msra.mxu0 0
    %3679 = vmatprep.subr.bf16.mxu0 0
    %3680 = vmatpush1.bf16.msra.mxu0 0
    %3681 = vmatprep.subr.bf16.mxu0 0
    %3682 = vmatpush1.bf16.msra.mxu0 0
    %3683 = vmatprep.subr.bf16.mxu0 0
    %3684 = vmatpush1.bf16.msra.mxu0 0
    %3685 = vmatprep.subr.bf16.mxu0 0
    %3686 = vmatpush1.bf16.msra.mxu0 0
    %3687 = vmatprep.subr.bf16.mxu0 0
    %3688 = vmatpush1.bf16.msra.mxu0 0
    %3689 = vmatprep.subr.bf16.mxu0 0
    %3690 = vmatpush1.bf16.msra.mxu0 0
    %3691 = vmatprep.subr.bf16.mxu0 0
    %3692 = vmatpush1.bf16.msra.mxu0 0
    %3693 = vmatprep.subr.bf16.mxu0 0
    %3694 = vmatpush1.bf16.msra.mxu0 0
    %3695 = vmatprep.mubr.bf16.mxu0 0
    %3696 = vmatmul.mubr.bf16.gmra.mrb[0].mxu0 %v3188
    %v3697 = vpop.f32.mrb[0].mxu0
    %v3698 = vadd.f32 %v2987, %v3697
    %v3699 = vpop.f32.mrb[0].mxu0
    %v3700 = vadd.f32 %v2991, %v3699
    %v3701 = vpop.f32.mrb[0].mxu0
    %v3702 = vadd.f32 %v2987, %v3701
    %v3703 = vpop.f32.mrb[0].mxu0
    %v3704 = vadd.f32 %v2991, %v3703
    %3705 = vdwg.mxu0
    %3706 = vmatprep.subr.bf16.mxu0 %v3154
    %3707 = vmatpush1.bf16.msra.mxu0 %v3153
    %3708 = vmatprep.subr.bf16.mxu0 0
    %3709 = vmatpush1.bf16.msra.mxu0 0
    %3710 = vmatprep.subr.bf16.mxu0 0
    %3711 = vmatpush1.bf16.msra.mxu0 0
    %3712 = vmatprep.subr.bf16.mxu0 0
    %3713 = vmatpush1.bf16.msra.mxu0 0
    %3714 = vmatprep.subr.bf16.mxu0 0
    %3715 = vmatpush1.bf16.msra.mxu0 0
    %3716 = vmatprep.subr.bf16.mxu0 0
    %3717 = vmatpush1.bf16.msra.mxu0 0
    %3718 = vmatprep.subr.bf16.mxu0 0
    %3719 = vmatpush1.bf16.msra.mxu0 0
    %3720 = vmatprep.subr.bf16.mxu0 0
    %3721 = vmatpush1.bf16.msra.mxu0 0
    %3722 = vmatprep.subr.bf16.mxu0 0
    %3723 = vmatpush1.bf16.msra.mxu0 0
    %3724 = vmatprep.subr.bf16.mxu0 0
    %3725 = vmatpush1.bf16.msra.mxu0 0
    %3726 = vmatprep.subr.bf16.mxu0 0
    %3727 = vmatpush1.bf16.msra.mxu0 0
    %3728 = vmatprep.subr.bf16.mxu0 0
    %3729 = vmatpush1.bf16.msra.mxu0 0
    %3730 = vmatprep.subr.bf16.mxu0 0
    %3731 = vmatpush1.bf16.msra.mxu0 0
    %3732 = vmatprep.subr.bf16.mxu0 0
    %3733 = vmatpush1.bf16.msra.mxu0 0
    %3734 = vmatprep.subr.bf16.mxu0 0
    %3735 = vmatpush1.bf16.msra.mxu0 0
    %3736 = vmatprep.subr.bf16.mxu0 0
    %3737 = vmatpush1.bf16.msra.mxu0 0
    %3738 = vmatprep.mubr.bf16.mxu0 0
    %3739 = vmatmul.mubr.bf16.gmra.mrb[0].mxu0 %v3188
    %v3740 = vpop.f32.mrb[0].mxu0
    %v3741 = vadd.f32 %v2995, %v3740
    %v3742 = vpop.f32.mrb[0].mxu0
    %v3743 = vadd.f32 %v2999, %v3742
    %v3744 = vpop.f32.mrb[0].mxu0
    %v3745 = vadd.f32 %v2995, %v3744
    %v3746 = vpop.f32.mrb[0].mxu0
    %v3747 = vadd.f32 %v2999, %v3746
    %3748 = vdwg.mxu0
    %3749 = vmatprep.subr.bf16.mxu0 %v3156
    %3750 = vmatpush1.bf16.msra.mxu0 %v3155
    %3751 = vmatprep.subr.bf16.mxu0 0
    %3752 = vmatpush1.bf16.msra.mxu0 0
    %3753 = vmatprep.subr.bf16.mxu0 0
    %3754 = vmatpush1.bf16.msra.mxu0 0
    %3755 = vmatprep.subr.bf16.mxu0 0
    %3756 = vmatpush1.bf16.msra.mxu0 0
    %3757 = vmatprep.subr.bf16.mxu0 0
    %3758 = vmatpush1.bf16.msra.mxu0 0
    %3759 = vmatprep.subr.bf16.mxu0 0
    %3760 = vmatpush1.bf16.msra.mxu0 0
    %3761 = vmatprep.subr.bf16.mxu0 0
    %3762 = vmatpush1.bf16.msra.mxu0 0
    %3763 = vmatprep.subr.bf16.mxu0 0
    %3764 = vmatpush1.bf16.msra.mxu0 0
    %3765 = vmatprep.subr.bf16.mxu0 0
    %3766 = vmatpush1.bf16.msra.mxu0 0
    %3767 = vmatprep.subr.bf16.mxu0 0
    %3768 = vmatpush1.bf16.msra.mxu0 0
    %3769 = vmatprep.subr.bf16.mxu0 0
    %3770 = vmatpush1.bf16.msra.mxu0 0
    %3771 = vmatprep.subr.bf16.mxu0 0
    %3772 = vmatpush1.bf16.msra.mxu0 0
    %3773 = vmatprep.subr.bf16.mxu0 0
    %3774 = vmatpush1.bf16.msra.mxu0 0
    %3775 = vmatprep.subr.bf16.mxu0 0
    %3776 = vmatpush1.bf16.msra.mxu0 0
    %3777 = vmatprep.subr.bf16.mxu0 0
    %3778 = vmatpush1.bf16.msra.mxu0 0
    %3779 = vmatprep.subr.bf16.mxu0 0
    %3780 = vmatpush1.bf16.msra.mxu0 0
    %3781 = vmatprep.mubr.bf16.mxu0 0
    %3782 = vmatmul.mubr.bf16.gmra.mrb[0].mxu0 %v3188
    %v3783 = vpop.f32.mrb[0].mxu0
    %v3784 = vadd.f32 %v3003, %v3783
    %v3785 = vpop.f32.mrb[0].mxu0
    %v3786 = vadd.f32 %v3007, %v3785
    %v3787 = vpop.f32.mrb[0].mxu0
    %v3788 = vadd.f32 %v3003, %v3787
    %v3789 = vpop.f32.mrb[0].mxu0
    %v3790 = vadd.f32 %v3007, %v3789
    %3791 = vdwg.mxu0
    %3792 = vmatprep.subr.bf16.mxu0 0
    %3793 = vmatpush1.bf16.msra.mxu0 %v3157
    %3794 = vmatprep.subr.bf16.mxu0 0
    %3795 = vmatpush1.bf16.msra.mxu0 0
    %3796 = vmatprep.subr.bf16.mxu0 0
    %3797 = vmatpush1.bf16.msra.mxu0 0
    %3798 = vmatprep.subr.bf16.mxu0 0
    %3799 = vmatpush1.bf16.msra.mxu0 0
    %3800 = vmatprep.subr.bf16.mxu0 0
    %3801 = vmatpush1.bf16.msra.mxu0 0
    %3802 = vmatprep.subr.bf16.mxu0 0
    %3803 = vmatpush1.bf16.msra.mxu0 0
    %3804 = vmatprep.subr.bf16.mxu0 0
    %3805 = vmatpush1.bf16.msra.mxu0 0
    %3806 = vmatprep.subr.bf16.mxu0 0
    %3807 = vmatpush1.bf16.msra.mxu0 0
    %3808 = vmatprep.subr.bf16.mxu0 0
    %3809 = vmatpush1.bf16.msra.mxu0 0
    %3810 = vmatprep.subr.bf16.mxu0 0
    %3811 = vmatpush1.bf16.msra.mxu0 0
    %3812 = vmatprep.subr.bf16.mxu0 0
    %3813 = vmatpush1.bf16.msra.mxu0 0
    %3814 = vmatprep.subr.bf16.mxu0 0
    %3815 = vmatpush1.bf16.msra.mxu0 0
    %3816 = vmatprep.subr.bf16.mxu0 0
    %3817 = vmatpush1.bf16.msra.mxu0 0
    %3818 = vmatprep.subr.bf16.mxu0 0
    %3819 = vmatpush1.bf16.msra.mxu0 0
    %3820 = vmatprep.subr.bf16.mxu0 0
    %3821 = vmatpush1.bf16.msra.mxu0 0
    %3822 = vmatprep.subr.bf16.mxu0 0
    %3823 = vmatpush1.bf16.msra.mxu0 0
    %3824 = vmatprep.mubr.bf16.mxu0 0
    %3825 = vmatmul.mubr.bf16.gmra.mrb[0].mxu0 %v3188
    %v3826 = vpop.f32.mrb[0].mxu0
    %v3827 = vadd.f32 %v3011, %v3826
    %v3828 = vpop.f32.mrb[0].mxu0
    %v3829 = vpop.f32.mrb[0].mxu0
    %v3830 = vadd.f32 %v3011, %v3829
    %v3831 = vpop.f32.mrb[0].mxu0
    %3832 = vdwg.mxu0
    %v3833 = vpack.c.bf16 %v3229, %v3225
    %v3834 = vpack.c.bf16 %v3231, %v3227
    %v3835 = vpack.c.bf16 %v3272, %v3268
    %v3836 = vpack.c.bf16 %v3274, %v3270
    %v3837 = vpack.c.bf16 %v3315, %v3311
    %v3838 = vpack.c.bf16 %v3317, %v3313
    %v3839 = vpack.c.bf16 %v3358, %v3354
    %v3840 = vpack.c.bf16 %v3360, %v3356
    %v3841 = vpack.c.bf16 %v3401, %v3397
    %v3842 = vpack.c.bf16 %v3403, %v3399
    %v3843 = vpack.c.bf16 %v3444, %v3440
    %v3844 = vpack.c.bf16 %v3446, %v3442
    %v3845 = vpack.c.bf16 %v3487, %v3483
    %v3846 = vpack.c.bf16 %v3489, %v3485
    %v3847 = vpack.c.bf16 %v3530, %v3526
    %v3848 = vpack.c.bf16 %v3532, %v3528
    %v3849 = vpack.c.bf16 %v3573, %v3569
    %v3850 = vpack.c.bf16 %v3575, %v3571
    %v3851 = vpack.c.bf16 %v3616, %v3612
    %v3852 = vpack.c.bf16 %v3618, %v3614
    %v3853 = vpack.c.bf16 %v3659, %v3655
    %v3854 = vpack.c.bf16 %v3661, %v3657
    %v3855 = vpack.c.bf16 %v3702, %v3698
    %v3856 = vpack.c.bf16 %v3704, %v3700
    %v3857 = vpack.c.bf16 %v3745, %v3741
    %v3858 = vpack.c.bf16 %v3747, %v3743
    %v3859 = vpack.c.bf16 %v3788, %v3784
    %v3860 = vpack.c.bf16 %v3790, %v3786
    %v3861 = vpack.c.bf16 %v3830, %v3827
    %v3891 = vunpack.c.l.b16 %v3833
    %v3892 = vunpack.c.l.b16 %v3834
    %v3893 = vunpack.c.l.b16 %v3835
    %v3894 = vunpack.c.l.b16 %v3836
    %v3895 = vunpack.c.l.b16 %v3837
    %v3896 = vunpack.c.l.b16 %v3838
    %v3897 = vunpack.c.l.b16 %v3839
    %v3898 = vunpack.c.l.b16 %v3840
    %v3899 = vunpack.c.l.b16 %v3841
    %v3900 = vunpack.c.l.b16 %v3842
    %v3901 = vunpack.c.l.b16 %v3843
    %v3902 = vunpack.c.l.b16 %v3844
    %v3903 = vunpack.c.l.b16 %v3845
    %v3904 = vunpack.c.l.b16 %v3846
    %v3905 = vunpack.c.l.b16 %v3847
    %v3906 = vunpack.c.l.b16 %v3848
    %v3907 = vunpack.c.l.b16 %v3849
    %v3908 = vunpack.c.l.b16 %v3850
    %v3909 = vunpack.c.l.b16 %v3851
    %v3910 = vunpack.c.l.b16 %v3852
    %v3911 = vunpack.c.l.b16 %v3853
    %v3912 = vunpack.c.l.b16 %v3854
    %v3913 = vunpack.c.l.b16 %v3855
    %v3914 = vunpack.c.l.b16 %v3856
    %v3915 = vunpack.c.l.b16 %v3857
    %v3916 = vunpack.c.l.b16 %v3858
    %v3917 = vunpack.c.l.b16 %v3859
    %v3918 = vunpack.c.l.b16 %v3860
    %v3919 = vunpack.c.l.b16 %v3861
    %v3920 = vunpack.c.h.b16 %v3833
    %v3921 = vunpack.c.h.b16 %v3834
    %v3922 = vunpack.c.h.b16 %v3835
    %v3923 = vunpack.c.h.b16 %v3836
    %v3924 = vunpack.c.h.b16 %v3837
    %v3925 = vunpack.c.h.b16 %v3838
    %v3926 = vunpack.c.h.b16 %v3839
    %v3927 = vunpack.c.h.b16 %v3840
    %v3928 = vunpack.c.h.b16 %v3841
    %v3929 = vunpack.c.h.b16 %v3842
    %v3930 = vunpack.c.h.b16 %v3843
    %v3931 = vunpack.c.h.b16 %v3844
    %v3932 = vunpack.c.h.b16 %v3845
    %v3933 = vunpack.c.h.b16 %v3846
    %v3934 = vunpack.c.h.b16 %v3847
    %v3935 = vunpack.c.h.b16 %v3848
    %v3936 = vunpack.c.h.b16 %v3849
    %v3937 = vunpack.c.h.b16 %v3850
    %v3938 = vunpack.c.h.b16 %v3851
    %v3939 = vunpack.c.h.b16 %v3852
    %v3940 = vunpack.c.h.b16 %v3853
    %v3941 = vunpack.c.h.b16 %v3854
    %v3942 = vunpack.c.h.b16 %v3855
    %v3943 = vunpack.c.h.b16 %v3856
    %v3944 = vunpack.c.h.b16 %v3857
    %v3945 = vunpack.c.h.b16 %v3858
    %v3946 = vunpack.c.h.b16 %v3859
    %v3947 = vunpack.c.h.b16 %v3860
    %v3948 = vunpack.c.h.b16 %v3861
    %v3949 = vpack.c.b16 %v3892, %v3891
    %v3950 = vpack.c.b16 %v3894, %v3893
    %v3951 = vpack.c.b16 %v3896, %v3895
    %v3952 = vpack.c.b16 %v3898, %v3897
    %v3953 = vpack.c.b16 %v3900, %v3899
    %v3954 = vpack.c.b16 %v3902, %v3901
    %v3955 = vpack.c.b16 %v3904, %v3903
    %v3956 = vpack.c.b16 %v3906, %v3905
    %v3957 = vpack.c.b16 %v3908, %v3907
    %v3958 = vpack.c.b16 %v3910, %v3909
    %v3959 = vpack.c.b16 %v3912, %v3911
    %v3960 = vpack.c.b16 %v3914, %v3913
    %v3961 = vpack.c.b16 %v3916, %v3915
    %v3962 = vpack.c.b16 %v3918, %v3917
    %v3963 = vpack.c.b16 %v3919, %v3919
    %v3964 = vpack.c.b16 %v3921, %v3920
    %v3965 = vpack.c.b16 %v3923, %v3922
    %v3966 = vpack.c.b16 %v3925, %v3924
    %v3967 = vpack.c.b16 %v3927, %v3926
    %v3968 = vpack.c.b16 %v3929, %v3928
    %v3969 = vpack.c.b16 %v3931, %v3930
    %v3970 = vpack.c.b16 %v3933, %v3932
    %v3971 = vpack.c.b16 %v3935, %v3934
    %v3972 = vpack.c.b16 %v3937, %v3936
    %v3973 = vpack.c.b16 %v3939, %v3938
    %v3974 = vpack.c.b16 %v3941, %v3940
    %v3975 = vpack.c.b16 %v3943, %v3942
    %v3976 = vpack.c.b16 %v3945, %v3944
    %v3977 = vpack.c.b16 %v3947, %v3946
    %v3978 = vpack.c.b16 %v3948, %v3948
    %4009 = vst [vmem:[#allocation2] sm:$0xff] %v3949
    %4010 = vst [vmem:[#allocation2 + $0x8] sm:$0xff] %v3950
    %4011 = vst [vmem:[#allocation2 + $0x10] sm:$0xff] %v3951
    %4012 = vst [vmem:[#allocation2 + $0x18] sm:$0xff] %v3952
    %4013 = vst [vmem:[#allocation2 + $0x20] sm:$0xff] %v3953
    %4014 = vst [vmem:[#allocation2 + $0x28] sm:$0xff] %v3954
    %4015 = vst [vmem:[#allocation2 + $0x30] sm:$0xff] %v3955
    %4016 = vst [vmem:[#allocation2 + $0x38] sm:$0xff] %v3956
    %4017 = vst [vmem:[#allocation2 + $0x40] sm:$0xff] %v3957
    %4018 = vst [vmem:[#allocation2 + $0x48] sm:$0xff] %v3958
    %4019 = vst [vmem:[#allocation2 + $0x50] sm:$0xff] %v3959
    %4020 = vst [vmem:[#allocation2 + $0x58] sm:$0xff] %v3960
    %4021 = vst [vmem:[#allocation2 + $0x60] sm:$0xff] %v3961
    %4022 = vst [vmem:[#allocation2 + $0x68] sm:$0xff] %v3962
    %vm4023 = vcmask 175104
    %4024 = vst.msk [vmem:[#allocation2 + $0x70] sm:$0xf] %vm4023, %v3963
    %4025 = vst [vmem:[#allocation2 + $0x74] sm:$0xff] %v3964
    %4026 = vst [vmem:[#allocation2 + $0x7c] sm:$0xff] %v3965
    %4027 = vst [vmem:[#allocation2 + $0x84] sm:$0xff] %v3966
    %4028 = vst [vmem:[#allocation2 + $0x8c] sm:$0xff] %v3967
    %4029 = vst [vmem:[#allocation2 + $0x94] sm:$0xff] %v3968
    %4030 = vst [vmem:[#allocation2 + $0x9c] sm:$0xff] %v3969
    %4031 = vst [vmem:[#allocation2 + $0xa4] sm:$0xff] %v3970
    %4032 = vst [vmem:[#allocation2 + $0xac] sm:$0xff] %v3971
    %4033 = vst [vmem:[#allocation2 + $0xb4] sm:$0xff] %v3972
    %4034 = vst [vmem:[#allocation2 + $0xbc] sm:$0xff] %v3973
    %4035 = vst [vmem:[#allocation2 + $0xc4] sm:$0xff] %v3974
    %4036 = vst [vmem:[#allocation2 + $0xcc] sm:$0xff] %v3975
    %4037 = vst [vmem:[#allocation2 + $0xd4] sm:$0xff] %v3976
    %4038 = vst [vmem:[#allocation2 + $0xdc] sm:$0xff] %v3977
    %4039 = vst.msk [vmem:[#allocation2 + $0xe4] sm:$0xf] %vm4023, %v3978
    // Predicated region
    $region42: #{vae_forward.1} parent=1 // pred_check
      _
    $region43: #{vae_forward.1} parent=1 // pred_check_branch
      %4041 = sbr.rel (0) target = $region45
    $region44: #{vae_forward.1} parent=1 // pred_region
      %s4043 = ssub.s32 3712, 3712
      %4044 = vsyncadd [#allocation3], %s4043
      %s4045 = sshll.u32 [#allocation2], 4
      %s4046 = int_to_ptr.vmem [resolvable:$true] %s4045
      %4051 = dma.vmem_to_hbm [thread:$0]  %s4046, 3712, %s10, [#allocation3], 1856, 1856, 116
    $region45: #{vae_forward.1} parent=1 // pred_fallthru
      _
    // Predicated region
    $region46: #{vae_forward.1} parent=1 // pred_check
      _
    $region47: #{vae_forward.1} parent=1 // pred_check_branch
      %4053 = sbr.rel (0) target = $region49
    $region48: #{vae_forward.1} parent=1 // pred_region
      _
    $region49: #{vae_forward.1} parent=1 // pred_fallthru
      _
    // Predicated region
    $region50: #{vae_forward.1} parent=1 // pred_check
      _
    $region51: #{vae_forward.1} parent=1 // pred_check_branch
      %4055 = sbr.rel (0) target = $region53
    $region52: #{vae_forward.1} parent=1 // pred_region
      %4056 = dma.done [#allocation3], 3712
    $region53: #{vae_forward.1} parent=1 // pred_fallthru
      _
    // Predicated region
    $region54: #{vae_forward.1} parent=1 // pred_check
      _
    $region55: #{vae_forward.1} parent=1 // pred_check_branch
      %4058 = sbr.rel (0) target = $region57
    $region56: #{vae_forward.1} parent=1 // pred_region
      _
    $region57: #{vae_forward.1} parent=1 // pred_fallthru
      _
    %4059 = vsyncpa [#allocation3], 1

</llo_original>
